<compile_context>
chip_gen: v7x
topology: tpu7x:2x2x1
jax: 0.10.0
libtpu: 0.0.40
codegen_flags: <defaults>
</compile_context>

<pallas_src>
import math
import functools

import jax
import jax.numpy as jnp
from jax.experimental import pallas as pl
from jax.experimental.pallas import tpu as pltpu


def _layer_norm(v, gamma, beta, eps=1e-5):
    # PyTorch LayerNorm: biased variance over last dim, eps inside sqrt. All f32.
    mu = jnp.mean(v, axis=-1, keepdims=True)
    var = jnp.mean((v - mu) ** 2, axis=-1, keepdims=True)
    return (v - mu) * jax.lax.rsqrt(var + eps) * gamma + beta


def encoder_layer_kernel(
    x_ref,
    wqkv_ref, bqkv_ref, wo_ref, bo_ref,
    w1_ref, b1_ref, w2_ref, b2_ref,
    g1_ref, beta1_ref, g2_ref, beta2_ref,
    out_ref,
    k_scr, v_scr,
    *, num_heads, d_k, block_q,
):
    qi = pl.program_id(1)
    H, dk, TQ = num_heads, d_k, block_q
    TK = TQ                      # KV tile == query tile; diagonal handled separately.
    D = H * dk
    q_off = pl.multiple_of(qi * TQ, TQ)
    scale = 1.0 / math.sqrt(dk)

    # ---- incremental fused QKV projection: only this query tile's rows ----
    x_t = x_ref[...]                                                  # (TQ, D) f32
    qkv = jnp.dot(x_t.astype(jnp.bfloat16), wqkv_ref[...],
                  preferred_element_type=jnp.float32) + bqkv_ref[...]  # (TQ, 3D) f32

    def to_heads(m):                                                  # (TQ, D) -> (H, TQ, dk)
        return jnp.swapaxes(m.reshape(TQ, H, dk), 0, 1)

    # scale folded into Q once; all MXU operands bf16, accumulation f32
    q_t = to_heads((qkv[:, 0 * D:1 * D] * scale).astype(jnp.bfloat16))
    k_t = to_heads(qkv[:, 1 * D:2 * D].astype(jnp.bfloat16))
    v_t = to_heads(qkv[:, 2 * D:3 * D].astype(jnp.bfloat16))

    # persist this tile's K/V (head-major, bf16) for later query tiles of the same batch
    k_scr[:, pl.ds(q_off, TQ), :] = k_t
    v_scr[:, pl.ds(q_off, TQ), :] = v_t

    # ---- online softmax over KV tiles strictly below the diagonal (no mask needed) ----
    def kv_step(j, carry):
        m_prev, l_prev, acc_prev = carry
        k_off = pl.multiple_of(j * TK, TK)
        k_blk = k_scr[:, pl.ds(k_off, TK), :]                         # (H, TK, dk) bf16
        v_blk = v_scr[:, pl.ds(k_off, TK), :]
        s = jnp.einsum("hqd,hkd->hqk", q_t, k_blk,
                       preferred_element_type=jnp.float32)
        m_new = jnp.maximum(m_prev, jnp.max(s, axis=-1, keepdims=True))
        alpha = jnp.exp(m_prev - m_new)
        p = jnp.exp(s - m_new)
        l_new = alpha * l_prev + jnp.sum(p, axis=-1, keepdims=True)
        acc_new = alpha * acc_prev + jnp.einsum(
            "hqk,hkd->hqd", p.astype(jnp.bfloat16), v_blk,
            preferred_element_type=jnp.float32)
        return m_new, l_new, acc_new

    m0 = jnp.full((H, TQ, 1), -1e30, jnp.float32)
    l0 = jnp.zeros((H, TQ, 1), jnp.float32)
    a0 = jnp.zeros((H, TQ, dk), jnp.float32)
    m_i, l_i, acc = jax.lax.fori_loop(0, qi, kv_step, (m0, l0, a0))

    # ---- diagonal KV tile: from registers (no VMEM round trip), with the causal mask ----
    s = jnp.einsum("hqd,hkd->hqk", q_t, k_t, preferred_element_type=jnp.float32)
    row = jax.lax.broadcasted_iota(jnp.int32, (TQ, TQ), 0)
    col = jax.lax.broadcasted_iota(jnp.int32, (TQ, TQ), 1)
    s = jnp.where((col <= row)[None, :, :], s, -1000000000.0)
    m_new = jnp.maximum(m_i, jnp.max(s, axis=-1, keepdims=True))
    alpha = jnp.exp(m_i - m_new)
    p = jnp.exp(s - m_new)
    l_i = alpha * l_i + jnp.sum(p, axis=-1, keepdims=True)
    acc = alpha * acc + jnp.einsum("hqk,hkd->hqd", p.astype(jnp.bfloat16), v_t,
                                   preferred_element_type=jnp.float32)

    attn = acc * pl.reciprocal(l_i, approx=True)                      # (H, TQ, dk) f32
    attn = jnp.swapaxes(attn, 0, 1).reshape(TQ, D)                    # combine heads
    attn = jnp.dot(attn.astype(jnp.bfloat16), wo_ref[...],
                   preferred_element_type=jnp.float32) + bo_ref[...]

    # ---- residual + LayerNorm 1 (f32) ----
    x1 = _layer_norm(x_t + attn, g1_ref[...], beta1_ref[...])

    # ---- position-wise feed-forward (bf16 MXU operands, f32 accumulation) ----
    h1 = jnp.dot(x1.astype(jnp.bfloat16), w1_ref[...],
                 preferred_element_type=jnp.float32) + b1_ref[...]
    h1 = jnp.maximum(h1, 0.0)
    ff = jnp.dot(h1.astype(jnp.bfloat16), w2_ref[...],
                 preferred_element_type=jnp.float32) + b2_ref[...]

    # ---- residual + LayerNorm 2 ----
    out_ref[...] = _layer_norm(x1 + ff, g2_ref[...], beta2_ref[...]).astype(out_ref.dtype)


def prepare_params(params):
    """One-time weight fusion + bf16 cast (kept OUT of the per-call path)."""
    return {
        "wqkv": jnp.concatenate(
            [params["wq"], params["wk"], params["wv"]], axis=1).astype(jnp.bfloat16),
        "bqkv": jnp.concatenate([params["bq"], params["bk"], params["bv"]], axis=1),
        "wo": params["wo"].astype(jnp.bfloat16), "bo": params["bo"],
        "w1": params["w1"].astype(jnp.bfloat16), "b1": params["b1"],
        "w2": params["w2"].astype(jnp.bfloat16), "b2": params["b2"],
        "g1": params["g1"], "beta1": params["beta1"],
        "g2": params["g2"], "beta2": params["beta2"],
    }


def _vmem_limit_bytes(S, D, d_ff, H, dk, TQ):
    """Rough VMEM budget from actual (padded) buffer sizes + headroom."""
    bf16, f32 = 2, 4
    lane = lambda n: ((n + 127) // 128) * 128
    sub8 = lambda n: ((n + 7) // 8) * 8
    sub16 = lambda n: ((n + 15) // 16) * 16
    weights = 2 * bf16 * (D * lane(3 * D) + D * lane(D) + D * lane(d_ff) + d_ff * lane(D))
    biases = 2 * f32 * 8 * (lane(3 * D) + 6 * lane(D) + lane(d_ff))
    io = 2 * f32 * sub8(TQ) * lane(D) * 2                 # x tile in + out tile
    scratch = 2 * bf16 * H * sub16(S) * lane(dk)          # K + V scratch (bf16, head-major)
    est = int(1.5 * (weights + biases + io + scratch)) + (8 << 20)
    return max(32 << 20, min(est, 100 << 20))


def encoder_layer(x, prepped, *, num_heads, block_q=None):
    B, S, D = x.shape
    d_k = D // num_heads
    d_ff = prepped["w1"].shape[1]

    if block_q is None:
        block_q = S if S <= 256 else 256
    assert S % block_q == 0, "sequence length must be divisible by the query tile"
    n_q = S // block_q

    full = lambda shape: pl.BlockSpec(shape, lambda b, qi: (0,) * len(shape))

    in_specs = [
        pl.BlockSpec((None, block_q, D), lambda b, qi: (b, qi, 0)),  # x: only this query tile
        full((D, 3 * D)), full((1, 3 * D)),                          # Wqkv (bf16), bqkv
        full((D, D)), full((1, D)),                                  # Wo (bf16), bo
        full((D, d_ff)), full((1, d_ff)),                            # W1 (bf16), b1
        full((d_ff, D)), full((1, D)),                               # W2 (bf16), b2
        full((1, D)), full((1, D)),                                  # gamma1, beta1
        full((1, D)), full((1, D)),                                  # gamma2, beta2
    ]

    kernel = functools.partial(
        encoder_layer_kernel, num_heads=num_heads, d_k=d_k, block_q=block_q)

    # Advisory cost estimate: attention (causal half), projections, FFN.
    attn_flops = 2 * 2 * B * S * S * D // 2
    proj_flops = 2 * B * S * D * (3 * D + D)
    ffn_flops = 2 * 2 * B * S * D * d_ff
    cost = pl.CostEstimate(
        flops=attn_flops + proj_flops + ffn_flops,
        transcendentals=B * num_heads * S * S // 2,
        bytes_accessed=2 * B * S * D * 4 + 2 * (3 * D * D + D * D + 2 * D * d_ff),
    )

    return pl.pallas_call(
        kernel,
        out_shape=jax.ShapeDtypeStruct((B, S, D), jnp.float32),
        grid_spec=pltpu.PrefetchScalarGridSpec(
            num_scalar_prefetch=0,
            grid=(B, n_q),
            in_specs=in_specs,
            out_specs=pl.BlockSpec((None, block_q, D), lambda b, qi: (b, qi, 0)),
            scratch_shapes=[
                pltpu.VMEM((num_heads, S, d_k), jnp.bfloat16),   # K (head-major, bf16)
                pltpu.VMEM((num_heads, S, d_k), jnp.bfloat16),   # V (head-major, bf16)
            ],
        ),
        compiler_params=pltpu.CompilerParams(
            # Query-tile axis carries the per-batch K/V scratch -> must stay "arbitrary".
            dimension_semantics=("parallel", "arbitrary"),
            vmem_limit_bytes=_vmem_limit_bytes(S, D, d_ff, num_heads, d_k, block_q),
        ),
        cost_estimate=cost,
    )(
        x,
        prepped["wqkv"], prepped["bqkv"], prepped["wo"], prepped["bo"],
        prepped["w1"], prepped["b1"], prepped["w2"], prepped["b2"],
        prepped["g1"], prepped["beta1"], prepped["g2"], prepped["beta2"],
    )


def encoder_layer_ref(x, params, *, num_heads):
    """Pure-JAX (f32) reference for correctness checking."""
    B, S, D = x.shape
    d_k = D // num_heads

    def lin(v, w, b):
        return v @ w + b[0]

    q = lin(x, params["wq"], params["bq"]).reshape(B, S, num_heads, d_k).transpose(0, 2, 1, 3)
    k = lin(x, params["wk"], params["bk"]).reshape(B, S, num_heads, d_k).transpose(0, 2, 1, 3)
    v = lin(x, params["wv"], params["bv"]).reshape(B, S, num_heads, d_k).transpose(0, 2, 1, 3)

    s = jnp.einsum("bhqd,bhkd->bhqk", q, k) / math.sqrt(d_k)
    mask = jnp.tril(jnp.ones((S, S)))
    s = jnp.where(mask < 0.1, -1000000000.0, s)
    p = jax.nn.softmax(s, axis=-1)
    attn = jnp.einsum("bhqk,bhkd->bhqd", p, v).transpose(0, 2, 1, 3).reshape(B, S, D)
    attn = lin(attn, params["wo"], params["bo"])

    def ln(v, g, b):
        mu = jnp.mean(v, axis=-1, keepdims=True)
        var = jnp.mean((v - mu) ** 2, axis=-1, keepdims=True)
        return (v - mu) / jnp.sqrt(var + 1e-5) * g[0] + b[0]

    x1 = ln(x + attn, params["g1"], params["beta1"])
    h1 = jnp.maximum(lin(x1, params["w1"], params["b1"]), 0.0)
    ff = lin(h1, params["w2"], params["b2"])
    return ln(x1 + ff, params["g2"], params["beta2"])


def init_params(key, d_model, d_ff):
    keys = jax.random.split(key, 12)

    def w(k, shape):
        return (0.02 * jax.random.normal(k, shape)).astype(jnp.float32)

    return {
        "wq": w(keys[0], (d_model, d_model)), "bq": w(keys[1], (1, d_model)),
        "wk": w(keys[2], (d_model, d_model)), "bk": w(keys[3], (1, d_model)),
        "wv": w(keys[4], (d_model, d_model)), "bv": w(keys[5], (1, d_model)),
        "wo": w(keys[6], (d_model, d_model)), "bo": w(keys[7], (1, d_model)),
        "w1": w(keys[8], (d_model, d_ff)),    "b1": w(keys[9], (1, d_ff)),
        "w2": w(keys[10], (d_ff, d_model)),   "b2": w(keys[11], (1, d_model)),
        "g1": jnp.ones((1, d_model), jnp.float32), "beta1": jnp.zeros((1, d_model), jnp.float32),
        "g2": jnp.ones((1, d_model), jnp.float32), "beta2": jnp.zeros((1, d_model), jnp.float32),
    }


if __name__ == "__main__":
    # S=32 with block_q=16 exercises the query-tile grid axis, the mask-free interior KV
    # loop, the masked diagonal tile, and the incremental K/V scratch writes (16-row,
    # bf16-tile-aligned offsets).
    B, S, d_model, num_heads, d_ff = 2, 32, 32, 4, 64

    key = jax.random.PRNGKey(0)
    k_x, k_p = jax.random.split(key)
    x = jax.random.normal(k_x, (B, S, d_model), dtype=jnp.float32)
    params = init_params(k_p, d_model, d_ff)
    prepped = prepare_params(params)        # one-time fuse/cast, not per call

    out = encoder_layer(x, prepped, num_heads=num_heads, block_q=16)
    out = jax.block_until_ready(out)

    ref = encoder_layer_ref(x, params, num_heads=num_heads)
    assert out.shape == (B, S, d_model)
    # bf16 MXU operands (f32 accumulation) + approx reciprocal -> compare at 2e-2.
    assert jnp.allclose(out, ref, atol=2e-2, rtol=2e-2), "mismatch vs JAX reference"

    print("KERNEL_OK")
</pallas_src>

<mosaic_0001>
module attributes {stable_mosaic.version = 11 : i64} {
  func.func @encoder_layer_kernel(%arg0: i32, %arg1: i32, %arg2: memref<1x16x32xf32, #tpu.memory_space<vmem>>, %arg3: memref<32x96xbf16, #tpu.memory_space<vmem>>, %arg4: memref<1x96xf32, #tpu.memory_space<vmem>>, %arg5: memref<32x32xbf16, #tpu.memory_space<vmem>>, %arg6: memref<1x32xf32, #tpu.memory_space<vmem>>, %arg7: memref<32x64xbf16, #tpu.memory_space<vmem>>, %arg8: memref<1x64xf32, #tpu.memory_space<vmem>>, %arg9: memref<64x32xbf16, #tpu.memory_space<vmem>>, %arg10: memref<1x32xf32, #tpu.memory_space<vmem>>, %arg11: memref<1x32xf32, #tpu.memory_space<vmem>>, %arg12: memref<1x32xf32, #tpu.memory_space<vmem>>, %arg13: memref<1x32xf32, #tpu.memory_space<vmem>>, %arg14: memref<1x32xf32, #tpu.memory_space<vmem>>, %arg15: memref<1x16x32xf32, #tpu.memory_space<vmem>>, %arg16: memref<4x32x8xbf16, #tpu.memory_space<vmem>>, %arg17: memref<4x32x8xbf16, #tpu.memory_space<vmem>>) attributes {dimension_semantics = [#tpu.dimension_semantics<parallel>, #tpu.dimension_semantics<arbitrary>], iteration_bounds = array<i64: 2, 2>, scalar_prefetch = 0 : i64, scratch_operands = 2 : i64, tpu.core_type = #tpu.core_type<tc>, window_params = [{transform_indices = @transform_0, window_bounds = array<i64: 1, 16, 32>}, {pipeline_mode = #tpu.pipeline_mode<synchronous>, transform_indices = @transform_1, window_bounds = array<i64: 32, 96>}, {pipeline_mode = #tpu.pipeline_mode<synchronous>, transform_indices = @transform_2, window_bounds = array<i64: 1, 96>}, {pipeline_mode = #tpu.pipeline_mode<synchronous>, transform_indices = @transform_3, window_bounds = array<i64: 32, 32>}, {pipeline_mode = #tpu.pipeline_mode<synchronous>, transform_indices = @transform_4, window_bounds = array<i64: 1, 32>}, {pipeline_mode = #tpu.pipeline_mode<synchronous>, transform_indices = @transform_5, window_bounds = array<i64: 32, 64>}, {pipeline_mode = #tpu.pipeline_mode<synchronous>, transform_indices = @transform_6, window_bounds = array<i64: 1, 64>}, {pipeline_mode = #tpu.pipeline_mode<synchronous>, transform_indices = @transform_7, window_bounds = array<i64: 64, 32>}, {pipeline_mode = #tpu.pipeline_mode<synchronous>, transform_indices = @transform_8, window_bounds = array<i64: 1, 32>}, {pipeline_mode = #tpu.pipeline_mode<synchronous>, transform_indices = @transform_9, window_bounds = array<i64: 1, 32>}, {pipeline_mode = #tpu.pipeline_mode<synchronous>, transform_indices = @transform_10, window_bounds = array<i64: 1, 32>}, {pipeline_mode = #tpu.pipeline_mode<synchronous>, transform_indices = @transform_11, window_bounds = array<i64: 1, 32>}, {pipeline_mode = #tpu.pipeline_mode<synchronous>, transform_indices = @transform_12, window_bounds = array<i64: 1, 32>}, {transform_indices = @transform_13, window_bounds = array<i64: 1, 16, 32>}]} {
    %c16_i32 = arith.constant 16 : i32
    %0 = arith.muli %arg1, %c16_i32 : i32
    %1 = tpu.assume_multiple %0, 16 : i32
    %c0 = arith.constant 0 : index
    %c0_0 = arith.constant 0 : index
    %c0_1 = arith.constant 0 : index
    %2 = vector.load %arg2[%c0, %c0_0, %c0_1] : memref<1x16x32xf32, #tpu.memory_space<vmem>>, vector<1x16x32xf32>
    %3 = vector.shape_cast %2 : vector<1x16x32xf32> to vector<16x32xf32>
    %4 = arith.truncf %3 : vector<16x32xf32> to vector<16x32xbf16>
    %c0_2 = arith.constant 0 : index
    %c0_3 = arith.constant 0 : index
    %5 = vector.load %arg3[%c0_2, %c0_3] : memref<32x96xbf16, #tpu.memory_space<vmem>>, vector<32x96xbf16>
    %cst = arith.constant dense<0.000000e+00> : vector<16x96xf32>
    %6 = tpu.matmul %4, %5, %cst {dimension_numbers = #tpu.dot_dimension_numbers<[1], [0], [0], [1], [0, 0, 1, 1], [], []>} : vector<16x32xbf16>, vector<32x96xbf16>, vector<16x96xf32> -> vector<16x96xf32>
    %c0_4 = arith.constant 0 : index
    %c0_5 = arith.constant 0 : index
    %7 = vector.load %arg4[%c0_4, %c0_5] : memref<1x96xf32, #tpu.memory_space<vmem>>, vector<1x96xf32>
    %8 = vector.broadcast %7 : vector<1x96xf32> to vector<16x96xf32>
    %9 = arith.addf %6, %8 : vector<16x96xf32>
    %10 = vector.extract_strided_slice %9 {offsets = [0, 0], sizes = [16, 32], strides = [1, 1]} : vector<16x96xf32> to vector<16x32xf32>
    %cst_6 = arith.constant 0.353553385 : f32
    %11 = vector.broadcast %cst_6 : f32 to vector<16x32xf32>
    %12 = arith.mulf %10, %11 : vector<16x32xf32>
    %13 = arith.truncf %12 : vector<16x32xf32> to vector<16x32xbf16>
    %14 = vector.shape_cast %13 : vector<16x32xbf16> to vector<16x4x8xbf16>
    %15 = tpu.transpose %14, [1, 0, 2] : vector<16x4x8xbf16> -> vector<4x16x8xbf16>
    %16 = vector.extract_strided_slice %9 {offsets = [0, 32], sizes = [16, 32], strides = [1, 1]} : vector<16x96xf32> to vector<16x32xf32>
    %17 = arith.truncf %16 : vector<16x32xf32> to vector<16x32xbf16>
    %18 = vector.shape_cast %17 : vector<16x32xbf16> to vector<16x4x8xbf16>
    %19 = tpu.transpose %18, [1, 0, 2] : vector<16x4x8xbf16> -> vector<4x16x8xbf16>
    %20 = vector.extract_strided_slice %9 {offsets = [0, 64], sizes = [16, 32], strides = [1, 1]} : vector<16x96xf32> to vector<16x32xf32>
    %21 = arith.truncf %20 : vector<16x32xf32> to vector<16x32xbf16>
    %22 = vector.shape_cast %21 : vector<16x32xbf16> to vector<16x4x8xbf16>
    %23 = tpu.transpose %22, [1, 0, 2] : vector<16x4x8xbf16> -> vector<4x16x8xbf16>
    %c0_7 = arith.constant 0 : index
    %24 = arith.index_cast %1 : i32 to index
    %c0_8 = arith.constant 0 : index
    %25 = vector.load %arg16[%c0_7, %24, %c0_8] : memref<4x32x8xbf16, #tpu.memory_space<vmem>>, vector<4x16x8xbf16>
    tpu.vector_store %arg16[%c0_7, %24, %c0_8], %19 {strides = array<i32>} : memref<4x32x8xbf16, #tpu.memory_space<vmem>>, vector<4x16x8xbf16>,
    %c0_9 = arith.constant 0 : index
    %26 = arith.index_cast %1 : i32 to index
    %c0_10 = arith.constant 0 : index
    %27 = vector.load %arg17[%c0_9, %26, %c0_10] : memref<4x32x8xbf16, #tpu.memory_space<vmem>>, vector<4x16x8xbf16>
    tpu.vector_store %arg17[%c0_9, %26, %c0_10], %23 {strides = array<i32>} : memref<4x32x8xbf16, #tpu.memory_space<vmem>>, vector<4x16x8xbf16>,
    %cst_11 = arith.constant -1.000000e+30 : f32
    %28 = vector.broadcast %cst_11 : f32 to vector<4x16x1xf32>
    %cst_12 = arith.constant 0.000000e+00 : f32
    %29 = vector.broadcast %cst_12 : f32 to vector<4x16x1xf32>
    %cst_13 = arith.constant 0.000000e+00 : f32
    %30 = vector.broadcast %cst_13 : f32 to vector<4x16x8xf32>
    %c0_i32 = arith.constant 0 : i32
    %31 = arith.subi %arg1, %c0_i32 : i32
    %32 = arith.addi %c0_i32, %31 : i32
    %c1_i32 = arith.constant 1 : i32
    %33:3 = scf.for %arg18 = %c0_i32 to %32 step %c1_i32 iter_args(%arg19 = %28, %arg20 = %29, %arg21 = %30) -> (vector<4x16x1xf32>, vector<4x16x1xf32>, vector<4x16x8xf32>)  : i32 {
      %c16_i32_56 = arith.constant 16 : i32
      %138 = arith.muli %arg18, %c16_i32_56 : i32
      %139 = tpu.assume_multiple %138, 16 : i32
      %c0_57 = arith.constant 0 : index
      %140 = arith.index_cast %139 : i32 to index
      %c0_58 = arith.constant 0 : index
      %141 = vector.load %arg16[%c0_57, %140, %c0_58] : memref<4x32x8xbf16, #tpu.memory_space<vmem>>, vector<4x16x8xbf16>
      %c0_59 = arith.constant 0 : index
      %142 = arith.index_cast %139 : i32 to index
      %c0_60 = arith.constant 0 : index
      %143 = vector.load %arg17[%c0_59, %142, %c0_60] : memref<4x32x8xbf16, #tpu.memory_space<vmem>>, vector<4x16x8xbf16>
      "tpu.trace_start"() <{level = 10 : i32, message = "hqd,hkd->hqk"}> : () -> ()
      %cst_61 = arith.constant dense<0.000000e+00> : vector<4x16x16xf32>
      %144 = tpu.matmul %15, %141, %cst_61 {dimension_numbers = #tpu.dot_dimension_numbers<[2], [2], [1], [1], [0, 0, 0, 1, 1, 1], [0], [0]>} : vector<4x16x8xbf16>, vector<4x16x8xbf16>, vector<4x16x16xf32> -> vector<4x16x16xf32>
      "tpu.trace_stop"() : () -> ()
      %cst_62 = arith.constant dense<0xFF800000> : vector<4x16xf32>
      %145 = vector.multi_reduction <maximumf>, %144, %cst_62 [2] : vector<4x16x16xf32> to vector<4x16xf32>
      %146 = vector.shape_cast %145 : vector<4x16xf32> to vector<4x16x1xf32>
      %147 = arith.maximumf %arg19, %146 : vector<4x16x1xf32>
      %148 = arith.subf %arg19, %147 : vector<4x16x1xf32>
      %149 = math.exp %148 : vector<4x16x1xf32>
      %150 = vector.broadcast %147 : vector<4x16x1xf32> to vector<4x16x16xf32>
      %151 = arith.subf %144, %150 : vector<4x16x16xf32>
      %152 = math.exp %151 : vector<4x16x16xf32>
      %153 = arith.mulf %149, %arg20 : vector<4x16x1xf32>
      %cst_63 = arith.constant dense<0.000000e+00> : vector<4x16xf32>
      %154 = vector.multi_reduction <add>, %152, %cst_63 [2] : vector<4x16x16xf32> to vector<4x16xf32>
      %155 = vector.shape_cast %154 : vector<4x16xf32> to vector<4x16x1xf32>
      %156 = arith.addf %153, %155 : vector<4x16x1xf32>
      %157 = vector.broadcast %149 : vector<4x16x1xf32> to vector<4x16x8xf32>
      %158 = arith.mulf %157, %arg21 : vector<4x16x8xf32>
      %159 = arith.truncf %152 : vector<4x16x16xf32> to vector<4x16x16xbf16>
      "tpu.trace_start"() <{level = 10 : i32, message = "hqk,hkd->hqd"}> : () -> ()
      %cst_64 = arith.constant dense<0.000000e+00> : vector<4x16x8xf32>
      %160 = tpu.matmul %159, %143, %cst_64 {dimension_numbers = #tpu.dot_dimension_numbers<[2], [1], [1], [2], [0, 0, 0, 1, 1, 2], [0], [0]>} : vector<4x16x16xbf16>, vector<4x16x8xbf16>, vector<4x16x8xf32> -> vector<4x16x8xf32>
      "tpu.trace_stop"() : () -> ()
      %161 = arith.addf %158, %160 : vector<4x16x8xf32>
      scf.yield %147, %156, %161 : vector<4x16x1xf32>, vector<4x16x1xf32>, vector<4x16x8xf32>
    }
    "tpu.trace_start"() <{level = 10 : i32, message = "hqd,hkd->hqk"}> : () -> ()
    %cst_14 = arith.constant dense<0.000000e+00> : vector<4x16x16xf32>
    %34 = tpu.matmul %15, %19, %cst_14 {dimension_numbers = #tpu.dot_dimension_numbers<[2], [2], [1], [1], [0, 0, 0, 1, 1, 1], [0], [0]>} : vector<4x16x8xbf16>, vector<4x16x8xbf16>, vector<4x16x16xf32> -> vector<4x16x16xf32>
    "tpu.trace_stop"() : () -> ()
    %35 = tpu.iota {dimensions = array<i32: 0>} : vector<16x16xi32>
    %36 = tpu.iota {dimensions = array<i32: 1>} : vector<16x16xi32>
    %37 = arith.cmpi sle, %36, %35 : vector<16x16xi32>
    %38 = vector.shape_cast %37 : vector<16x16xi1> to vector<1x16x16xi1>
    %cst_15 = arith.constant -1.000000e+09 : f32
    %39 = vector.shape_cast %38 : vector<1x16x16xi1> to vector<1x16x16xi1>
    %40 = vector.broadcast %39 : vector<1x16x16xi1> to vector<4x16x16xi1>
    %41 = vector.broadcast %cst_15 : f32 to vector<4x16x16xf32>
    %42 = arith.select %40, %34, %41 : vector<4x16x16xi1>, vector<4x16x16xf32>
    %cst_16 = arith.constant dense<0xFF800000> : vector<4x16xf32>
    %43 = vector.multi_reduction <maximumf>, %42, %cst_16 [2] : vector<4x16x16xf32> to vector<4x16xf32>
    %44 = vector.shape_cast %43 : vector<4x16xf32> to vector<4x16x1xf32>
    %45 = arith.maximumf %33#0, %44 : vector<4x16x1xf32>
    %46 = arith.subf %33#0, %45 : vector<4x16x1xf32>
    %47 = math.exp %46 : vector<4x16x1xf32>
    %48 = vector.broadcast %45 : vector<4x16x1xf32> to vector<4x16x16xf32>
    %49 = arith.subf %42, %48 : vector<4x16x16xf32>
    %50 = math.exp %49 : vector<4x16x16xf32>
    %51 = arith.mulf %47, %33#1 : vector<4x16x1xf32>
    %cst_17 = arith.constant dense<0.000000e+00> : vector<4x16xf32>
    %52 = vector.multi_reduction <add>, %50, %cst_17 [2] : vector<4x16x16xf32> to vector<4x16xf32>
    %53 = vector.shape_cast %52 : vector<4x16xf32> to vector<4x16x1xf32>
    %54 = arith.addf %51, %53 : vector<4x16x1xf32>
    %55 = vector.broadcast %47 : vector<4x16x1xf32> to vector<4x16x8xf32>
    %56 = arith.mulf %55, %33#2 : vector<4x16x8xf32>
    %57 = arith.truncf %50 : vector<4x16x16xf32> to vector<4x16x16xbf16>
    "tpu.trace_start"() <{level = 10 : i32, message = "hqk,hkd->hqd"}> : () -> ()
    %cst_18 = arith.constant dense<0.000000e+00> : vector<4x16x8xf32>
    %58 = tpu.matmul %57, %23, %cst_18 {dimension_numbers = #tpu.dot_dimension_numbers<[2], [1], [1], [2], [0, 0, 0, 1, 1, 2], [0], [0]>} : vector<4x16x16xbf16>, vector<4x16x8xbf16>, vector<4x16x8xf32> -> vector<4x16x8xf32>
    "tpu.trace_stop"() : () -> ()
    %59 = arith.addf %56, %58 : vector<4x16x8xf32>
    %60 = tpu.reciprocal %54 {approx = true} : vector<4x16x1xf32> -> vector<4x16x1xf32>
    %61 = vector.broadcast %60 : vector<4x16x1xf32> to vector<4x16x8xf32>
    %62 = arith.mulf %59, %61 : vector<4x16x8xf32>
    %63 = tpu.transpose %62, [1, 0, 2] : vector<4x16x8xf32> -> vector<16x4x8xf32>
    %64 = vector.shape_cast %63 : vector<16x4x8xf32> to vector<16x32xf32>
    %65 = arith.truncf %64 : vector<16x32xf32> to vector<16x32xbf16>
    %c0_19 = arith.constant 0 : index
    %c0_20 = arith.constant 0 : index
    %66 = vector.load %arg5[%c0_19, %c0_20] : memref<32x32xbf16, #tpu.memory_space<vmem>>, vector<32x32xbf16>
    %cst_21 = arith.constant dense<0.000000e+00> : vector<16x32xf32>
    %67 = tpu.matmul %65, %66, %cst_21 {dimension_numbers = #tpu.dot_dimension_numbers<[1], [0], [0], [1], [0, 0, 1, 1], [], []>} : vector<16x32xbf16>, vector<32x32xbf16>, vector<16x32xf32> -> vector<16x32xf32>
    %c0_22 = arith.constant 0 : index
    %c0_23 = arith.constant 0 : index
    %68 = vector.load %arg6[%c0_22, %c0_23] : memref<1x32xf32, #tpu.memory_space<vmem>>, vector<1x32xf32>
    %69 = vector.broadcast %68 : vector<1x32xf32> to vector<16x32xf32>
    %70 = arith.addf %67, %69 : vector<16x32xf32>
    %71 = arith.addf %3, %70 : vector<16x32xf32>
    %c0_24 = arith.constant 0 : index
    %c0_25 = arith.constant 0 : index
    %72 = vector.load %arg11[%c0_24, %c0_25] : memref<1x32xf32, #tpu.memory_space<vmem>>, vector<1x32xf32>
    %c0_26 = arith.constant 0 : index
    %c0_27 = arith.constant 0 : index
    %73 = vector.load %arg12[%c0_26, %c0_27] : memref<1x32xf32, #tpu.memory_space<vmem>>, vector<1x32xf32>
    %cst_28 = arith.constant dense<0.000000e+00> : vector<16xf32>
    %74 = vector.multi_reduction <add>, %71, %cst_28 [1] : vector<16x32xf32> to vector<16xf32>
    %75 = vector.shape_cast %74 : vector<16xf32> to vector<16x1xf32>
    %cst_29 = arith.constant 3.200000e+01 : f32
    %76 = vector.broadcast %cst_29 : f32 to vector<16x1xf32>
    %77 = arith.divf %75, %76 : vector<16x1xf32>
    %78 = vector.broadcast %77 : vector<16x1xf32> to vector<16x32xf32>
    %79 = arith.subf %71, %78 : vector<16x32xf32>
    %80 = arith.mulf %79, %79 : vector<16x32xf32>
    %cst_30 = arith.constant dense<0.000000e+00> : vector<16xf32>
    %81 = vector.multi_reduction <add>, %80, %cst_30 [1] : vector<16x32xf32> to vector<16xf32>
    %82 = vector.shape_cast %81 : vector<16xf32> to vector<16x1xf32>
    %cst_31 = arith.constant 3.200000e+01 : f32
    %83 = vector.broadcast %cst_31 : f32 to vector<16x1xf32>
    %84 = arith.divf %82, %83 : vector<16x1xf32>
    %85 = vector.broadcast %77 : vector<16x1xf32> to vector<16x32xf32>
    %86 = arith.subf %71, %85 : vector<16x32xf32>
    %cst_32 = arith.constant 9.99999974E-6 : f32
    %87 = vector.broadcast %cst_32 : f32 to vector<16x1xf32>
    %88 = arith.addf %84, %87 : vector<16x1xf32>
    %89 = math.rsqrt %88 : vector<16x1xf32>
    %90 = vector.broadcast %89 : vector<16x1xf32> to vector<16x32xf32>
    %91 = arith.mulf %86, %90 : vector<16x32xf32>
    %92 = vector.broadcast %72 : vector<1x32xf32> to vector<16x32xf32>
    %93 = arith.mulf %91, %92 : vector<16x32xf32>
    %94 = vector.broadcast %73 : vector<1x32xf32> to vector<16x32xf32>
    %95 = arith.addf %93, %94 : vector<16x32xf32>
    %96 = arith.truncf %95 : vector<16x32xf32> to vector<16x32xbf16>
    %c0_33 = arith.constant 0 : index
    %c0_34 = arith.constant 0 : index
    %97 = vector.load %arg7[%c0_33, %c0_34] : memref<32x64xbf16, #tpu.memory_space<vmem>>, vector<32x64xbf16>
    %cst_35 = arith.constant dense<0.000000e+00> : vector<16x64xf32>
    %98 = tpu.matmul %96, %97, %cst_35 {dimension_numbers = #tpu.dot_dimension_numbers<[1], [0], [0], [1], [0, 0, 1, 1], [], []>} : vector<16x32xbf16>, vector<32x64xbf16>, vector<16x64xf32> -> vector<16x64xf32>
    %c0_36 = arith.constant 0 : index
    %c0_37 = arith.constant 0 : index
    %99 = vector.load %arg8[%c0_36, %c0_37] : memref<1x64xf32, #tpu.memory_space<vmem>>, vector<1x64xf32>
    %100 = vector.broadcast %99 : vector<1x64xf32> to vector<16x64xf32>
    %101 = arith.addf %98, %100 : vector<16x64xf32>
    %cst_38 = arith.constant 0.000000e+00 : f32
    %102 = vector.broadcast %cst_38 : f32 to vector<16x64xf32>
    %103 = arith.maximumf %101, %102 : vector<16x64xf32>
    %104 = arith.truncf %103 : vector<16x64xf32> to vector<16x64xbf16>
    %c0_39 = arith.constant 0 : index
    %c0_40 = arith.constant 0 : index
    %105 = vector.load %arg9[%c0_39, %c0_40] : memref<64x32xbf16, #tpu.memory_space<vmem>>, vector<64x32xbf16>
    %cst_41 = arith.constant dense<0.000000e+00> : vector<16x32xf32>
    %106 = tpu.matmul %104, %105, %cst_41 {dimension_numbers = #tpu.dot_dimension_numbers<[1], [0], [0], [1], [0, 0, 1, 1], [], []>} : vector<16x64xbf16>, vector<64x32xbf16>, vector<16x32xf32> -> vector<16x32xf32>
    %c0_42 = arith.constant 0 : index
    %c0_43 = arith.constant 0 : index
    %107 = vector.load %arg10[%c0_42, %c0_43] : memref<1x32xf32, #tpu.memory_space<vmem>>, vector<1x32xf32>
    %108 = vector.broadcast %107 : vector<1x32xf32> to vector<16x32xf32>
    %109 = arith.addf %106, %108 : vector<16x32xf32>
    %110 = arith.addf %95, %109 : vector<16x32xf32>
    %c0_44 = arith.constant 0 : index
    %c0_45 = arith.constant 0 : index
    %111 = vector.load %arg13[%c0_44, %c0_45] : memref<1x32xf32, #tpu.memory_space<vmem>>, vector<1x32xf32>
    %c0_46 = arith.constant 0 : index
    %c0_47 = arith.constant 0 : index
    %112 = vector.load %arg14[%c0_46, %c0_47] : memref<1x32xf32, #tpu.memory_space<vmem>>, vector<1x32xf32>
    %cst_48 = arith.constant dense<0.000000e+00> : vector<16xf32>
    %113 = vector.multi_reduction <add>, %110, %cst_48 [1] : vector<16x32xf32> to vector<16xf32>
    %114 = vector.shape_cast %113 : vector<16xf32> to vector<16x1xf32>
    %cst_49 = arith.constant 3.200000e+01 : f32
    %115 = vector.broadcast %cst_49 : f32 to vector<16x1xf32>
    %116 = arith.divf %114, %115 : vector<16x1xf32>
    %117 = vector.broadcast %116 : vector<16x1xf32> to vector<16x32xf32>
    %118 = arith.subf %110, %117 : vector<16x32xf32>
    %119 = arith.mulf %118, %118 : vector<16x32xf32>
    %cst_50 = arith.constant dense<0.000000e+00> : vector<16xf32>
    %120 = vector.multi_reduction <add>, %119, %cst_50 [1] : vector<16x32xf32> to vector<16xf32>
    %121 = vector.shape_cast %120 : vector<16xf32> to vector<16x1xf32>
    %cst_51 = arith.constant 3.200000e+01 : f32
    %122 = vector.broadcast %cst_51 : f32 to vector<16x1xf32>
    %123 = arith.divf %121, %122 : vector<16x1xf32>
    %124 = vector.broadcast %116 : vector<16x1xf32> to vector<16x32xf32>
    %125 = arith.subf %110, %124 : vector<16x32xf32>
    %cst_52 = arith.constant 9.99999974E-6 : f32
    %126 = vector.broadcast %cst_52 : f32 to vector<16x1xf32>
    %127 = arith.addf %123, %126 : vector<16x1xf32>
    %128 = math.rsqrt %127 : vector<16x1xf32>
    %129 = vector.broadcast %128 : vector<16x1xf32> to vector<16x32xf32>
    %130 = arith.mulf %125, %129 : vector<16x32xf32>
    %131 = vector.broadcast %111 : vector<1x32xf32> to vector<16x32xf32>
    %132 = arith.mulf %130, %131 : vector<16x32xf32>
    %133 = vector.broadcast %112 : vector<1x32xf32> to vector<16x32xf32>
    %134 = arith.addf %132, %133 : vector<16x32xf32>
    %c0_53 = arith.constant 0 : index
    %c0_54 = arith.constant 0 : index
    %c0_55 = arith.constant 0 : index
    %135 = vector.load %arg15[%c0_53, %c0_54, %c0_55] : memref<1x16x32xf32, #tpu.memory_space<vmem>>, vector<1x16x32xf32>
    %136 = vector.shape_cast %135 : vector<1x16x32xf32> to vector<16x32xf32>
    %137 = vector.shape_cast %134 : vector<16x32xf32> to vector<1x16x32xf32>
    tpu.vector_store %arg15[%c0_53, %c0_54, %c0_55], %137 {strides = array<i32>} : memref<1x16x32xf32, #tpu.memory_space<vmem>>, vector<1x16x32xf32>,
    return
  }
  func.func @transform_0(%arg0: i32, %arg1: i32) -> (i32, i32, i32) {
    %c0_i32 = arith.constant 0 : i32
    %c0_i32_0 = arith.constant 0 : i32
    return %arg0, %arg1, %c0_i32 : i32, i32, i32
  }
  func.func @transform_1(%arg0: i32, %arg1: i32) -> (i32, i32) {
    %c0_i32 = arith.constant 0 : i32
    %c0_i32_0 = arith.constant 0 : i32
    %c0_i32_1 = arith.constant 0 : i32
    return %c0_i32, %c0_i32_0 : i32, i32
  }
  func.func @transform_2(%arg0: i32, %arg1: i32) -> (i32, i32) {
    %c0_i32 = arith.constant 0 : i32
    %c0_i32_0 = arith.constant 0 : i32
    %c0_i32_1 = arith.constant 0 : i32
    return %c0_i32, %c0_i32_0 : i32, i32
  }
  func.func @transform_3(%arg0: i32, %arg1: i32) -> (i32, i32) {
    %c0_i32 = arith.constant 0 : i32
    %c0_i32_0 = arith.constant 0 : i32
    %c0_i32_1 = arith.constant 0 : i32
    return %c0_i32, %c0_i32_0 : i32, i32
  }
  func.func @transform_4(%arg0: i32, %arg1: i32) -> (i32, i32) {
    %c0_i32 = arith.constant 0 : i32
    %c0_i32_0 = arith.constant 0 : i32
    %c0_i32_1 = arith.constant 0 : i32
    return %c0_i32, %c0_i32_0 : i32, i32
  }
  func.func @transform_5(%arg0: i32, %arg1: i32) -> (i32, i32) {
    %c0_i32 = arith.constant 0 : i32
    %c0_i32_0 = arith.constant 0 : i32
    %c0_i32_1 = arith.constant 0 : i32
    return %c0_i32, %c0_i32_0 : i32, i32
  }
  func.func @transform_6(%arg0: i32, %arg1: i32) -> (i32, i32) {
    %c0_i32 = arith.constant 0 : i32
    %c0_i32_0 = arith.constant 0 : i32
    %c0_i32_1 = arith.constant 0 : i32
    return %c0_i32, %c0_i32_0 : i32, i32
  }
  func.func @transform_7(%arg0: i32, %arg1: i32) -> (i32, i32) {
    %c0_i32 = arith.constant 0 : i32
    %c0_i32_0 = arith.constant 0 : i32
    %c0_i32_1 = arith.constant 0 : i32
    return %c0_i32, %c0_i32_0 : i32, i32
  }
  func.func @transform_8(%arg0: i32, %arg1: i32) -> (i32, i32) {
    %c0_i32 = arith.constant 0 : i32
    %c0_i32_0 = arith.constant 0 : i32
    %c0_i32_1 = arith.constant 0 : i32
    return %c0_i32, %c0_i32_0 : i32, i32
  }
  func.func @transform_9(%arg0: i32, %arg1: i32) -> (i32, i32) {
    %c0_i32 = arith.constant 0 : i32
    %c0_i32_0 = arith.constant 0 : i32
    %c0_i32_1 = arith.constant 0 : i32
    return %c0_i32, %c0_i32_0 : i32, i32
  }
  func.func @transform_10(%arg0: i32, %arg1: i32) -> (i32, i32) {
    %c0_i32 = arith.constant 0 : i32
    %c0_i32_0 = arith.constant 0 : i32
    %c0_i32_1 = arith.constant 0 : i32
    return %c0_i32, %c0_i32_0 : i32, i32
  }
  func.func @transform_11(%arg0: i32, %arg1: i32) -> (i32, i32) {
    %c0_i32 = arith.constant 0 : i32
    %c0_i32_0 = arith.constant 0 : i32
    %c0_i32_1 = arith.constant 0 : i32
    return %c0_i32, %c0_i32_0 : i32, i32
  }
  func.func @transform_12(%arg0: i32, %arg1: i32) -> (i32, i32) {
    %c0_i32 = arith.constant 0 : i32
    %c0_i32_0 = arith.constant 0 : i32
    %c0_i32_1 = arith.constant 0 : i32
    return %c0_i32, %c0_i32_0 : i32, i32
  }
  func.func @transform_13(%arg0: i32, %arg1: i32) -> (i32, i32, i32) {
    %c0_i32 = arith.constant 0 : i32
    %c0_i32_0 = arith.constant 0 : i32
    return %arg0, %arg1, %c0_i32 : i32, i32, i32
  }
}

</mosaic_0001>

<llo_original>
// kernel: tpu_custom_call.1
$region0: #{tpu_custom_call.1}
  #allocation0 [shape = 'u32[]', space=smem, size = 0x4, offset = 0x4, fixed_abs, tag = 'smem constant byte address 0x4 - core index']
  #allocation1 [shape = 'u32[144,128]{1,0:T(1,128)}', space=vmem, size = 0x12000, scoped, tag = 'internal scratch']
  #allocation2 [shape = 'bf16[4,32,8]{2,1,0:T(16,128)(2,1)}', space=vmem, size = 0x8000, scoped, tag = 'scratch operand']
  #allocation3 [shape = 'bf16[4,32,8]{2,1,0:T(16,128)(2,1)}', space=vmem, size = 0x8000, scoped, tag = 'scratch operand']
  %s0 = inlined_call_operand.hbm [shape: f32[2,32,32], index: 0, kind: input, shape index: {}]
  %s1 = inlined_call_operand.vmem [shape: bf16[32,96], index: 1, kind: input, shape index: {}]
  %s2 = inlined_call_operand.vmem [shape: f32[1,96], index: 2, kind: input, shape index: {}]
  %s3 = inlined_call_operand.vmem [shape: bf16[32,32], index: 3, kind: input, shape index: {}]
  %s4 = inlined_call_operand.vmem [shape: f32[1,32], index: 4, kind: input, shape index: {}]
  %s5 = inlined_call_operand.vmem [shape: bf16[32,64], index: 5, kind: input, shape index: {}]
  %s6 = inlined_call_operand.vmem [shape: f32[1,64], index: 6, kind: input, shape index: {}]
  %s7 = inlined_call_operand.vmem [shape: bf16[64,32], index: 7, kind: input, shape index: {}]
  %s8 = inlined_call_operand.vmem [shape: f32[1,32], index: 8, kind: input, shape index: {}]
  %s9 = inlined_call_operand.vmem [shape: f32[1,32], index: 9, kind: input, shape index: {}]
  %s10 = inlined_call_operand.vmem [shape: f32[1,32], index: 10, kind: input, shape index: {}]
  %s11 = inlined_call_operand.vmem [shape: f32[1,32], index: 11, kind: input, shape index: {}]
  %s12 = inlined_call_operand.vmem [shape: f32[1,32], index: 12, kind: input, shape index: {}]
  %s13 = inlined_call_operand.hbm [shape: f32[2,32,32], index: 13, kind: output, shape index: {}]
  %s14 = sld [smem:[#allocation0]]
  $region96: #{tpu_custom_call.1} parent=0
    _
  %s16 = ssub.s32 1, %s14
  %s17 = scalar_select 0, %s16, %s14
  $region1: #{tpu_custom_call.1} parent=0
    #allocation4 [shape = 'u8[16384]{0}', space=vmem, size = 0x4000, scoped, tag = 'input window, operand 0']
    #allocation5 [shape = 's32[2]{0}', space=sflag, size = 0x8, scoped, tag = 'scoped memory for tpu_custom_call.1']
    #allocation6 [shape = 's32[2]{0}', space=sflag, size = 0x8, scoped, tag = 'scoped memory for tpu_custom_call.1']
    #allocation7 [shape = 'u8[16384]{0}', space=vmem, size = 0x4000, scoped, tag = 'output window, operand 0']
    %18 = vsyncpa [#allocation5], 0
    %s19 = scalar_lea.sflag [#allocation5], 1
    %20 = vsyncpa %s19, 0
    %21 = vsyncpa [#allocation6], 0
    %s22 = scalar_lea.sflag [#allocation6], 1
    %23 = vsyncpa %s22, 0
    loop: start=0, step=1, limit=6
    $region2: #{tpu_custom_call.1} parent=1 // loop_pre_header
      _
    $region3: #{tpu_custom_call.1} parent=1 // loop_header
      %s25 = sphi 0, %s29
      %p26 = scmp.ge.s32.totalorder %s25, 6
      %s32 = sphi 0, %s44
      %s33 = sphi 0, %s40
      %s34 = sphi 0, %s32
      %s35 = sphi 0, %s33
      %s36 = sphi 0, %s34
      %s37 = sphi 0, %s35
      %s49 = sphi 0, %s51
      %s52 = sphi 0, %s49
      %s53 = sphi 0, %s52
      %s69 = sphi 0, %s53
      %s73 = sphi 0, %s73
      %s75 = sphi 0, %s73
      %s76 = sphi 0, %s75
      %s90 = sphi 0, %s76
      %s94 = sphi 0, %s94
      %s96 = sphi 0, %s94
      %s97 = sphi 0, %s96
      %s111 = sphi 0, %s97
      %s115 = sphi 0, %s115
      %s117 = sphi 0, %s115
      %s118 = sphi 0, %s117
      %s132 = sphi 0, %s118
      %s136 = sphi 0, %s136
      %s138 = sphi 0, %s136
      %s139 = sphi 0, %s138
      %s153 = sphi 0, %s139
      %s157 = sphi 0, %s157
      %s159 = sphi 0, %s157
      %s160 = sphi 0, %s159
      %s174 = sphi 0, %s160
      %s178 = sphi 0, %s178
      %s180 = sphi 0, %s178
      %s181 = sphi 0, %s180
      %s195 = sphi 0, %s181
      %s199 = sphi 0, %s199
      %s201 = sphi 0, %s199
      %s202 = sphi 0, %s201
      %s216 = sphi 0, %s202
      %s220 = sphi 0, %s220
      %s222 = sphi 0, %s220
      %s223 = sphi 0, %s222
      %s237 = sphi 0, %s223
      %s241 = sphi 0, %s241
      %s243 = sphi 0, %s241
      %s244 = sphi 0, %s243
      %s258 = sphi 0, %s244
      %s262 = sphi 0, %s262
      %s264 = sphi 0, %s262
      %s265 = sphi 0, %s264
      %s279 = sphi 0, %s265
      %s283 = sphi 0, %s283
      %s285 = sphi 0, %s283
      %s286 = sphi 0, %s285
      %s300 = sphi 0, %s286
      %s304 = sphi 0, %s304
      %s306 = sphi 0, %s304
      %s307 = sphi 0, %s306
      %s321 = sphi 0, %s307
      %s329 = sphi 0, %s331
      %s332 = sphi 0, %s329
      %s333 = sphi 0, %s332
      %s349 = sphi 0, %s333
    $region4: #{tpu_custom_call.1} parent=1 // loop_header_branch
      %28 = sbr.rel (%p26) target = $region8
    $region5: #{tpu_custom_call.1} parent=1 // loop_body
      %s30 = ssub.s32 %s25, 1
      %s31 = ssub.s32 %s25, 2
      %s38 = sadd.s32 1, %s33
      %p39 = scmp.ge.s32.totalorder %s38, 2
      %s40 = scalar_select %p39, 0, %s38
      %s41 = sadd.s32 1, %s32
      %s42 = scalar_select %p39, %s41, %s32
      %p43 = scmp.ge.s32.totalorder %s42, 2
      %s44 = scalar_select %p43, 0, %s42
      %s45 = ssub.s32 %s32, %s44
      %s46 = ssub.s32 %s33, %s40
      %s47 = sor.u32 %s45, %s46
      %p48 = scmp.eq.s32.totalorder %s47, 0
      %s50 = sadd.s32 %s49, 1
      %s51 = scalar_select %p48, %s49, %s50
      %p54 = pneg %p48
      %p55 = scmp.eq.s32.totalorder %s25, 3
      %p56 = por %p54, %p55
      %p57 = scmp.ne.s32.totalorder %s49, %s52
      %p58 = scmp.eq.s32.totalorder %s25, 0
      %p59 = por %p57, %p58
      %p60 = scmp.ne.s32.totalorder %s49, %s52
      %p61 = scmp.eq.s32.totalorder %s30, 3
      %p62 = por %p60, %p61
      %p63 = scmp.ne.s32.totalorder %s52, %s53
      %p64 = scmp.eq.s32.totalorder %s30, 0
      %p65 = por %p63, %p64
      %p66 = scmp.ne.s32.totalorder %s52, %s53
      %p67 = scmp.eq.s32.totalorder %s31, 3
      %p68 = por %p66, %p67
      %p70 = scmp.ne.s32.totalorder %s53, %s69
      %p71 = scmp.eq.s32.totalorder %s31, 0
      %p72 = por %p70, %p71
      %s74 = sadd.s32 %s73, 1
      %p77 = scmp.eq.s32.totalorder %s25, 3
      %p78 = scmp.ne.s32.totalorder %s73, %s75
      %p79 = scmp.eq.s32.totalorder %s25, 0
      %p80 = por %p78, %p79
      %p81 = scmp.ne.s32.totalorder %s73, %s75
      %p82 = scmp.eq.s32.totalorder %s30, 3
      %p83 = por %p81, %p82
      %p84 = scmp.ne.s32.totalorder %s75, %s76
      %p85 = scmp.eq.s32.totalorder %s30, 0
      %p86 = por %p84, %p85
      %p87 = scmp.ne.s32.totalorder %s75, %s76
      %p88 = scmp.eq.s32.totalorder %s31, 3
      %p89 = por %p87, %p88
      %p91 = scmp.ne.s32.totalorder %s76, %s90
      %p92 = scmp.eq.s32.totalorder %s31, 0
      %p93 = por %p91, %p92
      %s95 = sadd.s32 %s94, 1
      %p98 = scmp.eq.s32.totalorder %s25, 3
      %p99 = scmp.ne.s32.totalorder %s94, %s96
      %p100 = scmp.eq.s32.totalorder %s25, 0
      %p101 = por %p99, %p100
      %p102 = scmp.ne.s32.totalorder %s94, %s96
      %p103 = scmp.eq.s32.totalorder %s30, 3
      %p104 = por %p102, %p103
      %p105 = scmp.ne.s32.totalorder %s96, %s97
      %p106 = scmp.eq.s32.totalorder %s30, 0
      %p107 = por %p105, %p106
      %p108 = scmp.ne.s32.totalorder %s96, %s97
      %p109 = scmp.eq.s32.totalorder %s31, 3
      %p110 = por %p108, %p109
      %p112 = scmp.ne.s32.totalorder %s97, %s111
      %p113 = scmp.eq.s32.totalorder %s31, 0
      %p114 = por %p112, %p113
      %s116 = sadd.s32 %s115, 1
      %p119 = scmp.eq.s32.totalorder %s25, 3
      %p120 = scmp.ne.s32.totalorder %s115, %s117
      %p121 = scmp.eq.s32.totalorder %s25, 0
      %p122 = por %p120, %p121
      %p123 = scmp.ne.s32.totalorder %s115, %s117
      %p124 = scmp.eq.s32.totalorder %s30, 3
      %p125 = por %p123, %p124
      %p126 = scmp.ne.s32.totalorder %s117, %s118
      %p127 = scmp.eq.s32.totalorder %s30, 0
      %p128 = por %p126, %p127
      %p129 = scmp.ne.s32.totalorder %s117, %s118
      %p130 = scmp.eq.s32.totalorder %s31, 3
      %p131 = por %p129, %p130
      %p133 = scmp.ne.s32.totalorder %s118, %s132
      %p134 = scmp.eq.s32.totalorder %s31, 0
      %p135 = por %p133, %p134
      %s137 = sadd.s32 %s136, 1
      %p140 = scmp.eq.s32.totalorder %s25, 3
      %p141 = scmp.ne.s32.totalorder %s136, %s138
      %p142 = scmp.eq.s32.totalorder %s25, 0
      %p143 = por %p141, %p142
      %p144 = scmp.ne.s32.totalorder %s136, %s138
      %p145 = scmp.eq.s32.totalorder %s30, 3
      %p146 = por %p144, %p145
      %p147 = scmp.ne.s32.totalorder %s138, %s139
      %p148 = scmp.eq.s32.totalorder %s30, 0
      %p149 = por %p147, %p148
      %p150 = scmp.ne.s32.totalorder %s138, %s139
      %p151 = scmp.eq.s32.totalorder %s31, 3
      %p152 = por %p150, %p151
      %p154 = scmp.ne.s32.totalorder %s139, %s153
      %p155 = scmp.eq.s32.totalorder %s31, 0
      %p156 = por %p154, %p155
      %s158 = sadd.s32 %s157, 1
      %p161 = scmp.eq.s32.totalorder %s25, 3
      %p162 = scmp.ne.s32.totalorder %s157, %s159
      %p163 = scmp.eq.s32.totalorder %s25, 0
      %p164 = por %p162, %p163
      %p165 = scmp.ne.s32.totalorder %s157, %s159
      %p166 = scmp.eq.s32.totalorder %s30, 3
      %p167 = por %p165, %p166
      %p168 = scmp.ne.s32.totalorder %s159, %s160
      %p169 = scmp.eq.s32.totalorder %s30, 0
      %p170 = por %p168, %p169
      %p171 = scmp.ne.s32.totalorder %s159, %s160
      %p172 = scmp.eq.s32.totalorder %s31, 3
      %p173 = por %p171, %p172
      %p175 = scmp.ne.s32.totalorder %s160, %s174
      %p176 = scmp.eq.s32.totalorder %s31, 0
      %p177 = por %p175, %p176
      %s179 = sadd.s32 %s178, 1
      %p182 = scmp.eq.s32.totalorder %s25, 3
      %p183 = scmp.ne.s32.totalorder %s178, %s180
      %p184 = scmp.eq.s32.totalorder %s25, 0
      %p185 = por %p183, %p184
      %p186 = scmp.ne.s32.totalorder %s178, %s180
      %p187 = scmp.eq.s32.totalorder %s30, 3
      %p188 = por %p186, %p187
      %p189 = scmp.ne.s32.totalorder %s180, %s181
      %p190 = scmp.eq.s32.totalorder %s30, 0
      %p191 = por %p189, %p190
      %p192 = scmp.ne.s32.totalorder %s180, %s181
      %p193 = scmp.eq.s32.totalorder %s31, 3
      %p194 = por %p192, %p193
      %p196 = scmp.ne.s32.totalorder %s181, %s195
      %p197 = scmp.eq.s32.totalorder %s31, 0
      %p198 = por %p196, %p197
      %s200 = sadd.s32 %s199, 1
      %p203 = scmp.eq.s32.totalorder %s25, 3
      %p204 = scmp.ne.s32.totalorder %s199, %s201
      %p205 = scmp.eq.s32.totalorder %s25, 0
      %p206 = por %p204, %p205
      %p207 = scmp.ne.s32.totalorder %s199, %s201
      %p208 = scmp.eq.s32.totalorder %s30, 3
      %p209 = por %p207, %p208
      %p210 = scmp.ne.s32.totalorder %s201, %s202
      %p211 = scmp.eq.s32.totalorder %s30, 0
      %p212 = por %p210, %p211
      %p213 = scmp.ne.s32.totalorder %s201, %s202
      %p214 = scmp.eq.s32.totalorder %s31, 3
      %p215 = por %p213, %p214
      %p217 = scmp.ne.s32.totalorder %s202, %s216
      %p218 = scmp.eq.s32.totalorder %s31, 0
      %p219 = por %p217, %p218
      %s221 = sadd.s32 %s220, 1
      %p224 = scmp.eq.s32.totalorder %s25, 3
      %p225 = scmp.ne.s32.totalorder %s220, %s222
      %p226 = scmp.eq.s32.totalorder %s25, 0
      %p227 = por %p225, %p226
      %p228 = scmp.ne.s32.totalorder %s220, %s222
      %p229 = scmp.eq.s32.totalorder %s30, 3
      %p230 = por %p228, %p229
      %p231 = scmp.ne.s32.totalorder %s222, %s223
      %p232 = scmp.eq.s32.totalorder %s30, 0
      %p233 = por %p231, %p232
      %p234 = scmp.ne.s32.totalorder %s222, %s223
      %p235 = scmp.eq.s32.totalorder %s31, 3
      %p236 = por %p234, %p235
      %p238 = scmp.ne.s32.totalorder %s223, %s237
      %p239 = scmp.eq.s32.totalorder %s31, 0
      %p240 = por %p238, %p239
      %s242 = sadd.s32 %s241, 1
      %p245 = scmp.eq.s32.totalorder %s25, 3
      %p246 = scmp.ne.s32.totalorder %s241, %s243
      %p247 = scmp.eq.s32.totalorder %s25, 0
      %p248 = por %p246, %p247
      %p249 = scmp.ne.s32.totalorder %s241, %s243
      %p250 = scmp.eq.s32.totalorder %s30, 3
      %p251 = por %p249, %p250
      %p252 = scmp.ne.s32.totalorder %s243, %s244
      %p253 = scmp.eq.s32.totalorder %s30, 0
      %p254 = por %p252, %p253
      %p255 = scmp.ne.s32.totalorder %s243, %s244
      %p256 = scmp.eq.s32.totalorder %s31, 3
      %p257 = por %p255, %p256
      %p259 = scmp.ne.s32.totalorder %s244, %s258
      %p260 = scmp.eq.s32.totalorder %s31, 0
      %p261 = por %p259, %p260
      %s263 = sadd.s32 %s262, 1
      %p266 = scmp.eq.s32.totalorder %s25, 3
      %p267 = scmp.ne.s32.totalorder %s262, %s264
      %p268 = scmp.eq.s32.totalorder %s25, 0
      %p269 = por %p267, %p268
      %p270 = scmp.ne.s32.totalorder %s262, %s264
      %p271 = scmp.eq.s32.totalorder %s30, 3
      %p272 = por %p270, %p271
      %p273 = scmp.ne.s32.totalorder %s264, %s265
      %p274 = scmp.eq.s32.totalorder %s30, 0
      %p275 = por %p273, %p274
      %p276 = scmp.ne.s32.totalorder %s264, %s265
      %p277 = scmp.eq.s32.totalorder %s31, 3
      %p278 = por %p276, %p277
      %p280 = scmp.ne.s32.totalorder %s265, %s279
      %p281 = scmp.eq.s32.totalorder %s31, 0
      %p282 = por %p280, %p281
      %s284 = sadd.s32 %s283, 1
      %p287 = scmp.eq.s32.totalorder %s25, 3
      %p288 = scmp.ne.s32.totalorder %s283, %s285
      %p289 = scmp.eq.s32.totalorder %s25, 0
      %p290 = por %p288, %p289
      %p291 = scmp.ne.s32.totalorder %s283, %s285
      %p292 = scmp.eq.s32.totalorder %s30, 3
      %p293 = por %p291, %p292
      %p294 = scmp.ne.s32.totalorder %s285, %s286
      %p295 = scmp.eq.s32.totalorder %s30, 0
      %p296 = por %p294, %p295
      %p297 = scmp.ne.s32.totalorder %s285, %s286
      %p298 = scmp.eq.s32.totalorder %s31, 3
      %p299 = por %p297, %p298
      %p301 = scmp.ne.s32.totalorder %s286, %s300
      %p302 = scmp.eq.s32.totalorder %s31, 0
      %p303 = por %p301, %p302
      %s305 = sadd.s32 %s304, 1
      %p308 = scmp.eq.s32.totalorder %s25, 3
      %p309 = scmp.ne.s32.totalorder %s304, %s306
      %p310 = scmp.eq.s32.totalorder %s25, 0
      %p311 = por %p309, %p310
      %p312 = scmp.ne.s32.totalorder %s304, %s306
      %p313 = scmp.eq.s32.totalorder %s30, 3
      %p314 = por %p312, %p313
      %p315 = scmp.ne.s32.totalorder %s306, %s307
      %p316 = scmp.eq.s32.totalorder %s30, 0
      %p317 = por %p315, %p316
      %p318 = scmp.ne.s32.totalorder %s306, %s307
      %p319 = scmp.eq.s32.totalorder %s31, 3
      %p320 = por %p318, %p319
      %p322 = scmp.ne.s32.totalorder %s307, %s321
      %p323 = scmp.eq.s32.totalorder %s31, 0
      %p324 = por %p322, %p323
      %s325 = ssub.s32 %s32, %s44
      %s326 = ssub.s32 %s33, %s40
      %s327 = sor.u32 %s325, %s326
      %p328 = scmp.eq.s32.totalorder %s327, 0
      %s330 = sadd.s32 %s329, 1
      %s331 = scalar_select %p328, %s329, %s330
      %p334 = pneg %p328
      %p335 = scmp.eq.s32.totalorder %s25, 3
      %p336 = por %p334, %p335
      %p337 = scmp.ne.s32.totalorder %s329, %s332
      %p338 = scmp.eq.s32.totalorder %s25, 0
      %p339 = por %p337, %p338
      %p340 = scmp.ne.s32.totalorder %s329, %s332
      %p341 = scmp.eq.s32.totalorder %s30, 3
      %p342 = por %p340, %p341
      %p343 = scmp.ne.s32.totalorder %s332, %s333
      %p344 = scmp.eq.s32.totalorder %s30, 0
      %p345 = por %p343, %p344
      %p346 = scmp.ne.s32.totalorder %s332, %s333
      %p347 = scmp.eq.s32.totalorder %s31, 3
      %p348 = por %p346, %p347
      %p350 = scmp.ne.s32.totalorder %s333, %s349
      %p351 = scmp.eq.s32.totalorder %s31, 0
      %p352 = por %p350, %p351
      %p353 = scmp.le.s32.totalorder 1, %s25
      %p354 = scmp.lt.s32.totalorder %s25, 5
      %p355 = pnand %p353, %p354
      %p356 = pneg %p355
      // Predicated region
      $region9: #{tpu_custom_call.1} parent=5 // pred_check
        _
      $region10: #{tpu_custom_call.1} parent=5 // pred_check_branch
        %358 = sbr.rel (%p355) target = $region12
      $region11: #{tpu_custom_call.1} parent=5 // pred_region
        %s359 = ssub.s32 %s25, 1
        // Predicated region
        $region13: #{tpu_custom_call.1} parent=11 // pred_check
          %p360 = pneg %p86
        $region14: #{tpu_custom_call.1} parent=11 // pred_check_branch
          %362 = sbr.rel (%p360) target = $region16
        $region15: #{tpu_custom_call.1} parent=11 // pred_region
          _
        $region16: #{tpu_custom_call.1} parent=11 // pred_fallthru
          _
        // Predicated region
        $region17: #{tpu_custom_call.1} parent=11 // pred_check
          %p363 = pneg %p107
        $region18: #{tpu_custom_call.1} parent=11 // pred_check_branch
          %365 = sbr.rel (%p363) target = $region20
        $region19: #{tpu_custom_call.1} parent=11 // pred_region
          _
        $region20: #{tpu_custom_call.1} parent=11 // pred_fallthru
          _
        // Predicated region
        $region21: #{tpu_custom_call.1} parent=11 // pred_check
          %p366 = pneg %p128
        $region22: #{tpu_custom_call.1} parent=11 // pred_check_branch
          %368 = sbr.rel (%p366) target = $region24
        $region23: #{tpu_custom_call.1} parent=11 // pred_region
          _
        $region24: #{tpu_custom_call.1} parent=11 // pred_fallthru
          _
        // Predicated region
        $region25: #{tpu_custom_call.1} parent=11 // pred_check
          %p369 = pneg %p149
        $region26: #{tpu_custom_call.1} parent=11 // pred_check_branch
          %371 = sbr.rel (%p369) target = $region28
        $region27: #{tpu_custom_call.1} parent=11 // pred_region
          _
        $region28: #{tpu_custom_call.1} parent=11 // pred_fallthru
          _
        // Predicated region
        $region29: #{tpu_custom_call.1} parent=11 // pred_check
          %p372 = pneg %p170
        $region30: #{tpu_custom_call.1} parent=11 // pred_check_branch
          %374 = sbr.rel (%p372) target = $region32
        $region31: #{tpu_custom_call.1} parent=11 // pred_region
          _
        $region32: #{tpu_custom_call.1} parent=11 // pred_fallthru
          _
        // Predicated region
        $region33: #{tpu_custom_call.1} parent=11 // pred_check
          %p375 = pneg %p191
        $region34: #{tpu_custom_call.1} parent=11 // pred_check_branch
          %377 = sbr.rel (%p375) target = $region36
        $region35: #{tpu_custom_call.1} parent=11 // pred_region
          _
        $region36: #{tpu_custom_call.1} parent=11 // pred_fallthru
          _
        // Predicated region
        $region37: #{tpu_custom_call.1} parent=11 // pred_check
          %p378 = pneg %p212
        $region38: #{tpu_custom_call.1} parent=11 // pred_check_branch
          %380 = sbr.rel (%p378) target = $region40
        $region39: #{tpu_custom_call.1} parent=11 // pred_region
          _
        $region40: #{tpu_custom_call.1} parent=11 // pred_fallthru
          _
        // Predicated region
        $region41: #{tpu_custom_call.1} parent=11 // pred_check
          %p381 = pneg %p233
        $region42: #{tpu_custom_call.1} parent=11 // pred_check_branch
          %383 = sbr.rel (%p381) target = $region44
        $region43: #{tpu_custom_call.1} parent=11 // pred_region
          _
        $region44: #{tpu_custom_call.1} parent=11 // pred_fallthru
          _
        // Predicated region
        $region45: #{tpu_custom_call.1} parent=11 // pred_check
          %p384 = pneg %p254
        $region46: #{tpu_custom_call.1} parent=11 // pred_check_branch
          %386 = sbr.rel (%p384) target = $region48
        $region47: #{tpu_custom_call.1} parent=11 // pred_region
          _
        $region48: #{tpu_custom_call.1} parent=11 // pred_fallthru
          _
        // Predicated region
        $region49: #{tpu_custom_call.1} parent=11 // pred_check
          %p387 = pneg %p275
        $region50: #{tpu_custom_call.1} parent=11 // pred_check_branch
          %389 = sbr.rel (%p387) target = $region52
        $region51: #{tpu_custom_call.1} parent=11 // pred_region
          _
        $region52: #{tpu_custom_call.1} parent=11 // pred_fallthru
          _
        // Predicated region
        $region53: #{tpu_custom_call.1} parent=11 // pred_check
          %p390 = pneg %p296
        $region54: #{tpu_custom_call.1} parent=11 // pred_check_branch
          %392 = sbr.rel (%p390) target = $region56
        $region55: #{tpu_custom_call.1} parent=11 // pred_region
          _
        $region56: #{tpu_custom_call.1} parent=11 // pred_fallthru
          _
        // Predicated region
        $region57: #{tpu_custom_call.1} parent=11 // pred_check
          %p393 = pneg %p317
        $region58: #{tpu_custom_call.1} parent=11 // pred_check_branch
          %395 = sbr.rel (%p393) target = $region60
        $region59: #{tpu_custom_call.1} parent=11 // pred_region
          _
        $region60: #{tpu_custom_call.1} parent=11 // pred_fallthru
          _
      $region12: #{tpu_custom_call.1} parent=5 // pred_fallthru
        _
      %p396 = scmp.lt.s32.totalorder %s25, 4
      // Predicated region
      $region61: #{tpu_custom_call.1} parent=5 // pred_check
        %p397 = pneg %p396
      $region62: #{tpu_custom_call.1} parent=5 // pred_check_branch
        %399 = sbr.rel (%p397) target = $region64
      $region63: #{tpu_custom_call.1} parent=5 // pred_region
        // Predicated region
        $region65: #{tpu_custom_call.1} parent=63 // pred_check
          %p400 = pneg %p59
        $region66: #{tpu_custom_call.1} parent=63 // pred_check_branch
          %402 = sbr.rel (%p400) target = $region68
        $region67: #{tpu_custom_call.1} parent=63 // pred_region
          %s403 = sand.u32 %s49, 1
          %s404 = scalar_lea.sflag [#allocation5], %s403
          %s405 = sand.u32 %s49, 1
          %s406 = smul.addr %s405, 16
          %s407 = scalar_lea.vmem [#allocation4], %s406
          %s408 = smul.u32 2, %s33
          %s410 = ssub.s32 256, 256
          %411 = vsyncadd %s404, %s410
          %s412 = smul.addr %s32, 4
          %s413 = sadd.s32 %s408, %s412
          %s414 = smul.addr %s413, 128
          %s415 = scalar_lea.hbm %s0, %s414
          %s416 = sshll.u32 %s407, 4
          %s417 = int_to_ptr.vmem [resolvable:$true] %s416
          %422 = dma.hbm_to_vmem [thread:$0]  %s415, 256, %s417, %s404, 128, 128, 8
        $region68: #{tpu_custom_call.1} parent=63 // pred_fallthru
          _
      $region64: #{tpu_custom_call.1} parent=5 // pred_fallthru
        _
      %p423 = scmp.le.s32.totalorder 1, %s25
      %p424 = scmp.lt.s32.totalorder %s25, 5
      %p425 = pnand %p423, %p424
      %p426 = pneg %p425
      // Predicated region
      $region69: #{tpu_custom_call.1} parent=5 // pred_check
        _
      $region70: #{tpu_custom_call.1} parent=5 // pred_check_branch
        %428 = sbr.rel (%p425) target = $region72
      $region71: #{tpu_custom_call.1} parent=5 // pred_region
        %s429 = ssub.s32 %s25, 1
        %s430 = sand.u32 %s52, 1
        %s431 = scalar_lea.sflag [#allocation5], %s430
        %s432 = sand.u32 %s52, 1
        %s433 = smul.addr %s432, 16
        %s434 = scalar_lea.vmem [#allocation4], %s433
        // Predicated region
        $region73: #{tpu_custom_call.1} parent=71 // pred_check
          %p435 = pneg %p65
        $region74: #{tpu_custom_call.1} parent=71 // pred_check_branch
          %437 = sbr.rel (%p435) target = $region76
        $region75: #{tpu_custom_call.1} parent=71 // pred_region
          %438 = dma.done %s431, 256
        $region76: #{tpu_custom_call.1} parent=71 // pred_fallthru
          _
        %s439 = sand.u32 %s52, 1
        %s440 = scalar_lea.sflag [#allocation5], %s439
        %s441 = sand.u32 %s52, 1
        %s442 = smul.addr %s441, 16
        %s443 = scalar_lea.vmem [#allocation4], %s442
        %p444 = pneg %p65
        %p445 = pneg %p62
        %p446 = pneg %p86
        %p447 = pneg %p83
        %p448 = pneg %p107
        %p449 = pneg %p104
        %p450 = pneg %p128
        %p451 = pneg %p125
        %p452 = pneg %p149
        %p453 = pneg %p146
        %p454 = pneg %p170
        %p455 = pneg %p167
        %p456 = pneg %p191
        %p457 = pneg %p188
        %p458 = pneg %p212
        %p459 = pneg %p209
        %p460 = pneg %p233
        %p461 = pneg %p230
        %p462 = pneg %p254
        %p463 = pneg %p251
        %p464 = pneg %p275
        %p465 = pneg %p272
        %p466 = pneg %p296
        %p467 = pneg %p293
        %p468 = pneg %p317
        %p469 = pneg %p314
        %p470 = pneg %p345
        %p471 = pneg %p342
        %s472 = sand.u32 %s332, 1
        %s473 = scalar_lea.sflag [#allocation6], %s472
        %s474 = sand.u32 %s332, 1
        %s475 = smul.addr %s474, 16
        %s476 = scalar_lea.vmem [#allocation7], %s475
        %s477 = smul.u32 2, %s35
        %s478 = smul.u32 2, %s35
        %s480 = smul.u32 %s35, 16
        %v481 = vld [vmem:[%s434] sm:$0xff]
        %v482 = vld [vmem:[%s434 + $0x8] sm:$0xff]
        %v483 = vpack.c.bf16 %v482, %v481
        %v484 = vld [vmem:[%s1] sm:$0xf]
        %v485 = vld [vmem:[%s1 + $0x4] sm:$0xf]
        %v486 = vld [vmem:[%s1 + $0x8] sm:$0xf]
        %v487 = vld [vmem:[%s1 + $0xc] sm:$0xf]
        %v488 = vld [vmem:[%s2] sm:$0x1]
        %v490 = vlaneseq
        %v491 = vshrl.u32 %v490, 7
        %v492 = vsub.s32 0, %v491
        %v493 = vrot.slane %v488, %v492
        %v499 = vunpack.c.l.b16 %v484
        %v500 = vunpack.c.l.b16 %v485
        %v501 = vunpack.c.l.b16 %v486
        %v502 = vunpack.c.l.b16 %v487
        %v503 = vpack.c.b16 %v500, %v499
        %v504 = vpack.c.b16 %v502, %v501
        %vm507 = vcmask 261120
        %v509 = vsel %vm507, %v483, 0
        %511 = vmatprep.subr.bf16.mxu0 0
        %512 = vmatpush1.bf16.msra.mxu0 %v503
        %513 = vmatprep.subr.bf16.mxu0 0
        %514 = vmatpush1.bf16.msra.mxu0 %v504
        %515 = vmatprep.subr.bf16.mxu0 0
        %516 = vmatpush1.bf16.msra.mxu0 0
        %517 = vmatprep.subr.bf16.mxu0 0
        %518 = vmatpush1.bf16.msra.mxu0 0
        %519 = vmatprep.subr.bf16.mxu0 0
        %520 = vmatpush1.bf16.msra.mxu0 0
        %521 = vmatprep.subr.bf16.mxu0 0
        %522 = vmatpush1.bf16.msra.mxu0 0
        %523 = vmatprep.subr.bf16.mxu0 0
        %524 = vmatpush1.bf16.msra.mxu0 0
        %525 = vmatprep.subr.bf16.mxu0 0
        %526 = vmatpush1.bf16.msra.mxu0 0
        %527 = vmatprep.subr.bf16.mxu0 0
        %528 = vmatpush1.bf16.msra.mxu0 0
        %529 = vmatprep.subr.bf16.mxu0 0
        %530 = vmatpush1.bf16.msra.mxu0 0
        %531 = vmatprep.subr.bf16.mxu0 0
        %532 = vmatpush1.bf16.msra.mxu0 0
        %533 = vmatprep.subr.bf16.mxu0 0
        %534 = vmatpush1.bf16.msra.mxu0 0
        %535 = vmatprep.subr.bf16.mxu0 0
        %536 = vmatpush1.bf16.msra.mxu0 0
        %537 = vmatprep.subr.bf16.mxu0 0
        %538 = vmatpush1.bf16.msra.mxu0 0
        %539 = vmatprep.subr.bf16.mxu0 0
        %540 = vmatpush1.bf16.msra.mxu0 0
        %541 = vmatprep.subr.bf16.mxu0 0
        %542 = vmatpush1.bf16.msra.mxu0 0
        %543 = vmatprep.mubr.bf16.mxu0 0
        %544 = vmatmul.mubr.bf16.gmra.mrb[0].mxu0 %v509
        %v545 = vpop.f32.mrb[0].mxu0
        %v546 = vadd.f32 %v493, %v545
        %v547 = vpop.f32.mrb[0].mxu0
        %v548 = vpop.f32.mrb[0].mxu0
        %v549 = vadd.f32 %v493, %v548
        %v550 = vpop.f32.mrb[0].mxu0
        %551 = vdwg.mxu0
        %v552 = vmul.f32 %v546, 0.35355338
        %v553 = vmul.f32 %v549, 0.35355338
        %v554 = vpack.c.bf16 %v553, %v552
        %556 = vrot.lane.b32.xlu0 %v554, 120
        %v557 = vpop.permute.xlu0 %556
        %558 = vrot.lane.b32.xlu0 %v554, 112
        %v559 = vpop.permute.xlu0 %558
        %560 = vrot.lane.b32.xlu0 %v554, 104
        %v561 = vpop.permute.xlu0 %560
        %v564 = vpack.i.b16 %v557, %v554
        %v566 = vshrl.u32 %v554, 16
        %v567 = vshrl.u32 %v557, 16
        %v568 = vpack.i.b16 %v567, %v566
        %v572 = vpack.i.b16 %v561, %v559
        %v574 = vshrl.u32 %v559, 16
        %v575 = vshrl.u32 %v561, 16
        %v576 = vpack.i.b16 %v575, %v574
        %v579 = vpack.i.b16 0, 0
        %v581 = vshrl.u32 0, 16
        %v582 = vpack.i.b16 %v581, %v581
        %v584 = vcombine.high %v564, %v579
        %v586 = vunpack.c.l.s4 1983009808
        %v587 = vunpack.c.0.s8 %v586
        %v588 = vlaneseq
        %v589 = vshrl.u32 %v588, 7
        %v590 = vsub.s32 %v587, %v589
        %v591 = vrot.slane %v564, %v590
        %v593 = vunpack.c.l.s4 1983009808
        %v594 = vunpack.c.0.s8 %v593
        %v595 = vlaneseq
        %v596 = vshrl.u32 %v595, 7
        %v597 = vsub.s32 %v594, %v596
        %v598 = vrot.slane %v584, %v597
        %v599 = vcombine.high %v572, %v579
        %v601 = vunpack.c.l.s4 1983009808
        %v602 = vunpack.c.0.s8 %v601
        %v603 = vlaneseq
        %v604 = vshrl.u32 %v603, 7
        %v605 = vsub.s32 %v602, %v604
        %v606 = vrot.slane %v572, %v605
        %v608 = vunpack.c.l.s4 1983009808
        %v609 = vunpack.c.0.s8 %v608
        %v610 = vlaneseq
        %v611 = vshrl.u32 %v610, 7
        %v612 = vsub.s32 %v609, %v611
        %v613 = vrot.slane %v599, %v612
        %v614 = vcombine.low %v591, %v606
        %v615 = vcombine.high %v591, %v606
        %v617 = vunpack.c.l.s4 1934713408
        %v618 = vunpack.c.0.s8 %v617
        %v619 = vlaneseq
        %v620 = vshrl.u32 %v619, 7
        %v621 = vsub.s32 %v618, %v620
        %v622 = vrot.slane %v614, %v621
        %v624 = vunpack.c.l.s4 1934713408
        %v625 = vunpack.c.0.s8 %v624
        %v626 = vlaneseq
        %v627 = vshrl.u32 %v626, 7
        %v628 = vsub.s32 %v625, %v627
        %v629 = vrot.slane %v615, %v628
        %v630 = vcombine.low %v598, %v613
        %v631 = vcombine.high %v598, %v613
        %v633 = vunpack.c.l.s4 1934713408
        %v634 = vunpack.c.0.s8 %v633
        %v635 = vlaneseq
        %v636 = vshrl.u32 %v635, 7
        %v637 = vsub.s32 %v634, %v636
        %v638 = vrot.slane %v630, %v637
        %v640 = vunpack.c.l.s4 1934713408
        %v641 = vunpack.c.0.s8 %v640
        %v642 = vlaneseq
        %v643 = vshrl.u32 %v642, 7
        %v644 = vsub.s32 %v641, %v643
        %v645 = vrot.slane %v631, %v644
        %v646 = vcombine.high %v622, 0
        %v647 = vcombine.high %v629, 0
        %v648 = vcombine.high %v638, 0
        %v649 = vcombine.high %v645, 0
        %v650 = vcombine.high %v568, %v582
        %v652 = vunpack.c.l.s4 1983009808
        %v653 = vunpack.c.0.s8 %v652
        %v654 = vlaneseq
        %v655 = vshrl.u32 %v654, 7
        %v656 = vsub.s32 %v653, %v655
        %v657 = vrot.slane %v568, %v656
        %v659 = vunpack.c.l.s4 1983009808
        %v660 = vunpack.c.0.s8 %v659
        %v661 = vlaneseq
        %v662 = vshrl.u32 %v661, 7
        %v663 = vsub.s32 %v660, %v662
        %v664 = vrot.slane %v650, %v663
        %v665 = vcombine.high %v576, %v582
        %v667 = vunpack.c.l.s4 1983009808
        %v668 = vunpack.c.0.s8 %v667
        %v669 = vlaneseq
        %v670 = vshrl.u32 %v669, 7
        %v671 = vsub.s32 %v668, %v670
        %v672 = vrot.slane %v576, %v671
        %v674 = vunpack.c.l.s4 1983009808
        %v675 = vunpack.c.0.s8 %v674
        %v676 = vlaneseq
        %v677 = vshrl.u32 %v676, 7
        %v678 = vsub.s32 %v675, %v677
        %v679 = vrot.slane %v665, %v678
        %v680 = vcombine.low %v657, %v672
        %v681 = vcombine.high %v657, %v672
        %v683 = vunpack.c.l.s4 1934713408
        %v684 = vunpack.c.0.s8 %v683
        %v685 = vlaneseq
        %v686 = vshrl.u32 %v685, 7
        %v687 = vsub.s32 %v684, %v686
        %v688 = vrot.slane %v680, %v687
        %v690 = vunpack.c.l.s4 1934713408
        %v691 = vunpack.c.0.s8 %v690
        %v692 = vlaneseq
        %v693 = vshrl.u32 %v692, 7
        %v694 = vsub.s32 %v691, %v693
        %v695 = vrot.slane %v681, %v694
        %v696 = vcombine.low %v664, %v679
        %v697 = vcombine.high %v664, %v679
        %v699 = vunpack.c.l.s4 1934713408
        %v700 = vunpack.c.0.s8 %v699
        %v701 = vlaneseq
        %v702 = vshrl.u32 %v701, 7
        %v703 = vsub.s32 %v700, %v702
        %v704 = vrot.slane %v696, %v703
        %v706 = vunpack.c.l.s4 1934713408
        %v707 = vunpack.c.0.s8 %v706
        %v708 = vlaneseq
        %v709 = vshrl.u32 %v708, 7
        %v710 = vsub.s32 %v707, %v709
        %v711 = vrot.slane %v697, %v710
        %v712 = vcombine.high %v688, 0
        %v713 = vcombine.high %v695, 0
        %v714 = vcombine.high %v704, 0
        %v715 = vcombine.high %v711, 0
        %v716 = vcombine.low %v622, %v629
        %v718 = vunpack.c.l.s4 1983009808
        %v719 = vunpack.c.0.s8 %v718
        %v720 = vlaneseq
        %v721 = vshrl.u32 %v720, 7
        %v722 = vsub.s32 %v719, %v721
        %v723 = vrot.slane %v716, %v722
        %v724 = vcombine.low %v646, %v647
        %v726 = vunpack.c.l.s4 1983009808
        %v727 = vunpack.c.0.s8 %v726
        %v728 = vlaneseq
        %v729 = vshrl.u32 %v728, 7
        %v730 = vsub.s32 %v727, %v729
        %v731 = vrot.slane %v724, %v730
        %v732 = vcombine.low %v638, %v645
        %v734 = vunpack.c.l.s4 1983009808
        %v735 = vunpack.c.0.s8 %v734
        %v736 = vlaneseq
        %v737 = vshrl.u32 %v736, 7
        %v738 = vsub.s32 %v735, %v737
        %v739 = vrot.slane %v732, %v738
        %v740 = vcombine.low %v648, %v649
        %v742 = vunpack.c.l.s4 1983009808
        %v743 = vunpack.c.0.s8 %v742
        %v744 = vlaneseq
        %v745 = vshrl.u32 %v744, 7
        %v746 = vsub.s32 %v743, %v745
        %v747 = vrot.slane %v740, %v746
        %v748 = vcombine.low %v723, %v731
        %v750 = vunpack.c.l.s4 1934713408
        %v751 = vunpack.c.0.s8 %v750
        %v752 = vlaneseq
        %v753 = vshrl.u32 %v752, 7
        %v754 = vsub.s32 %v751, %v753
        %v755 = vrot.slane %v748, %v754
        %v756 = vcombine.low %v739, %v747
        %v758 = vunpack.c.l.s4 1934713408
        %v759 = vunpack.c.0.s8 %v758
        %v760 = vlaneseq
        %v761 = vshrl.u32 %v760, 7
        %v762 = vsub.s32 %v759, %v761
        %v763 = vrot.slane %v756, %v762
        %v764 = vcombine.low %v755, %v763
        %v765 = vcombine.high %v755, %v763
        %v766 = vcombine.low %v688, %v695
        %v768 = vunpack.c.l.s4 1983009808
        %v769 = vunpack.c.0.s8 %v768
        %v770 = vlaneseq
        %v771 = vshrl.u32 %v770, 7
        %v772 = vsub.s32 %v769, %v771
        %v773 = vrot.slane %v766, %v772
        %v774 = vcombine.low %v712, %v713
        %v776 = vunpack.c.l.s4 1983009808
        %v777 = vunpack.c.0.s8 %v776
        %v778 = vlaneseq
        %v779 = vshrl.u32 %v778, 7
        %v780 = vsub.s32 %v777, %v779
        %v781 = vrot.slane %v774, %v780
        %v782 = vcombine.low %v704, %v711
        %v784 = vunpack.c.l.s4 1983009808
        %v785 = vunpack.c.0.s8 %v784
        %v786 = vlaneseq
        %v787 = vshrl.u32 %v786, 7
        %v788 = vsub.s32 %v785, %v787
        %v789 = vrot.slane %v782, %v788
        %v790 = vcombine.low %v714, %v715
        %v792 = vunpack.c.l.s4 1983009808
        %v793 = vunpack.c.0.s8 %v792
        %v794 = vlaneseq
        %v795 = vshrl.u32 %v794, 7
        %v796 = vsub.s32 %v793, %v795
        %v797 = vrot.slane %v790, %v796
        %v798 = vcombine.low %v773, %v781
        %v800 = vunpack.c.l.s4 1934713408
        %v801 = vunpack.c.0.s8 %v800
        %v802 = vlaneseq
        %v803 = vshrl.u32 %v802, 7
        %v804 = vsub.s32 %v801, %v803
        %v805 = vrot.slane %v798, %v804
        %v806 = vcombine.low %v789, %v797
        %v808 = vunpack.c.l.s4 1934713408
        %v809 = vunpack.c.0.s8 %v808
        %v810 = vlaneseq
        %v811 = vshrl.u32 %v810, 7
        %v812 = vsub.s32 %v809, %v811
        %v813 = vrot.slane %v806, %v812
        %v814 = vcombine.low %v805, %v813
        %v815 = vcombine.high %v805, %v813
        %v818 = vpack.i.b16 %v814, %v764
        %v819 = vshrl.u32 %v764, 16
        %v820 = vshrl.u32 %v814, 16
        %v821 = vpack.i.b16 %v820, %v819
        %v824 = vpack.i.b16 %v815, %v765
        %v825 = vshrl.u32 %v765, 16
        %v826 = vshrl.u32 %v815, 16
        %v827 = vpack.i.b16 %v826, %v825
        %v828 = vpack.c.bf16 %v549, %v546
        %830 = vrot.lane.b32.xlu0 %v828, 120
        %v831 = vpop.permute.xlu0 %830
        %832 = vrot.lane.b32.xlu0 %v828, 112
        %v833 = vpop.permute.xlu0 %832
        %834 = vrot.lane.b32.xlu0 %v828, 104
        %v835 = vpop.permute.xlu0 %834
        %836 = vrot.lane.b32.xlu0 %v828, 96
        %v837 = vpop.permute.xlu0 %836
        %838 = vrot.lane.b32.xlu0 %v831, 96
        %v839 = vpop.permute.xlu0 %838
        %840 = vrot.lane.b32.xlu0 %v833, 96
        %v841 = vpop.permute.xlu0 %840
        %842 = vrot.lane.b32.xlu0 %v835, 96
        %v843 = vpop.permute.xlu0 %842
        %v846 = vpack.i.b16 %v839, %v837
        %v848 = vshrl.u32 %v837, 16
        %v849 = vshrl.u32 %v839, 16
        %v850 = vpack.i.b16 %v849, %v848
        %v854 = vpack.i.b16 %v843, %v841
        %v856 = vshrl.u32 %v841, 16
        %v857 = vshrl.u32 %v843, 16
        %v858 = vpack.i.b16 %v857, %v856
        %v860 = vcombine.high %v846, %v579
        %v862 = vunpack.c.l.s4 1983009808
        %v863 = vunpack.c.0.s8 %v862
        %v864 = vlaneseq
        %v865 = vshrl.u32 %v864, 7
        %v866 = vsub.s32 %v863, %v865
        %v867 = vrot.slane %v846, %v866
        %v869 = vunpack.c.l.s4 1983009808
        %v870 = vunpack.c.0.s8 %v869
        %v871 = vlaneseq
        %v872 = vshrl.u32 %v871, 7
        %v873 = vsub.s32 %v870, %v872
        %v874 = vrot.slane %v860, %v873
        %v875 = vcombine.high %v854, %v579
        %v877 = vunpack.c.l.s4 1983009808
        %v878 = vunpack.c.0.s8 %v877
        %v879 = vlaneseq
        %v880 = vshrl.u32 %v879, 7
        %v881 = vsub.s32 %v878, %v880
        %v882 = vrot.slane %v854, %v881
        %v884 = vunpack.c.l.s4 1983009808
        %v885 = vunpack.c.0.s8 %v884
        %v886 = vlaneseq
        %v887 = vshrl.u32 %v886, 7
        %v888 = vsub.s32 %v885, %v887
        %v889 = vrot.slane %v875, %v888
        %v890 = vcombine.low %v867, %v882
        %v891 = vcombine.high %v867, %v882
        %v893 = vunpack.c.l.s4 1934713408
        %v894 = vunpack.c.0.s8 %v893
        %v895 = vlaneseq
        %v896 = vshrl.u32 %v895, 7
        %v897 = vsub.s32 %v894, %v896
        %v898 = vrot.slane %v890, %v897
        %v900 = vunpack.c.l.s4 1934713408
        %v901 = vunpack.c.0.s8 %v900
        %v902 = vlaneseq
        %v903 = vshrl.u32 %v902, 7
        %v904 = vsub.s32 %v901, %v903
        %v905 = vrot.slane %v891, %v904
        %v906 = vcombine.low %v874, %v889
        %v907 = vcombine.high %v874, %v889
        %v909 = vunpack.c.l.s4 1934713408
        %v910 = vunpack.c.0.s8 %v909
        %v911 = vlaneseq
        %v912 = vshrl.u32 %v911, 7
        %v913 = vsub.s32 %v910, %v912
        %v914 = vrot.slane %v906, %v913
        %v916 = vunpack.c.l.s4 1934713408
        %v917 = vunpack.c.0.s8 %v916
        %v918 = vlaneseq
        %v919 = vshrl.u32 %v918, 7
        %v920 = vsub.s32 %v917, %v919
        %v921 = vrot.slane %v907, %v920
        %v922 = vcombine.high %v898, 0
        %v923 = vcombine.high %v905, 0
        %v924 = vcombine.high %v914, 0
        %v925 = vcombine.high %v921, 0
        %v926 = vcombine.high %v850, %v582
        %v928 = vunpack.c.l.s4 1983009808
        %v929 = vunpack.c.0.s8 %v928
        %v930 = vlaneseq
        %v931 = vshrl.u32 %v930, 7
        %v932 = vsub.s32 %v929, %v931
        %v933 = vrot.slane %v850, %v932
        %v935 = vunpack.c.l.s4 1983009808
        %v936 = vunpack.c.0.s8 %v935
        %v937 = vlaneseq
        %v938 = vshrl.u32 %v937, 7
        %v939 = vsub.s32 %v936, %v938
        %v940 = vrot.slane %v926, %v939
        %v941 = vcombine.high %v858, %v582
        %v943 = vunpack.c.l.s4 1983009808
        %v944 = vunpack.c.0.s8 %v943
        %v945 = vlaneseq
        %v946 = vshrl.u32 %v945, 7
        %v947 = vsub.s32 %v944, %v946
        %v948 = vrot.slane %v858, %v947
        %v950 = vunpack.c.l.s4 1983009808
        %v951 = vunpack.c.0.s8 %v950
        %v952 = vlaneseq
        %v953 = vshrl.u32 %v952, 7
        %v954 = vsub.s32 %v951, %v953
        %v955 = vrot.slane %v941, %v954
        %v956 = vcombine.low %v933, %v948
        %v957 = vcombine.high %v933, %v948
        %v959 = vunpack.c.l.s4 1934713408
        %v960 = vunpack.c.0.s8 %v959
        %v961 = vlaneseq
        %v962 = vshrl.u32 %v961, 7
        %v963 = vsub.s32 %v960, %v962
        %v964 = vrot.slane %v956, %v963
        %v966 = vunpack.c.l.s4 1934713408
        %v967 = vunpack.c.0.s8 %v966
        %v968 = vlaneseq
        %v969 = vshrl.u32 %v968, 7
        %v970 = vsub.s32 %v967, %v969
        %v971 = vrot.slane %v957, %v970
        %v972 = vcombine.low %v940, %v955
        %v973 = vcombine.high %v940, %v955
        %v975 = vunpack.c.l.s4 1934713408
        %v976 = vunpack.c.0.s8 %v975
        %v977 = vlaneseq
        %v978 = vshrl.u32 %v977, 7
        %v979 = vsub.s32 %v976, %v978
        %v980 = vrot.slane %v972, %v979
        %v982 = vunpack.c.l.s4 1934713408
        %v983 = vunpack.c.0.s8 %v982
        %v984 = vlaneseq
        %v985 = vshrl.u32 %v984, 7
        %v986 = vsub.s32 %v983, %v985
        %v987 = vrot.slane %v973, %v986
        %v988 = vcombine.high %v964, 0
        %v989 = vcombine.high %v971, 0
        %v990 = vcombine.high %v980, 0
        %v991 = vcombine.high %v987, 0
        %v992 = vcombine.low %v898, %v905
        %v994 = vunpack.c.l.s4 1983009808
        %v995 = vunpack.c.0.s8 %v994
        %v996 = vlaneseq
        %v997 = vshrl.u32 %v996, 7
        %v998 = vsub.s32 %v995, %v997
        %v999 = vrot.slane %v992, %v998
        %v1000 = vcombine.low %v922, %v923
        %v1002 = vunpack.c.l.s4 1983009808
        %v1003 = vunpack.c.0.s8 %v1002
        %v1004 = vlaneseq
        %v1005 = vshrl.u32 %v1004, 7
        %v1006 = vsub.s32 %v1003, %v1005
        %v1007 = vrot.slane %v1000, %v1006
        %v1008 = vcombine.low %v914, %v921
        %v1010 = vunpack.c.l.s4 1983009808
        %v1011 = vunpack.c.0.s8 %v1010
        %v1012 = vlaneseq
        %v1013 = vshrl.u32 %v1012, 7
        %v1014 = vsub.s32 %v1011, %v1013
        %v1015 = vrot.slane %v1008, %v1014
        %v1016 = vcombine.low %v924, %v925
        %v1018 = vunpack.c.l.s4 1983009808
        %v1019 = vunpack.c.0.s8 %v1018
        %v1020 = vlaneseq
        %v1021 = vshrl.u32 %v1020, 7
        %v1022 = vsub.s32 %v1019, %v1021
        %v1023 = vrot.slane %v1016, %v1022
        %v1024 = vcombine.low %v999, %v1007
        %v1026 = vunpack.c.l.s4 1934713408
        %v1027 = vunpack.c.0.s8 %v1026
        %v1028 = vlaneseq
        %v1029 = vshrl.u32 %v1028, 7
        %v1030 = vsub.s32 %v1027, %v1029
        %v1031 = vrot.slane %v1024, %v1030
        %v1032 = vcombine.low %v1015, %v1023
        %v1034 = vunpack.c.l.s4 1934713408
        %v1035 = vunpack.c.0.s8 %v1034
        %v1036 = vlaneseq
        %v1037 = vshrl.u32 %v1036, 7
        %v1038 = vsub.s32 %v1035, %v1037
        %v1039 = vrot.slane %v1032, %v1038
        %v1040 = vcombine.low %v1031, %v1039
        %v1041 = vcombine.high %v1031, %v1039
        %v1042 = vcombine.low %v964, %v971
        %v1044 = vunpack.c.l.s4 1983009808
        %v1045 = vunpack.c.0.s8 %v1044
        %v1046 = vlaneseq
        %v1047 = vshrl.u32 %v1046, 7
        %v1048 = vsub.s32 %v1045, %v1047
        %v1049 = vrot.slane %v1042, %v1048
        %v1050 = vcombine.low %v988, %v989
        %v1052 = vunpack.c.l.s4 1983009808
        %v1053 = vunpack.c.0.s8 %v1052
        %v1054 = vlaneseq
        %v1055 = vshrl.u32 %v1054, 7
        %v1056 = vsub.s32 %v1053, %v1055
        %v1057 = vrot.slane %v1050, %v1056
        %v1058 = vcombine.low %v980, %v987
        %v1060 = vunpack.c.l.s4 1983009808
        %v1061 = vunpack.c.0.s8 %v1060
        %v1062 = vlaneseq
        %v1063 = vshrl.u32 %v1062, 7
        %v1064 = vsub.s32 %v1061, %v1063
        %v1065 = vrot.slane %v1058, %v1064
        %v1066 = vcombine.low %v990, %v991
        %v1068 = vunpack.c.l.s4 1983009808
        %v1069 = vunpack.c.0.s8 %v1068
        %v1070 = vlaneseq
        %v1071 = vshrl.u32 %v1070, 7
        %v1072 = vsub.s32 %v1069, %v1071
        %v1073 = vrot.slane %v1066, %v1072
        %v1074 = vcombine.low %v1049, %v1057
        %v1076 = vunpack.c.l.s4 1934713408
        %v1077 = vunpack.c.0.s8 %v1076
        %v1078 = vlaneseq
        %v1079 = vshrl.u32 %v1078, 7
        %v1080 = vsub.s32 %v1077, %v1079
        %v1081 = vrot.slane %v1074, %v1080
        %v1082 = vcombine.low %v1065, %v1073
        %v1084 = vunpack.c.l.s4 1934713408
        %v1085 = vunpack.c.0.s8 %v1084
        %v1086 = vlaneseq
        %v1087 = vshrl.u32 %v1086, 7
        %v1088 = vsub.s32 %v1085, %v1087
        %v1089 = vrot.slane %v1082, %v1088
        %v1090 = vcombine.low %v1081, %v1089
        %v1091 = vcombine.high %v1081, %v1089
        %v1094 = vpack.i.b16 %v1090, %v1040
        %v1096 = vshrl.u32 %v1040, 16
        %v1097 = vshrl.u32 %v1090, 16
        %v1098 = vpack.i.b16 %v1097, %v1096
        %v1102 = vpack.i.b16 %v1091, %v1041
        %v1104 = vshrl.u32 %v1041, 16
        %v1105 = vshrl.u32 %v1091, 16
        %v1106 = vpack.i.b16 %v1105, %v1104
        %1108 = vrot.lane.b32.xlu0 %v828, 64
        %v1109 = vpop.permute.xlu0 %1108
        %1110 = vrot.lane.b32.xlu0 %v831, 64
        %v1111 = vpop.permute.xlu0 %1110
        %1112 = vrot.lane.b32.xlu0 %v833, 64
        %v1113 = vpop.permute.xlu0 %1112
        %1114 = vrot.lane.b32.xlu0 %v835, 64
        %v1115 = vpop.permute.xlu0 %1114
        %v1118 = vpack.i.b16 %v1111, %v1109
        %v1120 = vshrl.u32 %v1109, 16
        %v1121 = vshrl.u32 %v1111, 16
        %v1122 = vpack.i.b16 %v1121, %v1120
        %v1126 = vpack.i.b16 %v1115, %v1113
        %v1128 = vshrl.u32 %v1113, 16
        %v1129 = vshrl.u32 %v1115, 16
        %v1130 = vpack.i.b16 %v1129, %v1128
        %v1132 = vcombine.high %v1118, %v579
        %v1134 = vunpack.c.l.s4 1983009808
        %v1135 = vunpack.c.0.s8 %v1134
        %v1136 = vlaneseq
        %v1137 = vshrl.u32 %v1136, 7
        %v1138 = vsub.s32 %v1135, %v1137
        %v1139 = vrot.slane %v1118, %v1138
        %v1141 = vunpack.c.l.s4 1983009808
        %v1142 = vunpack.c.0.s8 %v1141
        %v1143 = vlaneseq
        %v1144 = vshrl.u32 %v1143, 7
        %v1145 = vsub.s32 %v1142, %v1144
        %v1146 = vrot.slane %v1132, %v1145
        %v1147 = vcombine.high %v1126, %v579
        %v1149 = vunpack.c.l.s4 1983009808
        %v1150 = vunpack.c.0.s8 %v1149
        %v1151 = vlaneseq
        %v1152 = vshrl.u32 %v1151, 7
        %v1153 = vsub.s32 %v1150, %v1152
        %v1154 = vrot.slane %v1126, %v1153
        %v1156 = vunpack.c.l.s4 1983009808
        %v1157 = vunpack.c.0.s8 %v1156
        %v1158 = vlaneseq
        %v1159 = vshrl.u32 %v1158, 7
        %v1160 = vsub.s32 %v1157, %v1159
        %v1161 = vrot.slane %v1147, %v1160
        %v1162 = vcombine.low %v1139, %v1154
        %v1163 = vcombine.high %v1139, %v1154
        %v1165 = vunpack.c.l.s4 1934713408
        %v1166 = vunpack.c.0.s8 %v1165
        %v1167 = vlaneseq
        %v1168 = vshrl.u32 %v1167, 7
        %v1169 = vsub.s32 %v1166, %v1168
        %v1170 = vrot.slane %v1162, %v1169
        %v1172 = vunpack.c.l.s4 1934713408
        %v1173 = vunpack.c.0.s8 %v1172
        %v1174 = vlaneseq
        %v1175 = vshrl.u32 %v1174, 7
        %v1176 = vsub.s32 %v1173, %v1175
        %v1177 = vrot.slane %v1163, %v1176
        %v1178 = vcombine.low %v1146, %v1161
        %v1179 = vcombine.high %v1146, %v1161
        %v1181 = vunpack.c.l.s4 1934713408
        %v1182 = vunpack.c.0.s8 %v1181
        %v1183 = vlaneseq
        %v1184 = vshrl.u32 %v1183, 7
        %v1185 = vsub.s32 %v1182, %v1184
        %v1186 = vrot.slane %v1178, %v1185
        %v1188 = vunpack.c.l.s4 1934713408
        %v1189 = vunpack.c.0.s8 %v1188
        %v1190 = vlaneseq
        %v1191 = vshrl.u32 %v1190, 7
        %v1192 = vsub.s32 %v1189, %v1191
        %v1193 = vrot.slane %v1179, %v1192
        %v1194 = vcombine.high %v1170, 0
        %v1195 = vcombine.high %v1177, 0
        %v1196 = vcombine.high %v1186, 0
        %v1197 = vcombine.high %v1193, 0
        %v1198 = vcombine.high %v1122, %v582
        %v1200 = vunpack.c.l.s4 1983009808
        %v1201 = vunpack.c.0.s8 %v1200
        %v1202 = vlaneseq
        %v1203 = vshrl.u32 %v1202, 7
        %v1204 = vsub.s32 %v1201, %v1203
        %v1205 = vrot.slane %v1122, %v1204
        %v1207 = vunpack.c.l.s4 1983009808
        %v1208 = vunpack.c.0.s8 %v1207
        %v1209 = vlaneseq
        %v1210 = vshrl.u32 %v1209, 7
        %v1211 = vsub.s32 %v1208, %v1210
        %v1212 = vrot.slane %v1198, %v1211
        %v1213 = vcombine.high %v1130, %v582
        %v1215 = vunpack.c.l.s4 1983009808
        %v1216 = vunpack.c.0.s8 %v1215
        %v1217 = vlaneseq
        %v1218 = vshrl.u32 %v1217, 7
        %v1219 = vsub.s32 %v1216, %v1218
        %v1220 = vrot.slane %v1130, %v1219
        %v1222 = vunpack.c.l.s4 1983009808
        %v1223 = vunpack.c.0.s8 %v1222
        %v1224 = vlaneseq
        %v1225 = vshrl.u32 %v1224, 7
        %v1226 = vsub.s32 %v1223, %v1225
        %v1227 = vrot.slane %v1213, %v1226
        %v1228 = vcombine.low %v1205, %v1220
        %v1229 = vcombine.high %v1205, %v1220
        %v1231 = vunpack.c.l.s4 1934713408
        %v1232 = vunpack.c.0.s8 %v1231
        %v1233 = vlaneseq
        %v1234 = vshrl.u32 %v1233, 7
        %v1235 = vsub.s32 %v1232, %v1234
        %v1236 = vrot.slane %v1228, %v1235
        %v1238 = vunpack.c.l.s4 1934713408
        %v1239 = vunpack.c.0.s8 %v1238
        %v1240 = vlaneseq
        %v1241 = vshrl.u32 %v1240, 7
        %v1242 = vsub.s32 %v1239, %v1241
        %v1243 = vrot.slane %v1229, %v1242
        %v1244 = vcombine.low %v1212, %v1227
        %v1245 = vcombine.high %v1212, %v1227
        %v1247 = vunpack.c.l.s4 1934713408
        %v1248 = vunpack.c.0.s8 %v1247
        %v1249 = vlaneseq
        %v1250 = vshrl.u32 %v1249, 7
        %v1251 = vsub.s32 %v1248, %v1250
        %v1252 = vrot.slane %v1244, %v1251
        %v1254 = vunpack.c.l.s4 1934713408
        %v1255 = vunpack.c.0.s8 %v1254
        %v1256 = vlaneseq
        %v1257 = vshrl.u32 %v1256, 7
        %v1258 = vsub.s32 %v1255, %v1257
        %v1259 = vrot.slane %v1245, %v1258
        %v1260 = vcombine.high %v1236, 0
        %v1261 = vcombine.high %v1243, 0
        %v1262 = vcombine.high %v1252, 0
        %v1263 = vcombine.high %v1259, 0
        %v1264 = vcombine.low %v1170, %v1177
        %v1266 = vunpack.c.l.s4 1983009808
        %v1267 = vunpack.c.0.s8 %v1266
        %v1268 = vlaneseq
        %v1269 = vshrl.u32 %v1268, 7
        %v1270 = vsub.s32 %v1267, %v1269
        %v1271 = vrot.slane %v1264, %v1270
        %v1272 = vcombine.low %v1194, %v1195
        %v1274 = vunpack.c.l.s4 1983009808
        %v1275 = vunpack.c.0.s8 %v1274
        %v1276 = vlaneseq
        %v1277 = vshrl.u32 %v1276, 7
        %v1278 = vsub.s32 %v1275, %v1277
        %v1279 = vrot.slane %v1272, %v1278
        %v1280 = vcombine.low %v1186, %v1193
        %v1282 = vunpack.c.l.s4 1983009808
        %v1283 = vunpack.c.0.s8 %v1282
        %v1284 = vlaneseq
        %v1285 = vshrl.u32 %v1284, 7
        %v1286 = vsub.s32 %v1283, %v1285
        %v1287 = vrot.slane %v1280, %v1286
        %v1288 = vcombine.low %v1196, %v1197
        %v1290 = vunpack.c.l.s4 1983009808
        %v1291 = vunpack.c.0.s8 %v1290
        %v1292 = vlaneseq
        %v1293 = vshrl.u32 %v1292, 7
        %v1294 = vsub.s32 %v1291, %v1293
        %v1295 = vrot.slane %v1288, %v1294
        %v1296 = vcombine.low %v1271, %v1279
        %v1298 = vunpack.c.l.s4 1934713408
        %v1299 = vunpack.c.0.s8 %v1298
        %v1300 = vlaneseq
        %v1301 = vshrl.u32 %v1300, 7
        %v1302 = vsub.s32 %v1299, %v1301
        %v1303 = vrot.slane %v1296, %v1302
        %v1304 = vcombine.low %v1287, %v1295
        %v1306 = vunpack.c.l.s4 1934713408
        %v1307 = vunpack.c.0.s8 %v1306
        %v1308 = vlaneseq
        %v1309 = vshrl.u32 %v1308, 7
        %v1310 = vsub.s32 %v1307, %v1309
        %v1311 = vrot.slane %v1304, %v1310
        %v1312 = vcombine.low %v1303, %v1311
        %v1313 = vcombine.high %v1303, %v1311
        %v1314 = vcombine.low %v1236, %v1243
        %v1316 = vunpack.c.l.s4 1983009808
        %v1317 = vunpack.c.0.s8 %v1316
        %v1318 = vlaneseq
        %v1319 = vshrl.u32 %v1318, 7
        %v1320 = vsub.s32 %v1317, %v1319
        %v1321 = vrot.slane %v1314, %v1320
        %v1322 = vcombine.low %v1260, %v1261
        %v1324 = vunpack.c.l.s4 1983009808
        %v1325 = vunpack.c.0.s8 %v1324
        %v1326 = vlaneseq
        %v1327 = vshrl.u32 %v1326, 7
        %v1328 = vsub.s32 %v1325, %v1327
        %v1329 = vrot.slane %v1322, %v1328
        %v1330 = vcombine.low %v1252, %v1259
        %v1332 = vunpack.c.l.s4 1983009808
        %v1333 = vunpack.c.0.s8 %v1332
        %v1334 = vlaneseq
        %v1335 = vshrl.u32 %v1334, 7
        %v1336 = vsub.s32 %v1333, %v1335
        %v1337 = vrot.slane %v1330, %v1336
        %v1338 = vcombine.low %v1262, %v1263
        %v1340 = vunpack.c.l.s4 1983009808
        %v1341 = vunpack.c.0.s8 %v1340
        %v1342 = vlaneseq
        %v1343 = vshrl.u32 %v1342, 7
        %v1344 = vsub.s32 %v1341, %v1343
        %v1345 = vrot.slane %v1338, %v1344
        %v1346 = vcombine.low %v1321, %v1329
        %v1348 = vunpack.c.l.s4 1934713408
        %v1349 = vunpack.c.0.s8 %v1348
        %v1350 = vlaneseq
        %v1351 = vshrl.u32 %v1350, 7
        %v1352 = vsub.s32 %v1349, %v1351
        %v1353 = vrot.slane %v1346, %v1352
        %v1354 = vcombine.low %v1337, %v1345
        %v1356 = vunpack.c.l.s4 1934713408
        %v1357 = vunpack.c.0.s8 %v1356
        %v1358 = vlaneseq
        %v1359 = vshrl.u32 %v1358, 7
        %v1360 = vsub.s32 %v1357, %v1359
        %v1361 = vrot.slane %v1354, %v1360
        %v1362 = vcombine.low %v1353, %v1361
        %v1363 = vcombine.high %v1353, %v1361
        %v1366 = vpack.i.b16 %v1362, %v1312
        %v1368 = vshrl.u32 %v1312, 16
        %v1369 = vshrl.u32 %v1362, 16
        %v1370 = vpack.i.b16 %v1369, %v1368
        %v1374 = vpack.i.b16 %v1363, %v1313
        %v1376 = vshrl.u32 %v1313, 16
        %v1377 = vshrl.u32 %v1363, 16
        %v1378 = vpack.i.b16 %v1377, %v1376
        %s1380 = sshra.s32 %s480, 4
        %s1381 = sand.u32 %s480, 15
        %s1382 = smul.addr %s1380, 8
        %s1383 = scalar_lea.vmem [#allocation2], %s1382
        %vm1384 = vcmask 64512
        %1385 = vst.msk [vmem:[%s1383] sm:$0xff] %vm1384, %v1094
        %1386 = vst.msk [vmem:[%s1383 + $0x10] sm:$0xff] %vm1384, %v1098
        %1387 = vst.msk [vmem:[%s1383 + $0x20] sm:$0xff] %vm1384, %v1102
        %1388 = vst.msk [vmem:[%s1383 + $0x30] sm:$0xff] %vm1384, %v1106
        %s1389 = smul.addr %s1380, 8
        %s1390 = scalar_lea.vmem [#allocation3], %s1389
        %1391 = vst.msk [vmem:[%s1390] sm:$0xff] %vm1384, %v1366
        %1392 = vst.msk [vmem:[%s1390 + $0x10] sm:$0xff] %vm1384, %v1370
        %1393 = vst.msk [vmem:[%s1390 + $0x20] sm:$0xff] %vm1384, %v1374
        %1394 = vst.msk [vmem:[%s1390 + $0x30] sm:$0xff] %vm1384, %v1378
        // While loop
        $region77: #{tpu_custom_call.1} parent=71 // loop_pre_header
          _
        $region78: #{tpu_custom_call.1} parent=71 // loop_header
          %s1396 = sphi 0, %s1398
          %p1397 = scmp.ge.s32.totalorder %s1396, %s35
          %v1401 = vphi -1e+30, %v1653
          %v1402 = vphi -1e+30, %v1654
          %v1403 = vphi -1e+30, %v1655
          %v1404 = vphi -1e+30, %v1656
          %v1405 = vphi -1e+30, %v1657
          %v1406 = vphi -1e+30, %v1658
          %v1407 = vphi -1e+30, %v1659
          %v1408 = vphi -1e+30, %v1660
          %v1409 = vphi 0.0, %v1741
          %v1410 = vphi 0.0, %v1742
          %v1411 = vphi 0.0, %v1743
          %v1412 = vphi 0.0, %v1744
          %v1413 = vphi 0.0, %v1745
          %v1414 = vphi 0.0, %v1746
          %v1415 = vphi 0.0, %v1747
          %v1416 = vphi 0.0, %v1748
          %v1417 = vphi 0.0, %v1937
          %v1418 = vphi 0.0, %v1938
          %v1419 = vphi 0.0, %v1939
          %v1420 = vphi 0.0, %v1940
          %v1421 = vphi 0.0, %v1941
          %v1422 = vphi 0.0, %v1942
          %v1423 = vphi 0.0, %v1943
          %v1424 = vphi 0.0, %v1944
        $region79: #{tpu_custom_call.1} parent=71 // loop_header_branch
          %1400 = sbr.rel (%p1397) target = $region83
        $region80: #{tpu_custom_call.1} parent=71 // loop_body
          %s1425 = smul.u32 %s1396, 16
          %s1426 = sshra.s32 %s1425, 4
          %s1427 = sand.u32 %s1425, 15
          %s1428 = smul.addr %s1426, 8
          %s1429 = scalar_lea.vmem [#allocation2], %s1428
          %v1430 = vld [vmem:[%s1429] sm:$0xff]
          %v1431 = vld [vmem:[%s1429 + $0x10] sm:$0xff]
          %v1432 = vld [vmem:[%s1429 + $0x20] sm:$0xff]
          %v1433 = vld [vmem:[%s1429 + $0x30] sm:$0xff]
          %s1434 = smul.addr %s1426, 8
          %s1435 = scalar_lea.vmem [#allocation3], %s1434
          %v1436 = vld [vmem:[%s1435] sm:$0xff]
          %v1437 = vld [vmem:[%s1435 + $0x10] sm:$0xff]
          %v1438 = vld [vmem:[%s1435 + $0x20] sm:$0xff]
          %v1439 = vld [vmem:[%s1435 + $0x30] sm:$0xff]
          %v1441 = vsel %vm1384, %v818, 0
          %v1444 = vsel %vm1384, %v1430, 0
          %1446 = vmatprep.subr.bf16.mxu0 0
          %1447 = vmatpush1.bf16.xpose.msra.mxu0 %v1444
          %1448 = vmatprep.subr.bf16.mxu0 0
          %1449 = vmatpush1.bf16.xpose.msra.mxu0 0
          %1450 = vmatprep.subr.bf16.mxu0 0
          %1451 = vmatpush1.bf16.xpose.msra.mxu0 0
          %1452 = vmatprep.subr.bf16.mxu0 0
          %1453 = vmatpush1.bf16.xpose.msra.mxu0 0
          %1454 = vmatprep.subr.bf16.mxu0 0
          %1455 = vmatpush1.bf16.xpose.msra.mxu0 0
          %1456 = vmatprep.subr.bf16.mxu0 0
          %1457 = vmatpush1.bf16.xpose.msra.mxu0 0
          %1458 = vmatprep.subr.bf16.mxu0 0
          %1459 = vmatpush1.bf16.xpose.msra.mxu0 0
          %1460 = vmatprep.subr.bf16.mxu0 0
          %1461 = vmatpush1.bf16.xpose.msra.mxu0 0
          %1462 = vmatprep.subr.bf16.mxu0 0
          %1463 = vmatpush1.bf16.xpose.msra.mxu0 0
          %1464 = vmatprep.subr.bf16.mxu0 0
          %1465 = vmatpush1.bf16.xpose.msra.mxu0 0
          %1466 = vmatprep.subr.bf16.mxu0 0
          %1467 = vmatpush1.bf16.xpose.msra.mxu0 0
          %1468 = vmatprep.subr.bf16.mxu0 0
          %1469 = vmatpush1.bf16.xpose.msra.mxu0 0
          %1470 = vmatprep.subr.bf16.mxu0 0
          %1471 = vmatpush1.bf16.xpose.msra.mxu0 0
          %1472 = vmatprep.subr.bf16.mxu0 0
          %1473 = vmatpush1.bf16.xpose.msra.mxu0 0
          %1474 = vmatprep.subr.bf16.mxu0 0
          %1475 = vmatpush1.bf16.xpose.msra.mxu0 0
          %1476 = vmatprep.subr.bf16.mxu0 0
          %1477 = vmatpush1.bf16.xpose.msra.mxu0 0
          %1478 = vmatprep.mubr.bf16.mxu0 0
          %1479 = vmatmul.mubr.bf16.gmra.mrb[0].mxu0 %v1441
          %v1480 = vpop.f32.mrb[0].mxu0
          %v1481 = vadd.f32 0.0, %v1480
          %v1482 = vpop.f32.mrb[0].mxu0
          %v1483 = vpop.f32.mrb[0].mxu0
          %v1484 = vadd.f32 0.0, %v1483
          %v1485 = vpop.f32.mrb[0].mxu0
          %1486 = vdwg.mxu0
          %v1488 = vsel %vm1384, %v821, 0
          %v1491 = vsel %vm1384, %v1431, 0
          %1493 = vmatprep.subr.bf16.mxu0 0
          %1494 = vmatpush1.bf16.xpose.msra.mxu0 %v1491
          %1495 = vmatprep.subr.bf16.mxu0 0
          %1496 = vmatpush1.bf16.xpose.msra.mxu0 0
          %1497 = vmatprep.subr.bf16.mxu0 0
          %1498 = vmatpush1.bf16.xpose.msra.mxu0 0
          %1499 = vmatprep.subr.bf16.mxu0 0
          %1500 = vmatpush1.bf16.xpose.msra.mxu0 0
          %1501 = vmatprep.subr.bf16.mxu0 0
          %1502 = vmatpush1.bf16.xpose.msra.mxu0 0
          %1503 = vmatprep.subr.bf16.mxu0 0
          %1504 = vmatpush1.bf16.xpose.msra.mxu0 0
          %1505 = vmatprep.subr.bf16.mxu0 0
          %1506 = vmatpush1.bf16.xpose.msra.mxu0 0
          %1507 = vmatprep.subr.bf16.mxu0 0
          %1508 = vmatpush1.bf16.xpose.msra.mxu0 0
          %1509 = vmatprep.subr.bf16.mxu0 0
          %1510 = vmatpush1.bf16.xpose.msra.mxu0 0
          %1511 = vmatprep.subr.bf16.mxu0 0
          %1512 = vmatpush1.bf16.xpose.msra.mxu0 0
          %1513 = vmatprep.subr.bf16.mxu0 0
          %1514 = vmatpush1.bf16.xpose.msra.mxu0 0
          %1515 = vmatprep.subr.bf16.mxu0 0
          %1516 = vmatpush1.bf16.xpose.msra.mxu0 0
          %1517 = vmatprep.subr.bf16.mxu0 0
          %1518 = vmatpush1.bf16.xpose.msra.mxu0 0
          %1519 = vmatprep.subr.bf16.mxu0 0
          %1520 = vmatpush1.bf16.xpose.msra.mxu0 0
          %1521 = vmatprep.subr.bf16.mxu0 0
          %1522 = vmatpush1.bf16.xpose.msra.mxu0 0
          %1523 = vmatprep.subr.bf16.mxu0 0
          %1524 = vmatpush1.bf16.xpose.msra.mxu0 0
          %1525 = vmatprep.mubr.bf16.mxu0 0
          %1526 = vmatmul.mubr.bf16.gmra.mrb[0].mxu0 %v1488
          %v1527 = vpop.f32.mrb[0].mxu0
          %v1528 = vadd.f32 0.0, %v1527
          %v1529 = vpop.f32.mrb[0].mxu0
          %v1530 = vpop.f32.mrb[0].mxu0
          %v1531 = vadd.f32 0.0, %v1530
          %v1532 = vpop.f32.mrb[0].mxu0
          %1533 = vdwg.mxu0
          %v1535 = vsel %vm1384, %v824, 0
          %v1538 = vsel %vm1384, %v1432, 0
          %1540 = vmatprep.subr.bf16.mxu0 0
          %1541 = vmatpush1.bf16.xpose.msra.mxu0 %v1538
          %1542 = vmatprep.subr.bf16.mxu0 0
          %1543 = vmatpush1.bf16.xpose.msra.mxu0 0
          %1544 = vmatprep.subr.bf16.mxu0 0
          %1545 = vmatpush1.bf16.xpose.msra.mxu0 0
          %1546 = vmatprep.subr.bf16.mxu0 0
          %1547 = vmatpush1.bf16.xpose.msra.mxu0 0
          %1548 = vmatprep.subr.bf16.mxu0 0
          %1549 = vmatpush1.bf16.xpose.msra.mxu0 0
          %1550 = vmatprep.subr.bf16.mxu0 0
          %1551 = vmatpush1.bf16.xpose.msra.mxu0 0
          %1552 = vmatprep.subr.bf16.mxu0 0
          %1553 = vmatpush1.bf16.xpose.msra.mxu0 0
          %1554 = vmatprep.subr.bf16.mxu0 0
          %1555 = vmatpush1.bf16.xpose.msra.mxu0 0
          %1556 = vmatprep.subr.bf16.mxu0 0
          %1557 = vmatpush1.bf16.xpose.msra.mxu0 0
          %1558 = vmatprep.subr.bf16.mxu0 0
          %1559 = vmatpush1.bf16.xpose.msra.mxu0 0
          %1560 = vmatprep.subr.bf16.mxu0 0
          %1561 = vmatpush1.bf16.xpose.msra.mxu0 0
          %1562 = vmatprep.subr.bf16.mxu0 0
          %1563 = vmatpush1.bf16.xpose.msra.mxu0 0
          %1564 = vmatprep.subr.bf16.mxu0 0
          %1565 = vmatpush1.bf16.xpose.msra.mxu0 0
          %1566 = vmatprep.subr.bf16.mxu0 0
          %1567 = vmatpush1.bf16.xpose.msra.mxu0 0
          %1568 = vmatprep.subr.bf16.mxu0 0
          %1569 = vmatpush1.bf16.xpose.msra.mxu0 0
          %1570 = vmatprep.subr.bf16.mxu0 0
          %1571 = vmatpush1.bf16.xpose.msra.mxu0 0
          %1572 = vmatprep.mubr.bf16.mxu0 0
          %1573 = vmatmul.mubr.bf16.gmra.mrb[0].mxu0 %v1535
          %v1574 = vpop.f32.mrb[0].mxu0
          %v1575 = vadd.f32 0.0, %v1574
          %v1576 = vpop.f32.mrb[0].mxu0
          %v1577 = vpop.f32.mrb[0].mxu0
          %v1578 = vadd.f32 0.0, %v1577
          %v1579 = vpop.f32.mrb[0].mxu0
          %1580 = vdwg.mxu0
          %v1582 = vsel %vm1384, %v827, 0
          %v1585 = vsel %vm1384, %v1433, 0
          %1587 = vmatprep.subr.bf16.mxu0 0
          %1588 = vmatpush1.bf16.xpose.msra.mxu0 %v1585
          %1589 = vmatprep.subr.bf16.mxu0 0
          %1590 = vmatpush1.bf16.xpose.msra.mxu0 0
          %1591 = vmatprep.subr.bf16.mxu0 0
          %1592 = vmatpush1.bf16.xpose.msra.mxu0 0
          %1593 = vmatprep.subr.bf16.mxu0 0
          %1594 = vmatpush1.bf16.xpose.msra.mxu0 0
          %1595 = vmatprep.subr.bf16.mxu0 0
          %1596 = vmatpush1.bf16.xpose.msra.mxu0 0
          %1597 = vmatprep.subr.bf16.mxu0 0
          %1598 = vmatpush1.bf16.xpose.msra.mxu0 0
          %1599 = vmatprep.subr.bf16.mxu0 0
          %1600 = vmatpush1.bf16.xpose.msra.mxu0 0
          %1601 = vmatprep.subr.bf16.mxu0 0
          %1602 = vmatpush1.bf16.xpose.msra.mxu0 0
          %1603 = vmatprep.subr.bf16.mxu0 0
          %1604 = vmatpush1.bf16.xpose.msra.mxu0 0
          %1605 = vmatprep.subr.bf16.mxu0 0
          %1606 = vmatpush1.bf16.xpose.msra.mxu0 0
          %1607 = vmatprep.subr.bf16.mxu0 0
          %1608 = vmatpush1.bf16.xpose.msra.mxu0 0
          %1609 = vmatprep.subr.bf16.mxu0 0
          %1610 = vmatpush1.bf16.xpose.msra.mxu0 0
          %1611 = vmatprep.subr.bf16.mxu0 0
          %1612 = vmatpush1.bf16.xpose.msra.mxu0 0
          %1613 = vmatprep.subr.bf16.mxu0 0
          %1614 = vmatpush1.bf16.xpose.msra.mxu0 0
          %1615 = vmatprep.subr.bf16.mxu0 0
          %1616 = vmatpush1.bf16.xpose.msra.mxu0 0
          %1617 = vmatprep.subr.bf16.mxu0 0
          %1618 = vmatpush1.bf16.xpose.msra.mxu0 0
          %1619 = vmatprep.mubr.bf16.mxu0 0
          %1620 = vmatmul.mubr.bf16.gmra.mrb[0].mxu0 %v1582
          %v1621 = vpop.f32.mrb[0].mxu0
          %v1622 = vadd.f32 0.0, %v1621
          %v1623 = vpop.f32.mrb[0].mxu0
          %v1624 = vpop.f32.mrb[0].mxu0
          %v1625 = vadd.f32 0.0, %v1624
          %v1626 = vpop.f32.mrb[0].mxu0
          %1627 = vdwg.mxu0
          %vm1628 = vcmask 130048
          %v1629 = vsel %vm1628, %v1481, -inf
          %1630 = vmax.xlane.f32.xlu0 %v1629
          %v1631 = vpop.xlane.xlu0 %1630
          %v1632 = vsel %vm1628, %v1484, -inf
          %1633 = vmax.xlane.f32.xlu0 %v1632
          %v1634 = vpop.xlane.xlu0 %1633
          %v1635 = vsel %vm1628, %v1528, -inf
          %1636 = vmax.xlane.f32.xlu0 %v1635
          %v1637 = vpop.xlane.xlu0 %1636
          %v1638 = vsel %vm1628, %v1531, -inf
          %1639 = vmax.xlane.f32.xlu0 %v1638
          %v1640 = vpop.xlane.xlu0 %1639
          %v1641 = vsel %vm1628, %v1575, -inf
          %1642 = vmax.xlane.f32.xlu0 %v1641
          %v1643 = vpop.xlane.xlu0 %1642
          %v1644 = vsel %vm1628, %v1578, -inf
          %1645 = vmax.xlane.f32.xlu0 %v1644
          %v1646 = vpop.xlane.xlu0 %1645
          %v1647 = vsel %vm1628, %v1622, -inf
          %1648 = vmax.xlane.f32.xlu0 %v1647
          %v1649 = vpop.xlane.xlu0 %1648
          %v1650 = vsel %vm1628, %v1625, -inf
          %1651 = vmax.xlane.f32.xlu0 %v1650
          %v1652 = vpop.xlane.xlu0 %1651
          %v1653 = vmax.f32 %v1401, %v1631
          %v1654 = vmax.f32 %v1402, %v1634
          %v1655 = vmax.f32 %v1403, %v1637
          %v1656 = vmax.f32 %v1404, %v1640
          %v1657 = vmax.f32 %v1405, %v1643
          %v1658 = vmax.f32 %v1406, %v1646
          %v1659 = vmax.f32 %v1407, %v1649
          %v1660 = vmax.f32 %v1408, %v1652
          %v1661 = vsub.f32 %v1401, %v1653
          %v1662 = vsub.f32 %v1402, %v1654
          %v1663 = vsub.f32 %v1403, %v1655
          %v1664 = vsub.f32 %v1404, %v1656
          %v1665 = vsub.f32 %v1405, %v1657
          %v1666 = vsub.f32 %v1406, %v1658
          %v1667 = vsub.f32 %v1407, %v1659
          %v1668 = vsub.f32 %v1408, %v1660
          %v1669 = vmul.f32 %v1661, 1.442695
          %v1670 = vpow.pop %v1669
          %v1671 = vmul.f32 %v1662, 1.442695
          %v1672 = vpow.pop %v1671
          %v1673 = vmul.f32 %v1663, 1.442695
          %v1674 = vpow.pop %v1673
          %v1675 = vmul.f32 %v1664, 1.442695
          %v1676 = vpow.pop %v1675
          %v1677 = vmul.f32 %v1665, 1.442695
          %v1678 = vpow.pop %v1677
          %v1679 = vmul.f32 %v1666, 1.442695
          %v1680 = vpow.pop %v1679
          %v1681 = vmul.f32 %v1667, 1.442695
          %v1682 = vpow.pop %v1681
          %v1683 = vmul.f32 %v1668, 1.442695
          %v1684 = vpow.pop %v1683
          %v1685 = vsub.f32 %v1481, %v1653
          %v1686 = vsub.f32 %v1484, %v1654
          %v1687 = vsub.f32 %v1528, %v1655
          %v1688 = vsub.f32 %v1531, %v1656
          %v1689 = vsub.f32 %v1575, %v1657
          %v1690 = vsub.f32 %v1578, %v1658
          %v1691 = vsub.f32 %v1622, %v1659
          %v1692 = vsub.f32 %v1625, %v1660
          %v1693 = vmul.f32 %v1685, 1.442695
          %v1694 = vpow.pop %v1693
          %v1695 = vmul.f32 %v1686, 1.442695
          %v1696 = vpow.pop %v1695
          %v1697 = vmul.f32 %v1687, 1.442695
          %v1698 = vpow.pop %v1697
          %v1699 = vmul.f32 %v1688, 1.442695
          %v1700 = vpow.pop %v1699
          %v1701 = vmul.f32 %v1689, 1.442695
          %v1702 = vpow.pop %v1701
          %v1703 = vmul.f32 %v1690, 1.442695
          %v1704 = vpow.pop %v1703
          %v1705 = vmul.f32 %v1691, 1.442695
          %v1706 = vpow.pop %v1705
          %v1707 = vmul.f32 %v1692, 1.442695
          %v1708 = vpow.pop %v1707
          %v1709 = vmul.f32 %v1670, %v1409
          %v1710 = vmul.f32 %v1672, %v1410
          %v1711 = vmul.f32 %v1674, %v1411
          %v1712 = vmul.f32 %v1676, %v1412
          %v1713 = vmul.f32 %v1678, %v1413
          %v1714 = vmul.f32 %v1680, %v1414
          %v1715 = vmul.f32 %v1682, %v1415
          %v1716 = vmul.f32 %v1684, %v1416
          %v1717 = vsel %vm1628, %v1694, 0.0
          %1718 = vadd.xlane.f32.xlu0 %v1717
          %v1719 = vpop.xlane.xlu0 %1718
          %v1720 = vsel %vm1628, %v1696, 0.0
          %1721 = vadd.xlane.f32.xlu0 %v1720
          %v1722 = vpop.xlane.xlu0 %1721
          %v1723 = vsel %vm1628, %v1698, 0.0
          %1724 = vadd.xlane.f32.xlu0 %v1723
          %v1725 = vpop.xlane.xlu0 %1724
          %v1726 = vsel %vm1628, %v1700, 0.0
          %1727 = vadd.xlane.f32.xlu0 %v1726
          %v1728 = vpop.xlane.xlu0 %1727
          %v1729 = vsel %vm1628, %v1702, 0.0
          %1730 = vadd.xlane.f32.xlu0 %v1729
          %v1731 = vpop.xlane.xlu0 %1730
          %v1732 = vsel %vm1628, %v1704, 0.0
          %1733 = vadd.xlane.f32.xlu0 %v1732
          %v1734 = vpop.xlane.xlu0 %1733
          %v1735 = vsel %vm1628, %v1706, 0.0
          %1736 = vadd.xlane.f32.xlu0 %v1735
          %v1737 = vpop.xlane.xlu0 %1736
          %v1738 = vsel %vm1628, %v1708, 0.0
          %1739 = vadd.xlane.f32.xlu0 %v1738
          %v1740 = vpop.xlane.xlu0 %1739
          %v1741 = vadd.f32 %v1709, %v1719
          %v1742 = vadd.f32 %v1710, %v1722
          %v1743 = vadd.f32 %v1711, %v1725
          %v1744 = vadd.f32 %v1712, %v1728
          %v1745 = vadd.f32 %v1713, %v1731
          %v1746 = vadd.f32 %v1714, %v1734
          %v1747 = vadd.f32 %v1715, %v1737
          %v1748 = vadd.f32 %v1716, %v1740
          %v1749 = vmul.f32 %v1670, %v1417
          %v1750 = vmul.f32 %v1672, %v1418
          %v1751 = vmul.f32 %v1674, %v1419
          %v1752 = vmul.f32 %v1676, %v1420
          %v1753 = vmul.f32 %v1678, %v1421
          %v1754 = vmul.f32 %v1680, %v1422
          %v1755 = vmul.f32 %v1682, %v1423
          %v1756 = vmul.f32 %v1684, %v1424
          %v1757 = vpack.c.bf16 %v1696, %v1694
          %v1758 = vpack.c.bf16 %v1700, %v1698
          %v1759 = vpack.c.bf16 %v1704, %v1702
          %v1760 = vpack.c.bf16 %v1708, %v1706
          %v1762 = vsel %vm1628, %v1757, 0
          %1764 = vmatprep.subr.bf16.mxu0 0
          %1765 = vmatpush1.bf16.msra.mxu0 %v1436
          %1766 = vmatprep.subr.bf16.mxu0 0
          %1767 = vmatpush1.bf16.msra.mxu0 0
          %1768 = vmatprep.subr.bf16.mxu0 0
          %1769 = vmatpush1.bf16.msra.mxu0 0
          %1770 = vmatprep.subr.bf16.mxu0 0
          %1771 = vmatpush1.bf16.msra.mxu0 0
          %1772 = vmatprep.subr.bf16.mxu0 0
          %1773 = vmatpush1.bf16.msra.mxu0 0
          %1774 = vmatprep.subr.bf16.mxu0 0
          %1775 = vmatpush1.bf16.msra.mxu0 0
          %1776 = vmatprep.subr.bf16.mxu0 0
          %1777 = vmatpush1.bf16.msra.mxu0 0
          %1778 = vmatprep.subr.bf16.mxu0 0
          %1779 = vmatpush1.bf16.msra.mxu0 0
          %1780 = vmatprep.subr.bf16.mxu0 0
          %1781 = vmatpush1.bf16.msra.mxu0 0
          %1782 = vmatprep.subr.bf16.mxu0 0
          %1783 = vmatpush1.bf16.msra.mxu0 0
          %1784 = vmatprep.subr.bf16.mxu0 0
          %1785 = vmatpush1.bf16.msra.mxu0 0
          %1786 = vmatprep.subr.bf16.mxu0 0
          %1787 = vmatpush1.bf16.msra.mxu0 0
          %1788 = vmatprep.subr.bf16.mxu0 0
          %1789 = vmatpush1.bf16.msra.mxu0 0
          %1790 = vmatprep.subr.bf16.mxu0 0
          %1791 = vmatpush1.bf16.msra.mxu0 0
          %1792 = vmatprep.subr.bf16.mxu0 0
          %1793 = vmatpush1.bf16.msra.mxu0 0
          %1794 = vmatprep.subr.bf16.mxu0 0
          %1795 = vmatpush1.bf16.msra.mxu0 0
          %1796 = vmatprep.mubr.bf16.mxu0 0
          %1797 = vmatmul.mubr.bf16.gmra.mrb[0].mxu0 %v1762
          %v1798 = vpop.f32.mrb[0].mxu0
          %v1799 = vadd.f32 0.0, %v1798
          %v1800 = vpop.f32.mrb[0].mxu0
          %v1801 = vpop.f32.mrb[0].mxu0
          %v1802 = vadd.f32 0.0, %v1801
          %v1803 = vpop.f32.mrb[0].mxu0
          %1804 = vdwg.mxu0
          %v1806 = vsel %vm1628, %v1758, 0
          %1808 = vmatprep.subr.bf16.mxu0 0
          %1809 = vmatpush1.bf16.msra.mxu0 %v1437
          %1810 = vmatprep.subr.bf16.mxu0 0
          %1811 = vmatpush1.bf16.msra.mxu0 0
          %1812 = vmatprep.subr.bf16.mxu0 0
          %1813 = vmatpush1.bf16.msra.mxu0 0
          %1814 = vmatprep.subr.bf16.mxu0 0
          %1815 = vmatpush1.bf16.msra.mxu0 0
          %1816 = vmatprep.subr.bf16.mxu0 0
          %1817 = vmatpush1.bf16.msra.mxu0 0
          %1818 = vmatprep.subr.bf16.mxu0 0
          %1819 = vmatpush1.bf16.msra.mxu0 0
          %1820 = vmatprep.subr.bf16.mxu0 0
          %1821 = vmatpush1.bf16.msra.mxu0 0
          %1822 = vmatprep.subr.bf16.mxu0 0
          %1823 = vmatpush1.bf16.msra.mxu0 0
          %1824 = vmatprep.subr.bf16.mxu0 0
          %1825 = vmatpush1.bf16.msra.mxu0 0
          %1826 = vmatprep.subr.bf16.mxu0 0
          %1827 = vmatpush1.bf16.msra.mxu0 0
          %1828 = vmatprep.subr.bf16.mxu0 0
          %1829 = vmatpush1.bf16.msra.mxu0 0
          %1830 = vmatprep.subr.bf16.mxu0 0
          %1831 = vmatpush1.bf16.msra.mxu0 0
          %1832 = vmatprep.subr.bf16.mxu0 0
          %1833 = vmatpush1.bf16.msra.mxu0 0
          %1834 = vmatprep.subr.bf16.mxu0 0
          %1835 = vmatpush1.bf16.msra.mxu0 0
          %1836 = vmatprep.subr.bf16.mxu0 0
          %1837 = vmatpush1.bf16.msra.mxu0 0
          %1838 = vmatprep.subr.bf16.mxu0 0
          %1839 = vmatpush1.bf16.msra.mxu0 0
          %1840 = vmatprep.mubr.bf16.mxu0 0
          %1841 = vmatmul.mubr.bf16.gmra.mrb[0].mxu0 %v1806
          %v1842 = vpop.f32.mrb[0].mxu0
          %v1843 = vadd.f32 0.0, %v1842
          %v1844 = vpop.f32.mrb[0].mxu0
          %v1845 = vpop.f32.mrb[0].mxu0
          %v1846 = vadd.f32 0.0, %v1845
          %v1847 = vpop.f32.mrb[0].mxu0
          %1848 = vdwg.mxu0
          %v1850 = vsel %vm1628, %v1759, 0
          %1852 = vmatprep.subr.bf16.mxu0 0
          %1853 = vmatpush1.bf16.msra.mxu0 %v1438
          %1854 = vmatprep.subr.bf16.mxu0 0
          %1855 = vmatpush1.bf16.msra.mxu0 0
          %1856 = vmatprep.subr.bf16.mxu0 0
          %1857 = vmatpush1.bf16.msra.mxu0 0
          %1858 = vmatprep.subr.bf16.mxu0 0
          %1859 = vmatpush1.bf16.msra.mxu0 0
          %1860 = vmatprep.subr.bf16.mxu0 0
          %1861 = vmatpush1.bf16.msra.mxu0 0
          %1862 = vmatprep.subr.bf16.mxu0 0
          %1863 = vmatpush1.bf16.msra.mxu0 0
          %1864 = vmatprep.subr.bf16.mxu0 0
          %1865 = vmatpush1.bf16.msra.mxu0 0
          %1866 = vmatprep.subr.bf16.mxu0 0
          %1867 = vmatpush1.bf16.msra.mxu0 0
          %1868 = vmatprep.subr.bf16.mxu0 0
          %1869 = vmatpush1.bf16.msra.mxu0 0
          %1870 = vmatprep.subr.bf16.mxu0 0
          %1871 = vmatpush1.bf16.msra.mxu0 0
          %1872 = vmatprep.subr.bf16.mxu0 0
          %1873 = vmatpush1.bf16.msra.mxu0 0
          %1874 = vmatprep.subr.bf16.mxu0 0
          %1875 = vmatpush1.bf16.msra.mxu0 0
          %1876 = vmatprep.subr.bf16.mxu0 0
          %1877 = vmatpush1.bf16.msra.mxu0 0
          %1878 = vmatprep.subr.bf16.mxu0 0
          %1879 = vmatpush1.bf16.msra.mxu0 0
          %1880 = vmatprep.subr.bf16.mxu0 0
          %1881 = vmatpush1.bf16.msra.mxu0 0
          %1882 = vmatprep.subr.bf16.mxu0 0
          %1883 = vmatpush1.bf16.msra.mxu0 0
          %1884 = vmatprep.mubr.bf16.mxu0 0
          %1885 = vmatmul.mubr.bf16.gmra.mrb[0].mxu0 %v1850
          %v1886 = vpop.f32.mrb[0].mxu0
          %v1887 = vadd.f32 0.0, %v1886
          %v1888 = vpop.f32.mrb[0].mxu0
          %v1889 = vpop.f32.mrb[0].mxu0
          %v1890 = vadd.f32 0.0, %v1889
          %v1891 = vpop.f32.mrb[0].mxu0
          %1892 = vdwg.mxu0
          %v1894 = vsel %vm1628, %v1760, 0
          %1896 = vmatprep.subr.bf16.mxu0 0
          %1897 = vmatpush1.bf16.msra.mxu0 %v1439
          %1898 = vmatprep.subr.bf16.mxu0 0
          %1899 = vmatpush1.bf16.msra.mxu0 0
          %1900 = vmatprep.subr.bf16.mxu0 0
          %1901 = vmatpush1.bf16.msra.mxu0 0
          %1902 = vmatprep.subr.bf16.mxu0 0
          %1903 = vmatpush1.bf16.msra.mxu0 0
          %1904 = vmatprep.subr.bf16.mxu0 0
          %1905 = vmatpush1.bf16.msra.mxu0 0
          %1906 = vmatprep.subr.bf16.mxu0 0
          %1907 = vmatpush1.bf16.msra.mxu0 0
          %1908 = vmatprep.subr.bf16.mxu0 0
          %1909 = vmatpush1.bf16.msra.mxu0 0
          %1910 = vmatprep.subr.bf16.mxu0 0
          %1911 = vmatpush1.bf16.msra.mxu0 0
          %1912 = vmatprep.subr.bf16.mxu0 0
          %1913 = vmatpush1.bf16.msra.mxu0 0
          %1914 = vmatprep.subr.bf16.mxu0 0
          %1915 = vmatpush1.bf16.msra.mxu0 0
          %1916 = vmatprep.subr.bf16.mxu0 0
          %1917 = vmatpush1.bf16.msra.mxu0 0
          %1918 = vmatprep.subr.bf16.mxu0 0
          %1919 = vmatpush1.bf16.msra.mxu0 0
          %1920 = vmatprep.subr.bf16.mxu0 0
          %1921 = vmatpush1.bf16.msra.mxu0 0
          %1922 = vmatprep.subr.bf16.mxu0 0
          %1923 = vmatpush1.bf16.msra.mxu0 0
          %1924 = vmatprep.subr.bf16.mxu0 0
          %1925 = vmatpush1.bf16.msra.mxu0 0
          %1926 = vmatprep.subr.bf16.mxu0 0
          %1927 = vmatpush1.bf16.msra.mxu0 0
          %1928 = vmatprep.mubr.bf16.mxu0 0
          %1929 = vmatmul.mubr.bf16.gmra.mrb[0].mxu0 %v1894
          %v1930 = vpop.f32.mrb[0].mxu0
          %v1931 = vadd.f32 0.0, %v1930
          %v1932 = vpop.f32.mrb[0].mxu0
          %v1933 = vpop.f32.mrb[0].mxu0
          %v1934 = vadd.f32 0.0, %v1933
          %v1935 = vpop.f32.mrb[0].mxu0
          %1936 = vdwg.mxu0
          %v1937 = vadd.f32 %v1749, %v1799
          %v1938 = vadd.f32 %v1750, %v1802
          %v1939 = vadd.f32 %v1751, %v1843
          %v1940 = vadd.f32 %v1752, %v1846
          %v1941 = vadd.f32 %v1753, %v1887
          %v1942 = vadd.f32 %v1754, %v1890
          %v1943 = vadd.f32 %v1755, %v1931
          %v1944 = vadd.f32 %v1756, %v1934
        $region81: #{tpu_custom_call.1} parent=71 // loop_footer
          %s1398 = sadd.s32 %s1396, 1
        $region82: #{tpu_custom_call.1} parent=71 // loop_footer_branch
          %1395 = sbr.rel target = $region78
        $region83: #{tpu_custom_call.1} parent=71 // loop_exit
          _
        %v1946 = vsel %vm1384, %v818, 0
        %v1949 = vsel %vm1384, %v1094, 0
        %1951 = vmatprep.subr.bf16.mxu0 0
        %1952 = vmatpush1.bf16.xpose.msra.mxu0 %v1949
        %1953 = vmatprep.subr.bf16.mxu0 0
        %1954 = vmatpush1.bf16.xpose.msra.mxu0 0
        %1955 = vmatprep.subr.bf16.mxu0 0
        %1956 = vmatpush1.bf16.xpose.msra.mxu0 0
        %1957 = vmatprep.subr.bf16.mxu0 0
        %1958 = vmatpush1.bf16.xpose.msra.mxu0 0
        %1959 = vmatprep.subr.bf16.mxu0 0
        %1960 = vmatpush1.bf16.xpose.msra.mxu0 0
        %1961 = vmatprep.subr.bf16.mxu0 0
        %1962 = vmatpush1.bf16.xpose.msra.mxu0 0
        %1963 = vmatprep.subr.bf16.mxu0 0
        %1964 = vmatpush1.bf16.xpose.msra.mxu0 0
        %1965 = vmatprep.subr.bf16.mxu0 0
        %1966 = vmatpush1.bf16.xpose.msra.mxu0 0
        %1967 = vmatprep.subr.bf16.mxu0 0
        %1968 = vmatpush1.bf16.xpose.msra.mxu0 0
        %1969 = vmatprep.subr.bf16.mxu0 0
        %1970 = vmatpush1.bf16.xpose.msra.mxu0 0
        %1971 = vmatprep.subr.bf16.mxu0 0
        %1972 = vmatpush1.bf16.xpose.msra.mxu0 0
        %1973 = vmatprep.subr.bf16.mxu0 0
        %1974 = vmatpush1.bf16.xpose.msra.mxu0 0
        %1975 = vmatprep.subr.bf16.mxu0 0
        %1976 = vmatpush1.bf16.xpose.msra.mxu0 0
        %1977 = vmatprep.subr.bf16.mxu0 0
        %1978 = vmatpush1.bf16.xpose.msra.mxu0 0
        %1979 = vmatprep.subr.bf16.mxu0 0
        %1980 = vmatpush1.bf16.xpose.msra.mxu0 0
        %1981 = vmatprep.subr.bf16.mxu0 0
        %1982 = vmatpush1.bf16.xpose.msra.mxu0 0
        %1983 = vmatprep.mubr.bf16.mxu0 0
        %1984 = vmatmul.mubr.bf16.gmra.mrb[0].mxu0 %v1946
        %v1985 = vpop.f32.mrb[0].mxu0
        %v1986 = vadd.f32 0.0, %v1985
        %v1987 = vpop.f32.mrb[0].mxu0
        %v1988 = vpop.f32.mrb[0].mxu0
        %v1989 = vadd.f32 0.0, %v1988
        %v1990 = vpop.f32.mrb[0].mxu0
        %1991 = vdwg.mxu0
        %v1993 = vsel %vm1384, %v821, 0
        %v1996 = vsel %vm1384, %v1098, 0
        %1998 = vmatprep.subr.bf16.mxu0 0
        %1999 = vmatpush1.bf16.xpose.msra.mxu0 %v1996
        %2000 = vmatprep.subr.bf16.mxu0 0
        %2001 = vmatpush1.bf16.xpose.msra.mxu0 0
        %2002 = vmatprep.subr.bf16.mxu0 0
        %2003 = vmatpush1.bf16.xpose.msra.mxu0 0
        %2004 = vmatprep.subr.bf16.mxu0 0
        %2005 = vmatpush1.bf16.xpose.msra.mxu0 0
        %2006 = vmatprep.subr.bf16.mxu0 0
        %2007 = vmatpush1.bf16.xpose.msra.mxu0 0
        %2008 = vmatprep.subr.bf16.mxu0 0
        %2009 = vmatpush1.bf16.xpose.msra.mxu0 0
        %2010 = vmatprep.subr.bf16.mxu0 0
        %2011 = vmatpush1.bf16.xpose.msra.mxu0 0
        %2012 = vmatprep.subr.bf16.mxu0 0
        %2013 = vmatpush1.bf16.xpose.msra.mxu0 0
        %2014 = vmatprep.subr.bf16.mxu0 0
        %2015 = vmatpush1.bf16.xpose.msra.mxu0 0
        %2016 = vmatprep.subr.bf16.mxu0 0
        %2017 = vmatpush1.bf16.xpose.msra.mxu0 0
        %2018 = vmatprep.subr.bf16.mxu0 0
        %2019 = vmatpush1.bf16.xpose.msra.mxu0 0
        %2020 = vmatprep.subr.bf16.mxu0 0
        %2021 = vmatpush1.bf16.xpose.msra.mxu0 0
        %2022 = vmatprep.subr.bf16.mxu0 0
        %2023 = vmatpush1.bf16.xpose.msra.mxu0 0
        %2024 = vmatprep.subr.bf16.mxu0 0
        %2025 = vmatpush1.bf16.xpose.msra.mxu0 0
        %2026 = vmatprep.subr.bf16.mxu0 0
        %2027 = vmatpush1.bf16.xpose.msra.mxu0 0
        %2028 = vmatprep.subr.bf16.mxu0 0
        %2029 = vmatpush1.bf16.xpose.msra.mxu0 0
        %2030 = vmatprep.mubr.bf16.mxu0 0
        %2031 = vmatmul.mubr.bf16.gmra.mrb[0].mxu0 %v1993
        %v2032 = vpop.f32.mrb[0].mxu0
        %v2033 = vadd.f32 0.0, %v2032
        %v2034 = vpop.f32.mrb[0].mxu0
        %v2035 = vpop.f32.mrb[0].mxu0
        %v2036 = vadd.f32 0.0, %v2035
        %v2037 = vpop.f32.mrb[0].mxu0
        %2038 = vdwg.mxu0
        %v2040 = vsel %vm1384, %v824, 0
        %v2043 = vsel %vm1384, %v1102, 0
        %2045 = vmatprep.subr.bf16.mxu0 0
        %2046 = vmatpush1.bf16.xpose.msra.mxu0 %v2043
        %2047 = vmatprep.subr.bf16.mxu0 0
        %2048 = vmatpush1.bf16.xpose.msra.mxu0 0
        %2049 = vmatprep.subr.bf16.mxu0 0
        %2050 = vmatpush1.bf16.xpose.msra.mxu0 0
        %2051 = vmatprep.subr.bf16.mxu0 0
        %2052 = vmatpush1.bf16.xpose.msra.mxu0 0
        %2053 = vmatprep.subr.bf16.mxu0 0
        %2054 = vmatpush1.bf16.xpose.msra.mxu0 0
        %2055 = vmatprep.subr.bf16.mxu0 0
        %2056 = vmatpush1.bf16.xpose.msra.mxu0 0
        %2057 = vmatprep.subr.bf16.mxu0 0
        %2058 = vmatpush1.bf16.xpose.msra.mxu0 0
        %2059 = vmatprep.subr.bf16.mxu0 0
        %2060 = vmatpush1.bf16.xpose.msra.mxu0 0
        %2061 = vmatprep.subr.bf16.mxu0 0
        %2062 = vmatpush1.bf16.xpose.msra.mxu0 0
        %2063 = vmatprep.subr.bf16.mxu0 0
        %2064 = vmatpush1.bf16.xpose.msra.mxu0 0
        %2065 = vmatprep.subr.bf16.mxu0 0
        %2066 = vmatpush1.bf16.xpose.msra.mxu0 0
        %2067 = vmatprep.subr.bf16.mxu0 0
        %2068 = vmatpush1.bf16.xpose.msra.mxu0 0
        %2069 = vmatprep.subr.bf16.mxu0 0
        %2070 = vmatpush1.bf16.xpose.msra.mxu0 0
        %2071 = vmatprep.subr.bf16.mxu0 0
        %2072 = vmatpush1.bf16.xpose.msra.mxu0 0
        %2073 = vmatprep.subr.bf16.mxu0 0
        %2074 = vmatpush1.bf16.xpose.msra.mxu0 0
        %2075 = vmatprep.subr.bf16.mxu0 0
        %2076 = vmatpush1.bf16.xpose.msra.mxu0 0
        %2077 = vmatprep.mubr.bf16.mxu0 0
        %2078 = vmatmul.mubr.bf16.gmra.mrb[0].mxu0 %v2040
        %v2079 = vpop.f32.mrb[0].mxu0
        %v2080 = vadd.f32 0.0, %v2079
        %v2081 = vpop.f32.mrb[0].mxu0
        %v2082 = vpop.f32.mrb[0].mxu0
        %v2083 = vadd.f32 0.0, %v2082
        %v2084 = vpop.f32.mrb[0].mxu0
        %2085 = vdwg.mxu0
        %v2087 = vsel %vm1384, %v827, 0
        %v2090 = vsel %vm1384, %v1106, 0
        %2092 = vmatprep.subr.bf16.mxu0 0
        %2093 = vmatpush1.bf16.xpose.msra.mxu0 %v2090
        %2094 = vmatprep.subr.bf16.mxu0 0
        %2095 = vmatpush1.bf16.xpose.msra.mxu0 0
        %2096 = vmatprep.subr.bf16.mxu0 0
        %2097 = vmatpush1.bf16.xpose.msra.mxu0 0
        %2098 = vmatprep.subr.bf16.mxu0 0
        %2099 = vmatpush1.bf16.xpose.msra.mxu0 0
        %2100 = vmatprep.subr.bf16.mxu0 0
        %2101 = vmatpush1.bf16.xpose.msra.mxu0 0
        %2102 = vmatprep.subr.bf16.mxu0 0
        %2103 = vmatpush1.bf16.xpose.msra.mxu0 0
        %2104 = vmatprep.subr.bf16.mxu0 0
        %2105 = vmatpush1.bf16.xpose.msra.mxu0 0
        %2106 = vmatprep.subr.bf16.mxu0 0
        %2107 = vmatpush1.bf16.xpose.msra.mxu0 0
        %2108 = vmatprep.subr.bf16.mxu0 0
        %2109 = vmatpush1.bf16.xpose.msra.mxu0 0
        %2110 = vmatprep.subr.bf16.mxu0 0
        %2111 = vmatpush1.bf16.xpose.msra.mxu0 0
        %2112 = vmatprep.subr.bf16.mxu0 0
        %2113 = vmatpush1.bf16.xpose.msra.mxu0 0
        %2114 = vmatprep.subr.bf16.mxu0 0
        %2115 = vmatpush1.bf16.xpose.msra.mxu0 0
        %2116 = vmatprep.subr.bf16.mxu0 0
        %2117 = vmatpush1.bf16.xpose.msra.mxu0 0
        %2118 = vmatprep.subr.bf16.mxu0 0
        %2119 = vmatpush1.bf16.xpose.msra.mxu0 0
        %2120 = vmatprep.subr.bf16.mxu0 0
        %2121 = vmatpush1.bf16.xpose.msra.mxu0 0
        %2122 = vmatprep.subr.bf16.mxu0 0
        %2123 = vmatpush1.bf16.xpose.msra.mxu0 0
        %2124 = vmatprep.mubr.bf16.mxu0 0
        %2125 = vmatmul.mubr.bf16.gmra.mrb[0].mxu0 %v2087
        %v2126 = vpop.f32.mrb[0].mxu0
        %v2127 = vadd.f32 0.0, %v2126
        %v2128 = vpop.f32.mrb[0].mxu0
        %v2129 = vpop.f32.mrb[0].mxu0
        %v2130 = vadd.f32 0.0, %v2129
        %v2131 = vpop.f32.mrb[0].mxu0
        %2132 = vdwg.mxu0
        %v2133 = vlaneseq
        %v2134 = vshrl.u32 %v2133, 7
        %v2135 = vadd.s32 %v2134, 8
        %v2136 = vlaneseq
        %v2137 = vand.u32 %v2136, 127
        %vm2138 = vcmp.le.s32.totalorder %v2137, %v2134
        %vm2139 = vcmp.le.s32.totalorder %v2137, %v2135
        %v2140 = vsel %vm2138, 1, 0
        %v2141 = vsel %vm2139, 1, 0
        %vm2142 = vcmp.eq.s32.totalorder %v2140, 1
        %vm2143 = vcmp.eq.s32.totalorder %v2141, 1
        %v2144 = vsel %vm2142, %v1986, -1e+09
        %v2145 = vsel %vm2143, %v1989, -1e+09
        %v2146 = vsel %vm2142, %v2033, -1e+09
        %v2147 = vsel %vm2143, %v2036, -1e+09
        %v2148 = vsel %vm2142, %v2080, -1e+09
        %v2149 = vsel %vm2143, %v2083, -1e+09
        %v2150 = vsel %vm2142, %v2127, -1e+09
        %v2151 = vsel %vm2143, %v2130, -1e+09
        %vm2152 = vcmask 130048
        %v2153 = vsel %vm2152, %v2144, -inf
        %2154 = vmax.xlane.f32.xlu0 %v2153
        %v2155 = vpop.xlane.xlu0 %2154
        %v2156 = vsel %vm2152, %v2145, -inf
        %2157 = vmax.xlane.f32.xlu0 %v2156
        %v2158 = vpop.xlane.xlu0 %2157
        %v2159 = vsel %vm2152, %v2146, -inf
        %2160 = vmax.xlane.f32.xlu0 %v2159
        %v2161 = vpop.xlane.xlu0 %2160
        %v2162 = vsel %vm2152, %v2147, -inf
        %2163 = vmax.xlane.f32.xlu0 %v2162
        %v2164 = vpop.xlane.xlu0 %2163
        %v2165 = vsel %vm2152, %v2148, -inf
        %2166 = vmax.xlane.f32.xlu0 %v2165
        %v2167 = vpop.xlane.xlu0 %2166
        %v2168 = vsel %vm2152, %v2149, -inf
        %2169 = vmax.xlane.f32.xlu0 %v2168
        %v2170 = vpop.xlane.xlu0 %2169
        %v2171 = vsel %vm2152, %v2150, -inf
        %2172 = vmax.xlane.f32.xlu0 %v2171
        %v2173 = vpop.xlane.xlu0 %2172
        %v2174 = vsel %vm2152, %v2151, -inf
        %2175 = vmax.xlane.f32.xlu0 %v2174
        %v2176 = vpop.xlane.xlu0 %2175
        %v2177 = vmax.f32 %v1401, %v2155
        %v2178 = vmax.f32 %v1402, %v2158
        %v2179 = vmax.f32 %v1403, %v2161
        %v2180 = vmax.f32 %v1404, %v2164
        %v2181 = vmax.f32 %v1405, %v2167
        %v2182 = vmax.f32 %v1406, %v2170
        %v2183 = vmax.f32 %v1407, %v2173
        %v2184 = vmax.f32 %v1408, %v2176
        %v2185 = vsub.f32 %v1401, %v2177
        %v2186 = vsub.f32 %v1402, %v2178
        %v2187 = vsub.f32 %v1403, %v2179
        %v2188 = vsub.f32 %v1404, %v2180
        %v2189 = vsub.f32 %v1405, %v2181
        %v2190 = vsub.f32 %v1406, %v2182
        %v2191 = vsub.f32 %v1407, %v2183
        %v2192 = vsub.f32 %v1408, %v2184
        %v2193 = vmul.f32 %v2185, 1.442695
        %v2194 = vpow.pop %v2193
        %v2195 = vmul.f32 %v2186, 1.442695
        %v2196 = vpow.pop %v2195
        %v2197 = vmul.f32 %v2187, 1.442695
        %v2198 = vpow.pop %v2197
        %v2199 = vmul.f32 %v2188, 1.442695
        %v2200 = vpow.pop %v2199
        %v2201 = vmul.f32 %v2189, 1.442695
        %v2202 = vpow.pop %v2201
        %v2203 = vmul.f32 %v2190, 1.442695
        %v2204 = vpow.pop %v2203
        %v2205 = vmul.f32 %v2191, 1.442695
        %v2206 = vpow.pop %v2205
        %v2207 = vmul.f32 %v2192, 1.442695
        %v2208 = vpow.pop %v2207
        %v2209 = vsub.f32 %v2144, %v2177
        %v2210 = vsub.f32 %v2145, %v2178
        %v2211 = vsub.f32 %v2146, %v2179
        %v2212 = vsub.f32 %v2147, %v2180
        %v2213 = vsub.f32 %v2148, %v2181
        %v2214 = vsub.f32 %v2149, %v2182
        %v2215 = vsub.f32 %v2150, %v2183
        %v2216 = vsub.f32 %v2151, %v2184
        %v2217 = vmul.f32 %v2209, 1.442695
        %v2218 = vpow.pop %v2217
        %v2219 = vmul.f32 %v2210, 1.442695
        %v2220 = vpow.pop %v2219
        %v2221 = vmul.f32 %v2211, 1.442695
        %v2222 = vpow.pop %v2221
        %v2223 = vmul.f32 %v2212, 1.442695
        %v2224 = vpow.pop %v2223
        %v2225 = vmul.f32 %v2213, 1.442695
        %v2226 = vpow.pop %v2225
        %v2227 = vmul.f32 %v2214, 1.442695
        %v2228 = vpow.pop %v2227
        %v2229 = vmul.f32 %v2215, 1.442695
        %v2230 = vpow.pop %v2229
        %v2231 = vmul.f32 %v2216, 1.442695
        %v2232 = vpow.pop %v2231
        %v2233 = vmul.f32 %v2194, %v1409
        %v2234 = vmul.f32 %v2196, %v1410
        %v2235 = vmul.f32 %v2198, %v1411
        %v2236 = vmul.f32 %v2200, %v1412
        %v2237 = vmul.f32 %v2202, %v1413
        %v2238 = vmul.f32 %v2204, %v1414
        %v2239 = vmul.f32 %v2206, %v1415
        %v2240 = vmul.f32 %v2208, %v1416
        %v2241 = vsel %vm2152, %v2218, 0.0
        %2242 = vadd.xlane.f32.xlu0 %v2241
        %v2243 = vpop.xlane.xlu0 %2242
        %v2244 = vsel %vm2152, %v2220, 0.0
        %2245 = vadd.xlane.f32.xlu0 %v2244
        %v2246 = vpop.xlane.xlu0 %2245
        %v2247 = vsel %vm2152, %v2222, 0.0
        %2248 = vadd.xlane.f32.xlu0 %v2247
        %v2249 = vpop.xlane.xlu0 %2248
        %v2250 = vsel %vm2152, %v2224, 0.0
        %2251 = vadd.xlane.f32.xlu0 %v2250
        %v2252 = vpop.xlane.xlu0 %2251
        %v2253 = vsel %vm2152, %v2226, 0.0
        %2254 = vadd.xlane.f32.xlu0 %v2253
        %v2255 = vpop.xlane.xlu0 %2254
        %v2256 = vsel %vm2152, %v2228, 0.0
        %2257 = vadd.xlane.f32.xlu0 %v2256
        %v2258 = vpop.xlane.xlu0 %2257
        %v2259 = vsel %vm2152, %v2230, 0.0
        %2260 = vadd.xlane.f32.xlu0 %v2259
        %v2261 = vpop.xlane.xlu0 %2260
        %v2262 = vsel %vm2152, %v2232, 0.0
        %2263 = vadd.xlane.f32.xlu0 %v2262
        %v2264 = vpop.xlane.xlu0 %2263
        %v2265 = vadd.f32 %v2233, %v2243
        %v2266 = vadd.f32 %v2234, %v2246
        %v2267 = vadd.f32 %v2235, %v2249
        %v2268 = vadd.f32 %v2236, %v2252
        %v2269 = vadd.f32 %v2237, %v2255
        %v2270 = vadd.f32 %v2238, %v2258
        %v2271 = vadd.f32 %v2239, %v2261
        %v2272 = vadd.f32 %v2240, %v2264
        %v2273 = vmul.f32 %v2194, %v1417
        %v2274 = vmul.f32 %v2196, %v1418
        %v2275 = vmul.f32 %v2198, %v1419
        %v2276 = vmul.f32 %v2200, %v1420
        %v2277 = vmul.f32 %v2202, %v1421
        %v2278 = vmul.f32 %v2204, %v1422
        %v2279 = vmul.f32 %v2206, %v1423
        %v2280 = vmul.f32 %v2208, %v1424
        %v2281 = vpack.c.bf16 %v2220, %v2218
        %v2282 = vpack.c.bf16 %v2224, %v2222
        %v2283 = vpack.c.bf16 %v2228, %v2226
        %v2284 = vpack.c.bf16 %v2232, %v2230
        %v2286 = vsel %vm2152, %v2281, 0
        %2288 = vmatprep.subr.bf16.mxu0 0
        %2289 = vmatpush1.bf16.msra.mxu0 %v1366
        %2290 = vmatprep.subr.bf16.mxu0 0
        %2291 = vmatpush1.bf16.msra.mxu0 0
        %2292 = vmatprep.subr.bf16.mxu0 0
        %2293 = vmatpush1.bf16.msra.mxu0 0
        %2294 = vmatprep.subr.bf16.mxu0 0
        %2295 = vmatpush1.bf16.msra.mxu0 0
        %2296 = vmatprep.subr.bf16.mxu0 0
        %2297 = vmatpush1.bf16.msra.mxu0 0
        %2298 = vmatprep.subr.bf16.mxu0 0
        %2299 = vmatpush1.bf16.msra.mxu0 0
        %2300 = vmatprep.subr.bf16.mxu0 0
        %2301 = vmatpush1.bf16.msra.mxu0 0
        %2302 = vmatprep.subr.bf16.mxu0 0
        %2303 = vmatpush1.bf16.msra.mxu0 0
        %2304 = vmatprep.subr.bf16.mxu0 0
        %2305 = vmatpush1.bf16.msra.mxu0 0
        %2306 = vmatprep.subr.bf16.mxu0 0
        %2307 = vmatpush1.bf16.msra.mxu0 0
        %2308 = vmatprep.subr.bf16.mxu0 0
        %2309 = vmatpush1.bf16.msra.mxu0 0
        %2310 = vmatprep.subr.bf16.mxu0 0
        %2311 = vmatpush1.bf16.msra.mxu0 0
        %2312 = vmatprep.subr.bf16.mxu0 0
        %2313 = vmatpush1.bf16.msra.mxu0 0
        %2314 = vmatprep.subr.bf16.mxu0 0
        %2315 = vmatpush1.bf16.msra.mxu0 0
        %2316 = vmatprep.subr.bf16.mxu0 0
        %2317 = vmatpush1.bf16.msra.mxu0 0
        %2318 = vmatprep.subr.bf16.mxu0 0
        %2319 = vmatpush1.bf16.msra.mxu0 0
        %2320 = vmatprep.mubr.bf16.mxu0 0
        %2321 = vmatmul.mubr.bf16.gmra.mrb[0].mxu0 %v2286
        %v2322 = vpop.f32.mrb[0].mxu0
        %v2323 = vadd.f32 0.0, %v2322
        %v2324 = vpop.f32.mrb[0].mxu0
        %v2325 = vpop.f32.mrb[0].mxu0
        %v2326 = vadd.f32 0.0, %v2325
        %v2327 = vpop.f32.mrb[0].mxu0
        %2328 = vdwg.mxu0
        %v2330 = vsel %vm2152, %v2282, 0
        %2332 = vmatprep.subr.bf16.mxu0 0
        %2333 = vmatpush1.bf16.msra.mxu0 %v1370
        %2334 = vmatprep.subr.bf16.mxu0 0
        %2335 = vmatpush1.bf16.msra.mxu0 0
        %2336 = vmatprep.subr.bf16.mxu0 0
        %2337 = vmatpush1.bf16.msra.mxu0 0
        %2338 = vmatprep.subr.bf16.mxu0 0
        %2339 = vmatpush1.bf16.msra.mxu0 0
        %2340 = vmatprep.subr.bf16.mxu0 0
        %2341 = vmatpush1.bf16.msra.mxu0 0
        %2342 = vmatprep.subr.bf16.mxu0 0
        %2343 = vmatpush1.bf16.msra.mxu0 0
        %2344 = vmatprep.subr.bf16.mxu0 0
        %2345 = vmatpush1.bf16.msra.mxu0 0
        %2346 = vmatprep.subr.bf16.mxu0 0
        %2347 = vmatpush1.bf16.msra.mxu0 0
        %2348 = vmatprep.subr.bf16.mxu0 0
        %2349 = vmatpush1.bf16.msra.mxu0 0
        %2350 = vmatprep.subr.bf16.mxu0 0
        %2351 = vmatpush1.bf16.msra.mxu0 0
        %2352 = vmatprep.subr.bf16.mxu0 0
        %2353 = vmatpush1.bf16.msra.mxu0 0
        %2354 = vmatprep.subr.bf16.mxu0 0
        %2355 = vmatpush1.bf16.msra.mxu0 0
        %2356 = vmatprep.subr.bf16.mxu0 0
        %2357 = vmatpush1.bf16.msra.mxu0 0
        %2358 = vmatprep.subr.bf16.mxu0 0
        %2359 = vmatpush1.bf16.msra.mxu0 0
        %2360 = vmatprep.subr.bf16.mxu0 0
        %2361 = vmatpush1.bf16.msra.mxu0 0
        %2362 = vmatprep.subr.bf16.mxu0 0
        %2363 = vmatpush1.bf16.msra.mxu0 0
        %2364 = vmatprep.mubr.bf16.mxu0 0
        %2365 = vmatmul.mubr.bf16.gmra.mrb[0].mxu0 %v2330
        %v2366 = vpop.f32.mrb[0].mxu0
        %v2367 = vadd.f32 0.0, %v2366
        %v2368 = vpop.f32.mrb[0].mxu0
        %v2369 = vpop.f32.mrb[0].mxu0
        %v2370 = vadd.f32 0.0, %v2369
        %v2371 = vpop.f32.mrb[0].mxu0
        %2372 = vdwg.mxu0
        %v2374 = vsel %vm2152, %v2283, 0
        %2376 = vmatprep.subr.bf16.mxu0 0
        %2377 = vmatpush1.bf16.msra.mxu0 %v1374
        %2378 = vmatprep.subr.bf16.mxu0 0
        %2379 = vmatpush1.bf16.msra.mxu0 0
        %2380 = vmatprep.subr.bf16.mxu0 0
        %2381 = vmatpush1.bf16.msra.mxu0 0
        %2382 = vmatprep.subr.bf16.mxu0 0
        %2383 = vmatpush1.bf16.msra.mxu0 0
        %2384 = vmatprep.subr.bf16.mxu0 0
        %2385 = vmatpush1.bf16.msra.mxu0 0
        %2386 = vmatprep.subr.bf16.mxu0 0
        %2387 = vmatpush1.bf16.msra.mxu0 0
        %2388 = vmatprep.subr.bf16.mxu0 0
        %2389 = vmatpush1.bf16.msra.mxu0 0
        %2390 = vmatprep.subr.bf16.mxu0 0
        %2391 = vmatpush1.bf16.msra.mxu0 0
        %2392 = vmatprep.subr.bf16.mxu0 0
        %2393 = vmatpush1.bf16.msra.mxu0 0
        %2394 = vmatprep.subr.bf16.mxu0 0
        %2395 = vmatpush1.bf16.msra.mxu0 0
        %2396 = vmatprep.subr.bf16.mxu0 0
        %2397 = vmatpush1.bf16.msra.mxu0 0
        %2398 = vmatprep.subr.bf16.mxu0 0
        %2399 = vmatpush1.bf16.msra.mxu0 0
        %2400 = vmatprep.subr.bf16.mxu0 0
        %2401 = vmatpush1.bf16.msra.mxu0 0
        %2402 = vmatprep.subr.bf16.mxu0 0
        %2403 = vmatpush1.bf16.msra.mxu0 0
        %2404 = vmatprep.subr.bf16.mxu0 0
        %2405 = vmatpush1.bf16.msra.mxu0 0
        %2406 = vmatprep.subr.bf16.mxu0 0
        %2407 = vmatpush1.bf16.msra.mxu0 0
        %2408 = vmatprep.mubr.bf16.mxu0 0
        %2409 = vmatmul.mubr.bf16.gmra.mrb[0].mxu0 %v2374
        %v2410 = vpop.f32.mrb[0].mxu0
        %v2411 = vadd.f32 0.0, %v2410
        %v2412 = vpop.f32.mrb[0].mxu0
        %v2413 = vpop.f32.mrb[0].mxu0
        %v2414 = vadd.f32 0.0, %v2413
        %v2415 = vpop.f32.mrb[0].mxu0
        %2416 = vdwg.mxu0
        %v2418 = vsel %vm2152, %v2284, 0
        %2420 = vmatprep.subr.bf16.mxu0 0
        %2421 = vmatpush1.bf16.msra.mxu0 %v1378
        %2422 = vmatprep.subr.bf16.mxu0 0
        %2423 = vmatpush1.bf16.msra.mxu0 0
        %2424 = vmatprep.subr.bf16.mxu0 0
        %2425 = vmatpush1.bf16.msra.mxu0 0
        %2426 = vmatprep.subr.bf16.mxu0 0
        %2427 = vmatpush1.bf16.msra.mxu0 0
        %2428 = vmatprep.subr.bf16.mxu0 0
        %2429 = vmatpush1.bf16.msra.mxu0 0
        %2430 = vmatprep.subr.bf16.mxu0 0
        %2431 = vmatpush1.bf16.msra.mxu0 0
        %2432 = vmatprep.subr.bf16.mxu0 0
        %2433 = vmatpush1.bf16.msra.mxu0 0
        %2434 = vmatprep.subr.bf16.mxu0 0
        %2435 = vmatpush1.bf16.msra.mxu0 0
        %2436 = vmatprep.subr.bf16.mxu0 0
        %2437 = vmatpush1.bf16.msra.mxu0 0
        %2438 = vmatprep.subr.bf16.mxu0 0
        %2439 = vmatpush1.bf16.msra.mxu0 0
        %2440 = vmatprep.subr.bf16.mxu0 0
        %2441 = vmatpush1.bf16.msra.mxu0 0
        %2442 = vmatprep.subr.bf16.mxu0 0
        %2443 = vmatpush1.bf16.msra.mxu0 0
        %2444 = vmatprep.subr.bf16.mxu0 0
        %2445 = vmatpush1.bf16.msra.mxu0 0
        %2446 = vmatprep.subr.bf16.mxu0 0
        %2447 = vmatpush1.bf16.msra.mxu0 0
        %2448 = vmatprep.subr.bf16.mxu0 0
        %2449 = vmatpush1.bf16.msra.mxu0 0
        %2450 = vmatprep.subr.bf16.mxu0 0
        %2451 = vmatpush1.bf16.msra.mxu0 0
        %2452 = vmatprep.mubr.bf16.mxu0 0
        %2453 = vmatmul.mubr.bf16.gmra.mrb[0].mxu0 %v2418
        %v2454 = vpop.f32.mrb[0].mxu0
        %v2455 = vadd.f32 0.0, %v2454
        %v2456 = vpop.f32.mrb[0].mxu0
        %v2457 = vpop.f32.mrb[0].mxu0
        %v2458 = vadd.f32 0.0, %v2457
        %v2459 = vpop.f32.mrb[0].mxu0
        %2460 = vdwg.mxu0
        %v2461 = vadd.f32 %v2273, %v2323
        %v2462 = vadd.f32 %v2274, %v2326
        %v2463 = vadd.f32 %v2275, %v2367
        %v2464 = vadd.f32 %v2276, %v2370
        %v2465 = vadd.f32 %v2277, %v2411
        %v2466 = vadd.f32 %v2278, %v2414
        %v2467 = vadd.f32 %v2279, %v2455
        %v2468 = vadd.f32 %v2280, %v2458
        %v2469 = vrcp.pop %v2265
        %v2470 = vrcp.pop %v2266
        %v2471 = vrcp.pop %v2267
        %v2472 = vrcp.pop %v2268
        %v2473 = vrcp.pop %v2269
        %v2474 = vrcp.pop %v2270
        %v2475 = vrcp.pop %v2271
        %v2476 = vrcp.pop %v2272
        %v2477 = vmul.f32 %v2461, %v2469
        %v2478 = vmul.f32 %v2462, %v2470
        %v2479 = vmul.f32 %v2463, %v2471
        %v2480 = vmul.f32 %v2464, %v2472
        %v2481 = vmul.f32 %v2465, %v2473
        %v2482 = vmul.f32 %v2466, %v2474
        %v2483 = vmul.f32 %v2467, %v2475
        %v2484 = vmul.f32 %v2468, %v2476
        %v2485 = vcombine.low %v2477, %v2481
        %v2486 = vcombine.high %v2477, %v2481
        %v2488 = vunpack.c.l.s4 1983009808
        %v2489 = vunpack.c.0.s8 %v2488
        %v2490 = vlaneseq
        %v2491 = vshrl.u32 %v2490, 7
        %v2492 = vsub.s32 %v2489, %v2491
        %v2493 = vrot.slane %v2485, %v2492
        %v2495 = vunpack.c.l.s4 1983009808
        %v2496 = vunpack.c.0.s8 %v2495
        %v2497 = vlaneseq
        %v2498 = vshrl.u32 %v2497, 7
        %v2499 = vsub.s32 %v2496, %v2498
        %v2500 = vrot.slane %v2486, %v2499
        %v2501 = vcombine.low %v2479, %v2483
        %v2502 = vcombine.high %v2479, %v2483
        %v2504 = vunpack.c.l.s4 1983009808
        %v2505 = vunpack.c.0.s8 %v2504
        %v2506 = vlaneseq
        %v2507 = vshrl.u32 %v2506, 7
        %v2508 = vsub.s32 %v2505, %v2507
        %v2509 = vrot.slane %v2501, %v2508
        %v2511 = vunpack.c.l.s4 1983009808
        %v2512 = vunpack.c.0.s8 %v2511
        %v2513 = vlaneseq
        %v2514 = vshrl.u32 %v2513, 7
        %v2515 = vsub.s32 %v2512, %v2514
        %v2516 = vrot.slane %v2502, %v2515
        %v2517 = vcombine.low %v2493, %v2509
        %v2518 = vcombine.high %v2493, %v2509
        %v2520 = vunpack.c.l.s4 1934713408
        %v2521 = vunpack.c.0.s8 %v2520
        %v2522 = vlaneseq
        %v2523 = vshrl.u32 %v2522, 7
        %v2524 = vsub.s32 %v2521, %v2523
        %v2525 = vrot.slane %v2517, %v2524
        %v2527 = vunpack.c.l.s4 1934713408
        %v2528 = vunpack.c.0.s8 %v2527
        %v2529 = vlaneseq
        %v2530 = vshrl.u32 %v2529, 7
        %v2531 = vsub.s32 %v2528, %v2530
        %v2532 = vrot.slane %v2518, %v2531
        %v2533 = vcombine.low %v2500, %v2516
        %v2534 = vcombine.high %v2500, %v2516
        %v2536 = vunpack.c.l.s4 1934713408
        %v2537 = vunpack.c.0.s8 %v2536
        %v2538 = vlaneseq
        %v2539 = vshrl.u32 %v2538, 7
        %v2540 = vsub.s32 %v2537, %v2539
        %v2541 = vrot.slane %v2533, %v2540
        %v2543 = vunpack.c.l.s4 1934713408
        %v2544 = vunpack.c.0.s8 %v2543
        %v2545 = vlaneseq
        %v2546 = vshrl.u32 %v2545, 7
        %v2547 = vsub.s32 %v2544, %v2546
        %v2548 = vrot.slane %v2534, %v2547
        %v2549 = vcombine.high %v2525, 0.0
        %v2550 = vcombine.high %v2532, 0.0
        %v2551 = vcombine.high %v2541, 0.0
        %v2552 = vcombine.high %v2548, 0.0
        %v2553 = vcombine.low %v2478, %v2482
        %v2554 = vcombine.high %v2478, %v2482
        %v2556 = vunpack.c.l.s4 1983009808
        %v2557 = vunpack.c.0.s8 %v2556
        %v2558 = vlaneseq
        %v2559 = vshrl.u32 %v2558, 7
        %v2560 = vsub.s32 %v2557, %v2559
        %v2561 = vrot.slane %v2553, %v2560
        %v2563 = vunpack.c.l.s4 1983009808
        %v2564 = vunpack.c.0.s8 %v2563
        %v2565 = vlaneseq
        %v2566 = vshrl.u32 %v2565, 7
        %v2567 = vsub.s32 %v2564, %v2566
        %v2568 = vrot.slane %v2554, %v2567
        %v2569 = vcombine.low %v2480, %v2484
        %v2570 = vcombine.high %v2480, %v2484
        %v2572 = vunpack.c.l.s4 1983009808
        %v2573 = vunpack.c.0.s8 %v2572
        %v2574 = vlaneseq
        %v2575 = vshrl.u32 %v2574, 7
        %v2576 = vsub.s32 %v2573, %v2575
        %v2577 = vrot.slane %v2569, %v2576
        %v2579 = vunpack.c.l.s4 1983009808
        %v2580 = vunpack.c.0.s8 %v2579
        %v2581 = vlaneseq
        %v2582 = vshrl.u32 %v2581, 7
        %v2583 = vsub.s32 %v2580, %v2582
        %v2584 = vrot.slane %v2570, %v2583
        %v2585 = vcombine.low %v2561, %v2577
        %v2586 = vcombine.high %v2561, %v2577
        %v2588 = vunpack.c.l.s4 1934713408
        %v2589 = vunpack.c.0.s8 %v2588
        %v2590 = vlaneseq
        %v2591 = vshrl.u32 %v2590, 7
        %v2592 = vsub.s32 %v2589, %v2591
        %v2593 = vrot.slane %v2585, %v2592
        %v2595 = vunpack.c.l.s4 1934713408
        %v2596 = vunpack.c.0.s8 %v2595
        %v2597 = vlaneseq
        %v2598 = vshrl.u32 %v2597, 7
        %v2599 = vsub.s32 %v2596, %v2598
        %v2600 = vrot.slane %v2586, %v2599
        %v2601 = vcombine.low %v2568, %v2584
        %v2602 = vcombine.high %v2568, %v2584
        %v2604 = vunpack.c.l.s4 1934713408
        %v2605 = vunpack.c.0.s8 %v2604
        %v2606 = vlaneseq
        %v2607 = vshrl.u32 %v2606, 7
        %v2608 = vsub.s32 %v2605, %v2607
        %v2609 = vrot.slane %v2601, %v2608
        %v2611 = vunpack.c.l.s4 1934713408
        %v2612 = vunpack.c.0.s8 %v2611
        %v2613 = vlaneseq
        %v2614 = vshrl.u32 %v2613, 7
        %v2615 = vsub.s32 %v2612, %v2614
        %v2616 = vrot.slane %v2602, %v2615
        %v2617 = vcombine.high %v2593, 0.0
        %v2618 = vcombine.high %v2600, 0.0
        %v2619 = vcombine.high %v2609, 0.0
        %v2620 = vcombine.high %v2616, 0.0
        %v2621 = vcombine.low %v2525, %v2532
        %v2623 = vunpack.c.l.s4 1983009808
        %v2624 = vunpack.c.0.s8 %v2623
        %v2625 = vlaneseq
        %v2626 = vshrl.u32 %v2625, 7
        %v2627 = vsub.s32 %v2624, %v2626
        %v2628 = vrot.slane %v2621, %v2627
        %v2629 = vcombine.low %v2549, %v2550
        %v2631 = vunpack.c.l.s4 1983009808
        %v2632 = vunpack.c.0.s8 %v2631
        %v2633 = vlaneseq
        %v2634 = vshrl.u32 %v2633, 7
        %v2635 = vsub.s32 %v2632, %v2634
        %v2636 = vrot.slane %v2629, %v2635
        %v2637 = vcombine.low %v2541, %v2548
        %v2639 = vunpack.c.l.s4 1983009808
        %v2640 = vunpack.c.0.s8 %v2639
        %v2641 = vlaneseq
        %v2642 = vshrl.u32 %v2641, 7
        %v2643 = vsub.s32 %v2640, %v2642
        %v2644 = vrot.slane %v2637, %v2643
        %v2645 = vcombine.low %v2551, %v2552
        %v2647 = vunpack.c.l.s4 1983009808
        %v2648 = vunpack.c.0.s8 %v2647
        %v2649 = vlaneseq
        %v2650 = vshrl.u32 %v2649, 7
        %v2651 = vsub.s32 %v2648, %v2650
        %v2652 = vrot.slane %v2645, %v2651
        %v2653 = vcombine.low %v2628, %v2636
        %v2654 = vcombine.high %v2628, %v2636
        %v2656 = vunpack.c.l.s4 1934713408
        %v2657 = vunpack.c.0.s8 %v2656
        %v2658 = vlaneseq
        %v2659 = vshrl.u32 %v2658, 7
        %v2660 = vsub.s32 %v2657, %v2659
        %v2661 = vrot.slane %v2653, %v2660
        %v2663 = vunpack.c.l.s4 1934713408
        %v2664 = vunpack.c.0.s8 %v2663
        %v2665 = vlaneseq
        %v2666 = vshrl.u32 %v2665, 7
        %v2667 = vsub.s32 %v2664, %v2666
        %v2668 = vrot.slane %v2654, %v2667
        %v2669 = vcombine.low %v2644, %v2652
        %v2670 = vcombine.high %v2644, %v2652
        %v2672 = vunpack.c.l.s4 1934713408
        %v2673 = vunpack.c.0.s8 %v2672
        %v2674 = vlaneseq
        %v2675 = vshrl.u32 %v2674, 7
        %v2676 = vsub.s32 %v2673, %v2675
        %v2677 = vrot.slane %v2669, %v2676
        %v2679 = vunpack.c.l.s4 1934713408
        %v2680 = vunpack.c.0.s8 %v2679
        %v2681 = vlaneseq
        %v2682 = vshrl.u32 %v2681, 7
        %v2683 = vsub.s32 %v2680, %v2682
        %v2684 = vrot.slane %v2670, %v2683
        %v2685 = vcombine.low %v2661, %v2677
        %v2686 = vcombine.high %v2661, %v2677
        %v2687 = vcombine.low %v2668, %v2684
        %v2688 = vcombine.high %v2668, %v2684
        %v2689 = vcombine.low %v2593, %v2600
        %v2691 = vunpack.c.l.s4 1983009808
        %v2692 = vunpack.c.0.s8 %v2691
        %v2693 = vlaneseq
        %v2694 = vshrl.u32 %v2693, 7
        %v2695 = vsub.s32 %v2692, %v2694
        %v2696 = vrot.slane %v2689, %v2695
        %v2697 = vcombine.low %v2617, %v2618
        %v2699 = vunpack.c.l.s4 1983009808
        %v2700 = vunpack.c.0.s8 %v2699
        %v2701 = vlaneseq
        %v2702 = vshrl.u32 %v2701, 7
        %v2703 = vsub.s32 %v2700, %v2702
        %v2704 = vrot.slane %v2697, %v2703
        %v2705 = vcombine.low %v2609, %v2616
        %v2707 = vunpack.c.l.s4 1983009808
        %v2708 = vunpack.c.0.s8 %v2707
        %v2709 = vlaneseq
        %v2710 = vshrl.u32 %v2709, 7
        %v2711 = vsub.s32 %v2708, %v2710
        %v2712 = vrot.slane %v2705, %v2711
        %v2713 = vcombine.low %v2619, %v2620
        %v2715 = vunpack.c.l.s4 1983009808
        %v2716 = vunpack.c.0.s8 %v2715
        %v2717 = vlaneseq
        %v2718 = vshrl.u32 %v2717, 7
        %v2719 = vsub.s32 %v2716, %v2718
        %v2720 = vrot.slane %v2713, %v2719
        %v2721 = vcombine.low %v2696, %v2704
        %v2722 = vcombine.high %v2696, %v2704
        %v2724 = vunpack.c.l.s4 1934713408
        %v2725 = vunpack.c.0.s8 %v2724
        %v2726 = vlaneseq
        %v2727 = vshrl.u32 %v2726, 7
        %v2728 = vsub.s32 %v2725, %v2727
        %v2729 = vrot.slane %v2721, %v2728
        %v2731 = vunpack.c.l.s4 1934713408
        %v2732 = vunpack.c.0.s8 %v2731
        %v2733 = vlaneseq
        %v2734 = vshrl.u32 %v2733, 7
        %v2735 = vsub.s32 %v2732, %v2734
        %v2736 = vrot.slane %v2722, %v2735
        %v2737 = vcombine.low %v2712, %v2720
        %v2738 = vcombine.high %v2712, %v2720
        %v2740 = vunpack.c.l.s4 1934713408
        %v2741 = vunpack.c.0.s8 %v2740
        %v2742 = vlaneseq
        %v2743 = vshrl.u32 %v2742, 7
        %v2744 = vsub.s32 %v2741, %v2743
        %v2745 = vrot.slane %v2737, %v2744
        %v2747 = vunpack.c.l.s4 1934713408
        %v2748 = vunpack.c.0.s8 %v2747
        %v2749 = vlaneseq
        %v2750 = vshrl.u32 %v2749, 7
        %v2751 = vsub.s32 %v2748, %v2750
        %v2752 = vrot.slane %v2738, %v2751
        %v2753 = vcombine.low %v2729, %v2745
        %v2754 = vcombine.high %v2729, %v2745
        %v2755 = vcombine.low %v2736, %v2752
        %v2756 = vcombine.high %v2736, %v2752
        %2759 = vrot.lane.b32.xlu0 %v2686, 8
        %v2760 = vpop.permute.xlu0 %2759
        %2761 = vrot.lane.b32.xlu0 %v2754, 8
        %v2762 = vpop.permute.xlu0 %2761
        %2767 = vrot.lane.b32.xlu0 %v2687, 16
        %v2768 = vpop.permute.xlu0 %2767
        %2769 = vrot.lane.b32.xlu0 %v2755, 16
        %v2770 = vpop.permute.xlu0 %2769
        %2775 = vrot.lane.b32.xlu0 %v2688, 24
        %v2776 = vpop.permute.xlu0 %2775
        %2777 = vrot.lane.b32.xlu0 %v2756, 24
        %v2778 = vpop.permute.xlu0 %2777
        %v2781 = vsel %vm1384, %v2685, %v2760
        %v2782 = vsel %vm1384, %v2753, %v2762
        %v2783 = vsel %vm2152, %v2781, %v2768
        %v2784 = vsel %vm2152, %v2782, %v2770
        %vm2785 = vcmask 195584
        %v2786 = vsel %vm2785, %v2783, %v2776
        %v2787 = vsel %vm2785, %v2784, %v2778
        %v2788 = vpack.c.bf16 %v2787, %v2786
        %v2789 = vld [vmem:[%s3] sm:$0xf]
        %v2790 = vld [vmem:[%s3 + $0x4] sm:$0xf]
        %v2791 = vld [vmem:[%s3 + $0x8] sm:$0xf]
        %v2792 = vld [vmem:[%s3 + $0xc] sm:$0xf]
        %v2793 = vld [vmem:[%s4] sm:$0x1]
        %v2795 = vlaneseq
        %v2796 = vshrl.u32 %v2795, 7
        %v2797 = vsub.s32 0, %v2796
        %v2798 = vrot.slane %v2793, %v2797
        %v2804 = vunpack.c.l.b16 %v2789
        %v2805 = vunpack.c.l.b16 %v2790
        %v2806 = vunpack.c.l.b16 %v2791
        %v2807 = vunpack.c.l.b16 %v2792
        %v2808 = vpack.c.b16 %v2805, %v2804
        %v2809 = vpack.c.b16 %v2807, %v2806
        %v2813 = vsel %vm507, %v2788, 0
        %2815 = vmatprep.subr.bf16.mxu0 0
        %2816 = vmatpush1.bf16.msra.mxu0 %v2808
        %2817 = vmatprep.subr.bf16.mxu0 0
        %2818 = vmatpush1.bf16.msra.mxu0 %v2809
        %2819 = vmatprep.subr.bf16.mxu0 0
        %2820 = vmatpush1.bf16.msra.mxu0 0
        %2821 = vmatprep.subr.bf16.mxu0 0
        %2822 = vmatpush1.bf16.msra.mxu0 0
        %2823 = vmatprep.subr.bf16.mxu0 0
        %2824 = vmatpush1.bf16.msra.mxu0 0
        %2825 = vmatprep.subr.bf16.mxu0 0
        %2826 = vmatpush1.bf16.msra.mxu0 0
        %2827 = vmatprep.subr.bf16.mxu0 0
        %2828 = vmatpush1.bf16.msra.mxu0 0
        %2829 = vmatprep.subr.bf16.mxu0 0
        %2830 = vmatpush1.bf16.msra.mxu0 0
        %2831 = vmatprep.subr.bf16.mxu0 0
        %2832 = vmatpush1.bf16.msra.mxu0 0
        %2833 = vmatprep.subr.bf16.mxu0 0
        %2834 = vmatpush1.bf16.msra.mxu0 0
        %2835 = vmatprep.subr.bf16.mxu0 0
        %2836 = vmatpush1.bf16.msra.mxu0 0
        %2837 = vmatprep.subr.bf16.mxu0 0
        %2838 = vmatpush1.bf16.msra.mxu0 0
        %2839 = vmatprep.subr.bf16.mxu0 0
        %2840 = vmatpush1.bf16.msra.mxu0 0
        %2841 = vmatprep.subr.bf16.mxu0 0
        %2842 = vmatpush1.bf16.msra.mxu0 0
        %2843 = vmatprep.subr.bf16.mxu0 0
        %2844 = vmatpush1.bf16.msra.mxu0 0
        %2845 = vmatprep.subr.bf16.mxu0 0
        %2846 = vmatpush1.bf16.msra.mxu0 0
        %2847 = vmatprep.mubr.bf16.mxu0 0
        %2848 = vmatmul.mubr.bf16.gmra.mrb[0].mxu0 %v2813
        %v2849 = vpop.f32.mrb[0].mxu0
        %v2850 = vadd.f32 %v2798, %v2849
        %v2851 = vpop.f32.mrb[0].mxu0
        %v2852 = vpop.f32.mrb[0].mxu0
        %v2853 = vadd.f32 %v2798, %v2852
        %v2854 = vpop.f32.mrb[0].mxu0
        %2855 = vdwg.mxu0
        %v2856 = vadd.f32 %v481, %v2850
        %v2857 = vadd.f32 %v482, %v2853
        %v2858 = vld [vmem:[%s9] sm:$0x1]
        %v2859 = vld [vmem:[%s10] sm:$0x1]
        %v2860 = vsel %vm507, %v2856, 0.0
        %2861 = vadd.xlane.f32.xlu0 %v2860
        %v2862 = vpop.xlane.xlu0 %2861
        %v2863 = vsel %vm507, %v2857, 0.0
        %2864 = vadd.xlane.f32.xlu0 %v2863
        %v2865 = vpop.xlane.xlu0 %2864
        %v2866 = vrcp.pop 32.0
        %v2867 = vmul.f32 %v2862, %v2866
        %v2868 = vmul.f32 %v2865, %v2866
        %v2869 = vsub.f32 %v2856, %v2867
        %v2870 = vsub.f32 %v2857, %v2868
        %v2871 = vmul.f32 %v2869, %v2869
        %v2872 = vmul.f32 %v2870, %v2870
        %v2873 = vsel %vm507, %v2871, 0.0
        %2874 = vadd.xlane.f32.xlu0 %v2873
        %v2875 = vpop.xlane.xlu0 %2874
        %v2876 = vsel %vm507, %v2872, 0.0
        %2877 = vadd.xlane.f32.xlu0 %v2876
        %v2878 = vpop.xlane.xlu0 %2877
        %v2879 = vmul.f32 %v2875, %v2866
        %v2880 = vmul.f32 %v2878, %v2866
        %v2881 = vadd.f32 %v2879, 1e-05
        %v2882 = vadd.f32 %v2880, 1e-05
        %v2883 = vrsqrt.pop %v2881
        %v2884 = vrsqrt.pop %v2882
        %v2885 = vmul.f32 %v2869, %v2883
        %v2886 = vmul.f32 %v2870, %v2884
        %v2888 = vlaneseq
        %v2889 = vshrl.u32 %v2888, 7
        %v2890 = vsub.s32 0, %v2889
        %v2891 = vrot.slane %v2858, %v2890
        %v2893 = vmul.f32 %v2885, %v2891
        %v2894 = vmul.f32 %v2886, %v2891
        %v2896 = vlaneseq
        %v2897 = vshrl.u32 %v2896, 7
        %v2898 = vsub.s32 0, %v2897
        %v2899 = vrot.slane %v2859, %v2898
        %v2901 = vadd.f32 %v2893, %v2899
        %v2902 = vadd.f32 %v2894, %v2899
        %v2903 = vpack.c.bf16 %v2902, %v2901
        %v2904 = vld [vmem:[%s5] sm:$0xf]
        %v2905 = vld [vmem:[%s5 + $0x4] sm:$0xf]
        %v2906 = vld [vmem:[%s5 + $0x8] sm:$0xf]
        %v2907 = vld [vmem:[%s5 + $0xc] sm:$0xf]
        %v2908 = vld [vmem:[%s6] sm:$0x1]
        %v2910 = vlaneseq
        %v2911 = vshrl.u32 %v2910, 7
        %v2912 = vsub.s32 0, %v2911
        %v2913 = vrot.slane %v2908, %v2912
        %v2919 = vunpack.c.l.b16 %v2904
        %v2920 = vunpack.c.l.b16 %v2905
        %v2921 = vunpack.c.l.b16 %v2906
        %v2922 = vunpack.c.l.b16 %v2907
        %v2923 = vpack.c.b16 %v2920, %v2919
        %v2924 = vpack.c.b16 %v2922, %v2921
        %v2928 = vsel %vm507, %v2903, 0
        %2930 = vmatprep.subr.bf16.mxu0 0
        %2931 = vmatpush1.bf16.msra.mxu0 %v2923
        %2932 = vmatprep.subr.bf16.mxu0 0
        %2933 = vmatpush1.bf16.msra.mxu0 %v2924
        %2934 = vmatprep.subr.bf16.mxu0 0
        %2935 = vmatpush1.bf16.msra.mxu0 0
        %2936 = vmatprep.subr.bf16.mxu0 0
        %2937 = vmatpush1.bf16.msra.mxu0 0
        %2938 = vmatprep.subr.bf16.mxu0 0
        %2939 = vmatpush1.bf16.msra.mxu0 0
        %2940 = vmatprep.subr.bf16.mxu0 0
        %2941 = vmatpush1.bf16.msra.mxu0 0
        %2942 = vmatprep.subr.bf16.mxu0 0
        %2943 = vmatpush1.bf16.msra.mxu0 0
        %2944 = vmatprep.subr.bf16.mxu0 0
        %2945 = vmatpush1.bf16.msra.mxu0 0
        %2946 = vmatprep.subr.bf16.mxu0 0
        %2947 = vmatpush1.bf16.msra.mxu0 0
        %2948 = vmatprep.subr.bf16.mxu0 0
        %2949 = vmatpush1.bf16.msra.mxu0 0
        %2950 = vmatprep.subr.bf16.mxu0 0
        %2951 = vmatpush1.bf16.msra.mxu0 0
        %2952 = vmatprep.subr.bf16.mxu0 0
        %2953 = vmatpush1.bf16.msra.mxu0 0
        %2954 = vmatprep.subr.bf16.mxu0 0
        %2955 = vmatpush1.bf16.msra.mxu0 0
        %2956 = vmatprep.subr.bf16.mxu0 0
        %2957 = vmatpush1.bf16.msra.mxu0 0
        %2958 = vmatprep.subr.bf16.mxu0 0
        %2959 = vmatpush1.bf16.msra.mxu0 0
        %2960 = vmatprep.subr.bf16.mxu0 0
        %2961 = vmatpush1.bf16.msra.mxu0 0
        %2962 = vmatprep.mubr.bf16.mxu0 0
        %2963 = vmatmul.mubr.bf16.gmra.mrb[0].mxu0 %v2928
        %v2964 = vpop.f32.mrb[0].mxu0
        %v2965 = vadd.f32 %v2913, %v2964
        %v2966 = vpop.f32.mrb[0].mxu0
        %v2967 = vpop.f32.mrb[0].mxu0
        %v2968 = vadd.f32 %v2913, %v2967
        %v2969 = vpop.f32.mrb[0].mxu0
        %2970 = vdwg.mxu0
        %v2971 = vmax.f32 %v2965, 0.0
        %v2972 = vmax.f32 %v2968, 0.0
        %v2973 = vpack.c.bf16 %v2972, %v2971
        %v2974 = vld [vmem:[%s7] sm:$0xf]
        %v2975 = vld [vmem:[%s7 + $0x4] sm:$0xf]
        %v2976 = vld [vmem:[%s7 + $0x8] sm:$0xf]
        %v2977 = vld [vmem:[%s7 + $0xc] sm:$0xf]
        %v2978 = vld [vmem:[%s7 + $0x10] sm:$0xf]
        %v2979 = vld [vmem:[%s7 + $0x14] sm:$0xf]
        %v2980 = vld [vmem:[%s7 + $0x18] sm:$0xf]
        %v2981 = vld [vmem:[%s7 + $0x1c] sm:$0xf]
        %v2982 = vld [vmem:[%s8] sm:$0x1]
        %v2984 = vlaneseq
        %v2985 = vshrl.u32 %v2984, 7
        %v2986 = vsub.s32 0, %v2985
        %v2987 = vrot.slane %v2982, %v2986
        %v2997 = vunpack.c.l.b16 %v2974
        %v2998 = vunpack.c.l.b16 %v2975
        %v2999 = vunpack.c.l.b16 %v2976
        %v3000 = vunpack.c.l.b16 %v2977
        %v3001 = vunpack.c.l.b16 %v2978
        %v3002 = vunpack.c.l.b16 %v2979
        %v3003 = vunpack.c.l.b16 %v2980
        %v3004 = vunpack.c.l.b16 %v2981
        %v3005 = vpack.c.b16 %v2998, %v2997
        %v3006 = vpack.c.b16 %v3000, %v2999
        %v3007 = vpack.c.b16 %v3002, %v3001
        %v3008 = vpack.c.b16 %v3004, %v3003
        %vm3013 = vcmask 523264
        %v3015 = vsel %vm3013, %v2973, 0
        %3017 = vmatprep.subr.bf16.mxu0 0
        %3018 = vmatpush1.bf16.msra.mxu0 %v3005
        %3019 = vmatprep.subr.bf16.mxu0 0
        %3020 = vmatpush1.bf16.msra.mxu0 %v3006
        %3021 = vmatprep.subr.bf16.mxu0 0
        %3022 = vmatpush1.bf16.msra.mxu0 %v3007
        %3023 = vmatprep.subr.bf16.mxu0 0
        %3024 = vmatpush1.bf16.msra.mxu0 %v3008
        %3025 = vmatprep.subr.bf16.mxu0 0
        %3026 = vmatpush1.bf16.msra.mxu0 0
        %3027 = vmatprep.subr.bf16.mxu0 0
        %3028 = vmatpush1.bf16.msra.mxu0 0
        %3029 = vmatprep.subr.bf16.mxu0 0
        %3030 = vmatpush1.bf16.msra.mxu0 0
        %3031 = vmatprep.subr.bf16.mxu0 0
        %3032 = vmatpush1.bf16.msra.mxu0 0
        %3033 = vmatprep.subr.bf16.mxu0 0
        %3034 = vmatpush1.bf16.msra.mxu0 0
        %3035 = vmatprep.subr.bf16.mxu0 0
        %3036 = vmatpush1.bf16.msra.mxu0 0
        %3037 = vmatprep.subr.bf16.mxu0 0
        %3038 = vmatpush1.bf16.msra.mxu0 0
        %3039 = vmatprep.subr.bf16.mxu0 0
        %3040 = vmatpush1.bf16.msra.mxu0 0
        %3041 = vmatprep.subr.bf16.mxu0 0
        %3042 = vmatpush1.bf16.msra.mxu0 0
        %3043 = vmatprep.subr.bf16.mxu0 0
        %3044 = vmatpush1.bf16.msra.mxu0 0
        %3045 = vmatprep.subr.bf16.mxu0 0
        %3046 = vmatpush1.bf16.msra.mxu0 0
        %3047 = vmatprep.subr.bf16.mxu0 0
        %3048 = vmatpush1.bf16.msra.mxu0 0
        %3049 = vmatprep.mubr.bf16.mxu0 0
        %3050 = vmatmul.mubr.bf16.gmra.mrb[0].mxu0 %v3015
        %v3051 = vpop.f32.mrb[0].mxu0
        %v3052 = vadd.f32 %v2987, %v3051
        %v3053 = vpop.f32.mrb[0].mxu0
        %v3054 = vpop.f32.mrb[0].mxu0
        %v3055 = vadd.f32 %v2987, %v3054
        %v3056 = vpop.f32.mrb[0].mxu0
        %3057 = vdwg.mxu0
        %v3058 = vadd.f32 %v2901, %v3052
        %v3059 = vadd.f32 %v2902, %v3055
        %v3060 = vld [vmem:[%s11] sm:$0x1]
        %v3061 = vld [vmem:[%s12] sm:$0x1]
        %v3062 = vsel %vm507, %v3058, 0.0
        %3063 = vadd.xlane.f32.xlu0 %v3062
        %v3064 = vpop.xlane.xlu0 %3063
        %v3065 = vsel %vm507, %v3059, 0.0
        %3066 = vadd.xlane.f32.xlu0 %v3065
        %v3067 = vpop.xlane.xlu0 %3066
        %v3068 = vmul.f32 %v3064, %v2866
        %v3069 = vmul.f32 %v3067, %v2866
        %v3070 = vsub.f32 %v3058, %v3068
        %v3071 = vsub.f32 %v3059, %v3069
        %v3072 = vmul.f32 %v3070, %v3070
        %v3073 = vmul.f32 %v3071, %v3071
        %v3074 = vsel %vm507, %v3072, 0.0
        %3075 = vadd.xlane.f32.xlu0 %v3074
        %v3076 = vpop.xlane.xlu0 %3075
        %v3077 = vsel %vm507, %v3073, 0.0
        %3078 = vadd.xlane.f32.xlu0 %v3077
        %v3079 = vpop.xlane.xlu0 %3078
        %v3080 = vmul.f32 %v3076, %v2866
        %v3081 = vmul.f32 %v3079, %v2866
        %v3082 = vadd.f32 %v3080, 1e-05
        %v3083 = vadd.f32 %v3081, 1e-05
        %v3084 = vrsqrt.pop %v3082
        %v3085 = vrsqrt.pop %v3083
        %v3086 = vmul.f32 %v3070, %v3084
        %v3087 = vmul.f32 %v3071, %v3085
        %v3089 = vlaneseq
        %v3090 = vshrl.u32 %v3089, 7
        %v3091 = vsub.s32 0, %v3090
        %v3092 = vrot.slane %v3060, %v3091
        %v3094 = vmul.f32 %v3086, %v3092
        %v3095 = vmul.f32 %v3087, %v3092
        %v3097 = vlaneseq
        %v3098 = vshrl.u32 %v3097, 7
        %v3099 = vsub.s32 0, %v3098
        %v3100 = vrot.slane %v3061, %v3099
        %v3102 = vadd.f32 %v3094, %v3100
        %v3103 = vadd.f32 %v3095, %v3100
        %3104 = vst.msk [vmem:[%s476] sm:$0xff] %vm507, %v3102
        %3105 = vst.msk [vmem:[%s476 + $0x8] sm:$0xff] %vm507, %v3103
        %s3106 = sand.u32 %s332, 1
        %s3107 = scalar_lea.sflag [#allocation6], %s3106
        %s3108 = sand.u32 %s332, 1
        %s3109 = smul.addr %s3108, 16
        %s3110 = scalar_lea.vmem [#allocation7], %s3109
        // Predicated region
        $region84: #{tpu_custom_call.1} parent=71 // pred_check
          %p3111 = pneg %p342
        $region85: #{tpu_custom_call.1} parent=71 // pred_check_branch
          %3113 = sbr.rel (%p3111) target = $region87
        $region86: #{tpu_custom_call.1} parent=71 // pred_region
          %s3114 = smul.u32 2, %s35
          %s3116 = ssub.s32 256, 256
          %3117 = vsyncadd %s3107, %s3116
          %s3118 = smul.addr %s34, 4
          %s3119 = sadd.s32 %s3114, %s3118
          %s3120 = smul.addr %s3119, 128
          %s3121 = scalar_lea.hbm %s13, %s3120
          %s3122 = sshll.u32 %s3110, 4
          %s3123 = int_to_ptr.vmem [resolvable:$true] %s3122
          %3128 = dma.vmem_to_hbm [thread:$0]  %s3123, 256, %s3121, %s3107, 128, 128, 8
        $region87: #{tpu_custom_call.1} parent=71 // pred_fallthru
          _
      $region72: #{tpu_custom_call.1} parent=5 // pred_fallthru
        _
      %p3129 = scmp.le.s32.totalorder 2, %s25
      // Predicated region
      $region88: #{tpu_custom_call.1} parent=5 // pred_check
        %p3130 = pneg %p3129
      $region89: #{tpu_custom_call.1} parent=5 // pred_check_branch
        %3132 = sbr.rel (%p3130) target = $region91
      $region90: #{tpu_custom_call.1} parent=5 // pred_region
        %s3133 = ssub.s32 %s25, 2
        // Predicated region
        $region92: #{tpu_custom_call.1} parent=90 // pred_check
          %p3134 = pneg %p348
        $region93: #{tpu_custom_call.1} parent=90 // pred_check_branch
          %3136 = sbr.rel (%p3134) target = $region95
        $region94: #{tpu_custom_call.1} parent=90 // pred_region
          %s3137 = sand.u32 %s333, 1
          %s3138 = scalar_lea.sflag [#allocation6], %s3137
          %s3139 = sand.u32 %s333, 1
          %s3140 = smul.addr %s3139, 16
          %s3141 = scalar_lea.vmem [#allocation7], %s3140
          %3142 = dma.done %s3138, 256
        $region95: #{tpu_custom_call.1} parent=90 // pred_fallthru
          _
      $region91: #{tpu_custom_call.1} parent=5 // pred_fallthru
        _
    $region6: #{tpu_custom_call.1} parent=1 // loop_footer
      %s29 = sadd.s32 1, %s25
    $region7: #{tpu_custom_call.1} parent=1 // loop_footer_branch
      %24 = sbr.rel target = $region3
    $region8: #{tpu_custom_call.1} parent=1 // loop_exit
      _
    %3143 = vsyncpa [#allocation5], 1
    %s3144 = scalar_lea.sflag [#allocation5], 1
    %3145 = vsyncpa %s3144, 1
    %3146 = vsyncpa [#allocation6], 1
    %s3147 = scalar_lea.sflag [#allocation6], 1
    %3148 = vsyncpa %s3147, 1

</llo_original>
